<compile_context>
chip_gen: v5e
topology: v5e:2x2
jax: 0.10.0
libtpu: 0.0.40
codegen_flags: <defaults>
</compile_context>

<pallas_src>
import functools

import jax
import jax.numpy as jnp
from jax.experimental import pallas as pl

# ----------------------------- model config ---------------------------------
N_VOCAB = 256                     # small vocab for the self-contained example
H_DIM = 128                       # matches the module's h_dim = 128
Z_DIM = 128                       # matches the module's z_dim = 128
EMB_DIM = H_DIM                   # pretrained_embeddings=None -> emb_dim = h_dim
P_WORD_DROPOUT = 0.3
UNK_IDX, PAD_IDX, START_IDX, EOS_IDX = 0, 1, 2, 3

SEQ_LEN = 8
MBSIZE = 2
ROWPAD = 8                        # rows per time step padded to one sublane tile
assert MBSIZE <= ROWPAD

G = 3 * H_DIM                     # stacked GRU gate width (r|z|n) = 384

# column offsets inside the packed weight / bias slabs (all multiples of 128)
OFF_ENC_WIH = 0                   # (128, 384)
OFF_ENC_WHH = OFF_ENC_WIH + G     # (128, 384)
OFF_MUV = OFF_ENC_WHH + G         # (128, 256)  q_mu | q_logvar fused
OFF_DEC_WIH_E = OFF_MUV + 2 * Z_DIM   # (128, 384)  decoder W_ih, embedding part
OFF_DEC_WIH_Z = OFF_DEC_WIH_E + G     # (128, 384)  decoder W_ih, z part
OFF_DEC_WHH = OFF_DEC_WIH_Z + G       # (128, 384)
OFF_FC = OFF_DEC_WHH + G              # (128, 256)  decoder_fc
OFF_EMB_T = OFF_FC + N_VOCAB          # (128, 256)  embedding table, transposed (E, V)
W_COLS = OFF_EMB_T + N_VOCAB          # 2688
B_COLS = OFF_EMB_T                    # 2432 (no bias for the embedding table)


# ----------------------------- fused Pallas kernel ---------------------------
def _rnn_vae_kernel(seq_len, mb, ids_ref, eps_ref, w_ref, b_ref, out_ref):
    R = ROWPAD
    n_rows = seq_len * R                      # padded rows per stream
    ids = ids_ref[...]                        # (3*seq*R, 1) int32: enc | dec | tgt

    # ---- fused embedding lookup: one one-hot MXU matmul for enc+dec ids ----
    emb_t = w_ref[:, OFF_EMB_T:OFF_EMB_T + N_VOCAB]              # (E, V) transposed table
    ed_ids = ids[0:2 * n_rows, :]                                 # (2*seq*R, 1)
    viota = jax.lax.broadcasted_iota(jnp.int32, (2 * n_rows, N_VOCAB), 1)
    onehot = (viota == ed_ids).astype(jnp.float32)                # (2*seq*R, V)
    # contracts the last dim of both operands (NT matmul) -> (2*seq*R, E)
    emb_x = jnp.einsum('nv,ev->ne', onehot, emb_t,
                       preferred_element_type=jnp.float32)
    enc_x = emb_x[0:n_rows, :]                                    # tile-aligned row slices
    dec_x = emb_x[n_rows:2 * n_rows, :]

    # ---- hoisted input->hidden projections (off the serial recurrence) ----
    enc_xproj = jnp.dot(enc_x, w_ref[:, OFF_ENC_WIH:OFF_ENC_WIH + G],
                        preferred_element_type=jnp.float32) \
        + b_ref[:, OFF_ENC_WIH:OFF_ENC_WIH + G]                   # (seq*R, 384)
    dec_xproj = jnp.dot(dec_x, w_ref[:, OFF_DEC_WIH_E:OFF_DEC_WIH_E + G],
                        preferred_element_type=jnp.float32) \
        + b_ref[:, OFF_DEC_WIH_E:OFF_DEC_WIH_E + G]               # (seq*R, 384)

    def gru_step(h, xw, whh, bhh, hid):
        # PyTorch GRU, gates stacked (r|z|n); xw already includes b_ih.
        hw = jnp.dot(h, whh, preferred_element_type=jnp.float32) + bhh    # (R, 3*hid)
        rz = jax.nn.sigmoid(xw[:, :2 * hid] + hw[:, :2 * hid])            # joint sigmoid
        r = rz[:, :hid]
        zg = rz[:, hid:]
        n = jnp.tanh(xw[:, 2 * hid:] + r * hw[:, 2 * hid:])
        return (1.0 - zg) * n + zg * h

    # ---- encoder GRU (unrolled; only h @ W_hh is on the serial path) ----
    enc_whh = w_ref[:, OFF_ENC_WHH:OFF_ENC_WHH + G]
    enc_bhh = b_ref[:, OFF_ENC_WHH:OFF_ENC_WHH + G]
    h = jnp.zeros((R, H_DIM), jnp.float32)
    for t in range(seq_len):
        h = gru_step(h, enc_xproj[t * R:(t + 1) * R, :], enc_whh, enc_bhh, H_DIM)

    # ---- fused q_mu / q_logvar ----
    muv = jnp.dot(h, w_ref[:, OFF_MUV:OFF_MUV + 2 * Z_DIM],
                  preferred_element_type=jnp.float32) \
        + b_ref[:, OFF_MUV:OFF_MUV + 2 * Z_DIM]                   # (R, 256)
    mu = muv[:, :Z_DIM]
    lv = muv[:, Z_DIM:]

    row8 = jax.lax.broadcasted_iota(jnp.int32, (R, 1), 0)
    valid8 = row8 < mb                                            # mask padded batch rows

    # ---- KL: mean_b( 0.5 * sum_z(exp(lv) + mu^2 - 1 - lv) ) ----
    kl_per = 0.5 * jnp.sum(jnp.exp(lv) + mu * mu - 1.0 - lv, axis=1, keepdims=True)
    kl = jnp.sum(jnp.where(valid8, kl_per, 0.0), axis=0, keepdims=True) / float(mb)

    # ---- sample_z: z = mu + exp(lv/2)*eps, global Frobenius normalization ----
    z = mu + jnp.exp(lv * 0.5) * eps_ref[...]                     # eps shared over batch
    zsq = jnp.where(valid8, z * z, 0.0)
    z = z * jax.lax.rsqrt(jnp.sum(zsq, keepdims=True))            # z / ||z||_F (as in module)

    # ---- decoder GRU: input = [emb ; z] (z part hoisted), h0 = z ----
    zproj = jnp.dot(z, w_ref[:, OFF_DEC_WIH_Z:OFF_DEC_WIH_Z + G],
                    preferred_element_type=jnp.float32)           # (R, 384) time-invariant
    dec_whh = w_ref[:, OFF_DEC_WHH:OFF_DEC_WHH + G]
    dec_bhh = b_ref[:, OFF_DEC_WHH:OFF_DEC_WHH + G]
    hd = z
    hs = []
    for t in range(seq_len):
        xw = dec_xproj[t * R:(t + 1) * R, :] + zproj
        hd = gru_step(hd, xw, dec_whh, dec_bhh, Z_DIM)
        hs.append(hd)
    h_all = jnp.concatenate(hs, axis=0)                           # (seq*R, Z), whole-tile blocks

    # ---- decoder_fc + mean cross-entropy (lane-dense 256-wide logits) ----
    logits = jnp.dot(h_all, w_ref[:, OFF_FC:OFF_FC + N_VOCAB],
                     preferred_element_type=jnp.float32) \
        + b_ref[:, OFF_FC:OFF_FC + N_VOCAB]                       # (seq*R, V)
    m = jnp.max(logits, axis=-1, keepdims=True)
    lse = jnp.log(jnp.sum(jnp.exp(logits - m), axis=-1, keepdims=True)) + m
    tgt = ids[2 * n_rows:3 * n_rows, :]                           # (seq*R, 1)
    viota2 = jax.lax.broadcasted_iota(jnp.int32, logits.shape, 1)
    picked = jnp.sum(jnp.where(viota2 == tgt, logits, 0.0), axis=-1, keepdims=True)
    rowN = jax.lax.broadcasted_iota(jnp.int32, (n_rows, 1), 0)
    validN = (rowN & (R - 1)) < mb
    losses = jnp.where(validN, lse - picked, 0.0)
    recon = jnp.sum(losses, axis=0, keepdims=True) / float(seq_len * mb)

    # ---- single packed, lane-dense output: lane 0 = recon, lane 1 = kl ----
    lane = jax.lax.broadcasted_iota(jnp.int32, (1, 128), 1)
    out_ref[...] = jnp.where(lane == 0, recon, 0.0) + jnp.where(lane == 1, kl, 0.0)


# ----------------------------- parameters ------------------------------------
def init_params(key):
    ks = jax.random.split(key, 16)

    def unif(k, shape, bound):
        return jax.random.uniform(k, shape, jnp.float32, -bound, bound)

    # nn.Embedding(n_vocab, emb_dim, padding_idx=PAD_IDX): N(0,1), pad row zero.
    emb = jax.random.normal(ks[0], (N_VOCAB, EMB_DIM), jnp.float32)
    emb = emb.at[PAD_IDX].set(0.0)

    kh = 1.0 / (H_DIM ** 0.5)
    kz = 1.0 / (Z_DIM ** 0.5)

    # encoder nn.GRU(emb_dim, h_dim): gates stacked (r|z|n) along output dim
    enc_wih = unif(ks[1], (EMB_DIM, G), kh)
    enc_whh = unif(ks[2], (H_DIM, G), kh)
    enc_bih = unif(ks[3], (1, G), kh)
    enc_bhh = unif(ks[4], (1, G), kh)
    # q_mu / q_logvar: nn.Linear(h_dim, z_dim)
    wmu = unif(ks[5], (H_DIM, Z_DIM), kh)
    bmu = unif(ks[6], (1, Z_DIM), kh)
    wlv = unif(ks[7], (H_DIM, Z_DIM), kh)
    blv = unif(ks[8], (1, Z_DIM), kh)
    # decoder nn.GRU(emb_dim + z_dim, z_dim); W_ih split into emb part / z part
    dec_wih_e = unif(ks[9], (EMB_DIM, G), kz)
    dec_wih_z = unif(ks[10], (Z_DIM, G), kz)
    dec_whh = unif(ks[11], (Z_DIM, G), kz)
    dec_bih = unif(ks[12], (1, G), kz)
    dec_bhh = unif(ks[13], (1, G), kz)
    # decoder_fc: nn.Linear(z_dim, n_vocab)
    w_fc = unif(ks[14], (Z_DIM, N_VOCAB), kz)
    b_fc = unif(ks[15], (1, N_VOCAB), kz)

    # pack into two slabs -> 2 parameter DMAs instead of ~17
    w_slab = jnp.concatenate(
        [enc_wih, enc_whh, jnp.concatenate([wmu, wlv], axis=1),
         dec_wih_e, dec_wih_z, dec_whh, w_fc, emb.T], axis=1)
    b_slab = jnp.concatenate(
        [enc_bih, enc_bhh, jnp.concatenate([bmu, blv], axis=1),
         dec_bih, jnp.zeros((1, G), jnp.float32), dec_bhh, b_fc], axis=1)
    assert w_slab.shape == (EMB_DIM, W_COLS)
    assert b_slab.shape == (1, B_COLS)
    return dict(w_slab=w_slab, b_slab=b_slab)


# ----------------------------- forward (glue) --------------------------------
@jax.jit
def rnn_vae_forward(params, sentence, rng):
    """sentence: (seq_len, mbsize) int32 word indices. Returns (recon_loss, kl_loss)."""
    seq_len, mb = sentence.shape

    # dec_targets = cat([sentence[1:], pad_words], dim=0)
    pad_words = jnp.full((1, mb), PAD_IDX, dtype=sentence.dtype)
    dec_targets = jnp.concatenate([sentence[1:], pad_words], axis=0)

    # RNG (reparameterization eps + word-dropout mask) stays in XLA.
    k_eps, k_drop = jax.random.split(rng)
    eps = jax.random.normal(k_eps, (1, Z_DIM), jnp.float32)       # torch.randn(z_dim), shared over batch
    drop_mask = jax.random.bernoulli(k_drop, P_WORD_DROPOUT, sentence.shape)
    dec_inputs = jnp.where(drop_mask, UNK_IDX, sentence)          # word dropout -> <unk>

    # pad each time step's batch rows to one sublane tile (ROWPAD rows)
    def pad_rows(x):
        xp = jnp.pad(x.astype(jnp.int32), ((0, 0), (0, ROWPAD - mb)),
                     constant_values=PAD_IDX)
        return xp.reshape(seq_len * ROWPAD, 1)

    ids = jnp.concatenate([pad_rows(sentence), pad_rows(dec_inputs),
                           pad_rows(dec_targets)], axis=0)        # (3*seq*ROWPAD, 1)

    kernel = functools.partial(_rnn_vae_kernel, seq_len, mb)
    out = pl.pallas_call(
        kernel,
        out_shape=jax.ShapeDtypeStruct((1, 128), jnp.float32),
    )(ids, eps, params["w_slab"], params["b_slab"])

    return out[0, 0], out[0, 1]


# ----------------------------- main -------------------------------------------
if __name__ == "__main__":
    root = jax.random.PRNGKey(0)
    k_params, k_sent, k_fwd = jax.random.split(root, 3)

    params = init_params(k_params)
    sentence = jax.random.randint(k_sent, (SEQ_LEN, MBSIZE), 0, N_VOCAB, dtype=jnp.int32)

    recon_loss, kl_loss = rnn_vae_forward(params, sentence, k_fwd)
    jax.block_until_ready((recon_loss, kl_loss))

    print("KERNEL_OK")
</pallas_src>

<mosaic_0001>
module attributes {stable_mosaic.version = 11 : i64} {
  func.func @_rnn_vae_kernel(%arg0: memref<192x1xi32, #tpu.memory_space<vmem>>, %arg1: memref<1x128xf32, #tpu.memory_space<vmem>>, %arg2: memref<128x2688xf32, #tpu.memory_space<vmem>>, %arg3: memref<1x2432xf32, #tpu.memory_space<vmem>>, %arg4: memref<1x128xf32, #tpu.memory_space<vmem>>) attributes {dimension_semantics = [], scalar_prefetch = 0 : i64, scratch_operands = 0 : i64, tpu.core_type = #tpu.core_type<tc>} {
    %c0 = arith.constant 0 : index
    %c0_0 = arith.constant 0 : index
    %0 = vector.load %arg0[%c0, %c0_0] : memref<192x1xi32, #tpu.memory_space<vmem>>, vector<192x1xi32>
    %c0_1 = arith.constant 0 : index
    %c2432 = arith.constant 2432 : index
    %1 = vector.load %arg2[%c0_1, %c2432] : memref<128x2688xf32, #tpu.memory_space<vmem>>, vector<128x256xf32>
    %2 = vector.extract_strided_slice %0 {offsets = [0, 0], sizes = [128, 1], strides = [1, 1]} : vector<192x1xi32> to vector<128x1xi32>
    %3 = tpu.iota {dimensions = array<i32: 1>} : vector<128x256xi32>
    %4 = vector.broadcast %2 : vector<128x1xi32> to vector<128x256xi32>
    %5 = arith.cmpi eq, %3, %4 : vector<128x256xi32>
    %6 = arith.extui %5 : vector<128x256xi1> to vector<128x256xi32>
    %7 = arith.sitofp %6 : vector<128x256xi32> to vector<128x256xf32>
    "tpu.trace_start"() <{level = 10 : i32, message = "nv,ev->ne"}> : () -> ()
    %cst = arith.constant dense<0.000000e+00> : vector<128x128xf32>
    %8 = tpu.matmul %7, %1, %cst {dimension_numbers = #tpu.dot_dimension_numbers<[1], [1], [0], [0], [0, 0, 1, 0], [], []>} : vector<128x256xf32>, vector<128x256xf32>, vector<128x128xf32> -> vector<128x128xf32>
    "tpu.trace_stop"() : () -> ()
    %9 = vector.extract_strided_slice %8 {offsets = [0, 0], sizes = [64, 128], strides = [1, 1]} : vector<128x128xf32> to vector<64x128xf32>
    %10 = vector.extract_strided_slice %8 {offsets = [64, 0], sizes = [64, 128], strides = [1, 1]} : vector<128x128xf32> to vector<64x128xf32>
    %c0_2 = arith.constant 0 : index
    %c0_3 = arith.constant 0 : index
    %11 = vector.load %arg2[%c0_2, %c0_3] : memref<128x2688xf32, #tpu.memory_space<vmem>>, vector<128x384xf32>
    %cst_4 = arith.constant dense<0.000000e+00> : vector<64x384xf32>
    %12 = tpu.matmul %9, %11, %cst_4 {dimension_numbers = #tpu.dot_dimension_numbers<[1], [0], [0], [1], [0, 0, 1, 1], [], []>} : vector<64x128xf32>, vector<128x384xf32>, vector<64x384xf32> -> vector<64x384xf32>
    %c0_5 = arith.constant 0 : index
    %c0_6 = arith.constant 0 : index
    %13 = vector.load %arg3[%c0_5, %c0_6] : memref<1x2432xf32, #tpu.memory_space<vmem>>, vector<1x384xf32>
    %14 = vector.broadcast %13 : vector<1x384xf32> to vector<64x384xf32>
    %15 = arith.addf %12, %14 : vector<64x384xf32>
    %c0_7 = arith.constant 0 : index
    %c1024 = arith.constant 1024 : index
    %16 = vector.load %arg2[%c0_7, %c1024] : memref<128x2688xf32, #tpu.memory_space<vmem>>, vector<128x384xf32>
    %cst_8 = arith.constant dense<0.000000e+00> : vector<64x384xf32>
    %17 = tpu.matmul %10, %16, %cst_8 {dimension_numbers = #tpu.dot_dimension_numbers<[1], [0], [0], [1], [0, 0, 1, 1], [], []>} : vector<64x128xf32>, vector<128x384xf32>, vector<64x384xf32> -> vector<64x384xf32>
    %c0_9 = arith.constant 0 : index
    %c1024_10 = arith.constant 1024 : index
    %18 = vector.load %arg3[%c0_9, %c1024_10] : memref<1x2432xf32, #tpu.memory_space<vmem>>, vector<1x384xf32>
    %19 = vector.broadcast %18 : vector<1x384xf32> to vector<64x384xf32>
    %20 = arith.addf %17, %19 : vector<64x384xf32>
    %c0_11 = arith.constant 0 : index
    %c384 = arith.constant 384 : index
    %21 = vector.load %arg2[%c0_11, %c384] : memref<128x2688xf32, #tpu.memory_space<vmem>>, vector<128x384xf32>
    %c0_12 = arith.constant 0 : index
    %c384_13 = arith.constant 384 : index
    %22 = vector.load %arg3[%c0_12, %c384_13] : memref<1x2432xf32, #tpu.memory_space<vmem>>, vector<1x384xf32>
    %cst_14 = arith.constant 0.000000e+00 : f32
    %23 = vector.broadcast %cst_14 : f32 to vector<8x128xf32>
    %24 = vector.extract_strided_slice %15 {offsets = [0, 0], sizes = [8, 384], strides = [1, 1]} : vector<64x384xf32> to vector<8x384xf32>
    %cst_15 = arith.constant dense<0.000000e+00> : vector<8x384xf32>
    %25 = tpu.matmul %23, %21, %cst_15 {dimension_numbers = #tpu.dot_dimension_numbers<[1], [0], [0], [1], [0, 0, 1, 1], [], []>} : vector<8x128xf32>, vector<128x384xf32>, vector<8x384xf32> -> vector<8x384xf32>
    %26 = vector.broadcast %22 : vector<1x384xf32> to vector<8x384xf32>
    %27 = arith.addf %25, %26 : vector<8x384xf32>
    %28 = vector.extract_strided_slice %24 {offsets = [0, 0], sizes = [8, 256], strides = [1, 1]} : vector<8x384xf32> to vector<8x256xf32>
    %29 = vector.extract_strided_slice %27 {offsets = [0, 0], sizes = [8, 256], strides = [1, 1]} : vector<8x384xf32> to vector<8x256xf32>
    %30 = arith.addf %28, %29 : vector<8x256xf32>
    %31 = arith.negf %30 : vector<8x256xf32>
    %32 = math.exp %31 : vector<8x256xf32>
    %cst_16 = arith.constant 1.000000e+00 : f32
    %33 = vector.broadcast %cst_16 : f32 to vector<8x256xf32>
    %34 = arith.addf %33, %32 : vector<8x256xf32>
    %35 = arith.divf %33, %34 : vector<8x256xf32>
    %36 = vector.extract_strided_slice %35 {offsets = [0, 0], sizes = [8, 128], strides = [1, 1]} : vector<8x256xf32> to vector<8x128xf32>
    %37 = vector.extract_strided_slice %35 {offsets = [0, 128], sizes = [8, 128], strides = [1, 1]} : vector<8x256xf32> to vector<8x128xf32>
    %38 = vector.extract_strided_slice %24 {offsets = [0, 256], sizes = [8, 128], strides = [1, 1]} : vector<8x384xf32> to vector<8x128xf32>
    %39 = vector.extract_strided_slice %27 {offsets = [0, 256], sizes = [8, 128], strides = [1, 1]} : vector<8x384xf32> to vector<8x128xf32>
    %40 = arith.mulf %36, %39 : vector<8x128xf32>
    %41 = arith.addf %38, %40 : vector<8x128xf32>
    %42 = math.tanh %41 : vector<8x128xf32>
    %cst_17 = arith.constant 1.000000e+00 : f32
    %43 = vector.broadcast %cst_17 : f32 to vector<8x128xf32>
    %44 = arith.subf %43, %37 : vector<8x128xf32>
    %45 = arith.mulf %44, %42 : vector<8x128xf32>
    %46 = arith.mulf %37, %23 : vector<8x128xf32>
    %47 = arith.addf %45, %46 : vector<8x128xf32>
    %48 = vector.extract_strided_slice %15 {offsets = [8, 0], sizes = [8, 384], strides = [1, 1]} : vector<64x384xf32> to vector<8x384xf32>
    %cst_18 = arith.constant dense<0.000000e+00> : vector<8x384xf32>
    %49 = tpu.matmul %47, %21, %cst_18 {dimension_numbers = #tpu.dot_dimension_numbers<[1], [0], [0], [1], [0, 0, 1, 1], [], []>} : vector<8x128xf32>, vector<128x384xf32>, vector<8x384xf32> -> vector<8x384xf32>
    %50 = vector.broadcast %22 : vector<1x384xf32> to vector<8x384xf32>
    %51 = arith.addf %49, %50 : vector<8x384xf32>
    %52 = vector.extract_strided_slice %48 {offsets = [0, 0], sizes = [8, 256], strides = [1, 1]} : vector<8x384xf32> to vector<8x256xf32>
    %53 = vector.extract_strided_slice %51 {offsets = [0, 0], sizes = [8, 256], strides = [1, 1]} : vector<8x384xf32> to vector<8x256xf32>
    %54 = arith.addf %52, %53 : vector<8x256xf32>
    %55 = arith.negf %54 : vector<8x256xf32>
    %56 = math.exp %55 : vector<8x256xf32>
    %cst_19 = arith.constant 1.000000e+00 : f32
    %57 = vector.broadcast %cst_19 : f32 to vector<8x256xf32>
    %58 = arith.addf %57, %56 : vector<8x256xf32>
    %59 = arith.divf %57, %58 : vector<8x256xf32>
    %60 = vector.extract_strided_slice %59 {offsets = [0, 0], sizes = [8, 128], strides = [1, 1]} : vector<8x256xf32> to vector<8x128xf32>
    %61 = vector.extract_strided_slice %59 {offsets = [0, 128], sizes = [8, 128], strides = [1, 1]} : vector<8x256xf32> to vector<8x128xf32>
    %62 = vector.extract_strided_slice %48 {offsets = [0, 256], sizes = [8, 128], strides = [1, 1]} : vector<8x384xf32> to vector<8x128xf32>
    %63 = vector.extract_strided_slice %51 {offsets = [0, 256], sizes = [8, 128], strides = [1, 1]} : vector<8x384xf32> to vector<8x128xf32>
    %64 = arith.mulf %60, %63 : vector<8x128xf32>
    %65 = arith.addf %62, %64 : vector<8x128xf32>
    %66 = math.tanh %65 : vector<8x128xf32>
    %cst_20 = arith.constant 1.000000e+00 : f32
    %67 = vector.broadcast %cst_20 : f32 to vector<8x128xf32>
    %68 = arith.subf %67, %61 : vector<8x128xf32>
    %69 = arith.mulf %68, %66 : vector<8x128xf32>
    %70 = arith.mulf %61, %47 : vector<8x128xf32>
    %71 = arith.addf %69, %70 : vector<8x128xf32>
    %72 = vector.extract_strided_slice %15 {offsets = [16, 0], sizes = [8, 384], strides = [1, 1]} : vector<64x384xf32> to vector<8x384xf32>
    %cst_21 = arith.constant dense<0.000000e+00> : vector<8x384xf32>
    %73 = tpu.matmul %71, %21, %cst_21 {dimension_numbers = #tpu.dot_dimension_numbers<[1], [0], [0], [1], [0, 0, 1, 1], [], []>} : vector<8x128xf32>, vector<128x384xf32>, vector<8x384xf32> -> vector<8x384xf32>
    %74 = vector.broadcast %22 : vector<1x384xf32> to vector<8x384xf32>
    %75 = arith.addf %73, %74 : vector<8x384xf32>
    %76 = vector.extract_strided_slice %72 {offsets = [0, 0], sizes = [8, 256], strides = [1, 1]} : vector<8x384xf32> to vector<8x256xf32>
    %77 = vector.extract_strided_slice %75 {offsets = [0, 0], sizes = [8, 256], strides = [1, 1]} : vector<8x384xf32> to vector<8x256xf32>
    %78 = arith.addf %76, %77 : vector<8x256xf32>
    %79 = arith.negf %78 : vector<8x256xf32>
    %80 = math.exp %79 : vector<8x256xf32>
    %cst_22 = arith.constant 1.000000e+00 : f32
    %81 = vector.broadcast %cst_22 : f32 to vector<8x256xf32>
    %82 = arith.addf %81, %80 : vector<8x256xf32>
    %83 = arith.divf %81, %82 : vector<8x256xf32>
    %84 = vector.extract_strided_slice %83 {offsets = [0, 0], sizes = [8, 128], strides = [1, 1]} : vector<8x256xf32> to vector<8x128xf32>
    %85 = vector.extract_strided_slice %83 {offsets = [0, 128], sizes = [8, 128], strides = [1, 1]} : vector<8x256xf32> to vector<8x128xf32>
    %86 = vector.extract_strided_slice %72 {offsets = [0, 256], sizes = [8, 128], strides = [1, 1]} : vector<8x384xf32> to vector<8x128xf32>
    %87 = vector.extract_strided_slice %75 {offsets = [0, 256], sizes = [8, 128], strides = [1, 1]} : vector<8x384xf32> to vector<8x128xf32>
    %88 = arith.mulf %84, %87 : vector<8x128xf32>
    %89 = arith.addf %86, %88 : vector<8x128xf32>
    %90 = math.tanh %89 : vector<8x128xf32>
    %cst_23 = arith.constant 1.000000e+00 : f32
    %91 = vector.broadcast %cst_23 : f32 to vector<8x128xf32>
    %92 = arith.subf %91, %85 : vector<8x128xf32>
    %93 = arith.mulf %92, %90 : vector<8x128xf32>
    %94 = arith.mulf %85, %71 : vector<8x128xf32>
    %95 = arith.addf %93, %94 : vector<8x128xf32>
    %96 = vector.extract_strided_slice %15 {offsets = [24, 0], sizes = [8, 384], strides = [1, 1]} : vector<64x384xf32> to vector<8x384xf32>
    %cst_24 = arith.constant dense<0.000000e+00> : vector<8x384xf32>
    %97 = tpu.matmul %95, %21, %cst_24 {dimension_numbers = #tpu.dot_dimension_numbers<[1], [0], [0], [1], [0, 0, 1, 1], [], []>} : vector<8x128xf32>, vector<128x384xf32>, vector<8x384xf32> -> vector<8x384xf32>
    %98 = vector.broadcast %22 : vector<1x384xf32> to vector<8x384xf32>
    %99 = arith.addf %97, %98 : vector<8x384xf32>
    %100 = vector.extract_strided_slice %96 {offsets = [0, 0], sizes = [8, 256], strides = [1, 1]} : vector<8x384xf32> to vector<8x256xf32>
    %101 = vector.extract_strided_slice %99 {offsets = [0, 0], sizes = [8, 256], strides = [1, 1]} : vector<8x384xf32> to vector<8x256xf32>
    %102 = arith.addf %100, %101 : vector<8x256xf32>
    %103 = arith.negf %102 : vector<8x256xf32>
    %104 = math.exp %103 : vector<8x256xf32>
    %cst_25 = arith.constant 1.000000e+00 : f32
    %105 = vector.broadcast %cst_25 : f32 to vector<8x256xf32>
    %106 = arith.addf %105, %104 : vector<8x256xf32>
    %107 = arith.divf %105, %106 : vector<8x256xf32>
    %108 = vector.extract_strided_slice %107 {offsets = [0, 0], sizes = [8, 128], strides = [1, 1]} : vector<8x256xf32> to vector<8x128xf32>
    %109 = vector.extract_strided_slice %107 {offsets = [0, 128], sizes = [8, 128], strides = [1, 1]} : vector<8x256xf32> to vector<8x128xf32>
    %110 = vector.extract_strided_slice %96 {offsets = [0, 256], sizes = [8, 128], strides = [1, 1]} : vector<8x384xf32> to vector<8x128xf32>
    %111 = vector.extract_strided_slice %99 {offsets = [0, 256], sizes = [8, 128], strides = [1, 1]} : vector<8x384xf32> to vector<8x128xf32>
    %112 = arith.mulf %108, %111 : vector<8x128xf32>
    %113 = arith.addf %110, %112 : vector<8x128xf32>
    %114 = math.tanh %113 : vector<8x128xf32>
    %cst_26 = arith.constant 1.000000e+00 : f32
    %115 = vector.broadcast %cst_26 : f32 to vector<8x128xf32>
    %116 = arith.subf %115, %109 : vector<8x128xf32>
    %117 = arith.mulf %116, %114 : vector<8x128xf32>
    %118 = arith.mulf %109, %95 : vector<8x128xf32>
    %119 = arith.addf %117, %118 : vector<8x128xf32>
    %120 = vector.extract_strided_slice %15 {offsets = [32, 0], sizes = [8, 384], strides = [1, 1]} : vector<64x384xf32> to vector<8x384xf32>
    %cst_27 = arith.constant dense<0.000000e+00> : vector<8x384xf32>
    %121 = tpu.matmul %119, %21, %cst_27 {dimension_numbers = #tpu.dot_dimension_numbers<[1], [0], [0], [1], [0, 0, 1, 1], [], []>} : vector<8x128xf32>, vector<128x384xf32>, vector<8x384xf32> -> vector<8x384xf32>
    %122 = vector.broadcast %22 : vector<1x384xf32> to vector<8x384xf32>
    %123 = arith.addf %121, %122 : vector<8x384xf32>
    %124 = vector.extract_strided_slice %120 {offsets = [0, 0], sizes = [8, 256], strides = [1, 1]} : vector<8x384xf32> to vector<8x256xf32>
    %125 = vector.extract_strided_slice %123 {offsets = [0, 0], sizes = [8, 256], strides = [1, 1]} : vector<8x384xf32> to vector<8x256xf32>
    %126 = arith.addf %124, %125 : vector<8x256xf32>
    %127 = arith.negf %126 : vector<8x256xf32>
    %128 = math.exp %127 : vector<8x256xf32>
    %cst_28 = arith.constant 1.000000e+00 : f32
    %129 = vector.broadcast %cst_28 : f32 to vector<8x256xf32>
    %130 = arith.addf %129, %128 : vector<8x256xf32>
    %131 = arith.divf %129, %130 : vector<8x256xf32>
    %132 = vector.extract_strided_slice %131 {offsets = [0, 0], sizes = [8, 128], strides = [1, 1]} : vector<8x256xf32> to vector<8x128xf32>
    %133 = vector.extract_strided_slice %131 {offsets = [0, 128], sizes = [8, 128], strides = [1, 1]} : vector<8x256xf32> to vector<8x128xf32>
    %134 = vector.extract_strided_slice %120 {offsets = [0, 256], sizes = [8, 128], strides = [1, 1]} : vector<8x384xf32> to vector<8x128xf32>
    %135 = vector.extract_strided_slice %123 {offsets = [0, 256], sizes = [8, 128], strides = [1, 1]} : vector<8x384xf32> to vector<8x128xf32>
    %136 = arith.mulf %132, %135 : vector<8x128xf32>
    %137 = arith.addf %134, %136 : vector<8x128xf32>
    %138 = math.tanh %137 : vector<8x128xf32>
    %cst_29 = arith.constant 1.000000e+00 : f32
    %139 = vector.broadcast %cst_29 : f32 to vector<8x128xf32>
    %140 = arith.subf %139, %133 : vector<8x128xf32>
    %141 = arith.mulf %140, %138 : vector<8x128xf32>
    %142 = arith.mulf %133, %119 : vector<8x128xf32>
    %143 = arith.addf %141, %142 : vector<8x128xf32>
    %144 = vector.extract_strided_slice %15 {offsets = [40, 0], sizes = [8, 384], strides = [1, 1]} : vector<64x384xf32> to vector<8x384xf32>
    %cst_30 = arith.constant dense<0.000000e+00> : vector<8x384xf32>
    %145 = tpu.matmul %143, %21, %cst_30 {dimension_numbers = #tpu.dot_dimension_numbers<[1], [0], [0], [1], [0, 0, 1, 1], [], []>} : vector<8x128xf32>, vector<128x384xf32>, vector<8x384xf32> -> vector<8x384xf32>
    %146 = vector.broadcast %22 : vector<1x384xf32> to vector<8x384xf32>
    %147 = arith.addf %145, %146 : vector<8x384xf32>
    %148 = vector.extract_strided_slice %144 {offsets = [0, 0], sizes = [8, 256], strides = [1, 1]} : vector<8x384xf32> to vector<8x256xf32>
    %149 = vector.extract_strided_slice %147 {offsets = [0, 0], sizes = [8, 256], strides = [1, 1]} : vector<8x384xf32> to vector<8x256xf32>
    %150 = arith.addf %148, %149 : vector<8x256xf32>
    %151 = arith.negf %150 : vector<8x256xf32>
    %152 = math.exp %151 : vector<8x256xf32>
    %cst_31 = arith.constant 1.000000e+00 : f32
    %153 = vector.broadcast %cst_31 : f32 to vector<8x256xf32>
    %154 = arith.addf %153, %152 : vector<8x256xf32>
    %155 = arith.divf %153, %154 : vector<8x256xf32>
    %156 = vector.extract_strided_slice %155 {offsets = [0, 0], sizes = [8, 128], strides = [1, 1]} : vector<8x256xf32> to vector<8x128xf32>
    %157 = vector.extract_strided_slice %155 {offsets = [0, 128], sizes = [8, 128], strides = [1, 1]} : vector<8x256xf32> to vector<8x128xf32>
    %158 = vector.extract_strided_slice %144 {offsets = [0, 256], sizes = [8, 128], strides = [1, 1]} : vector<8x384xf32> to vector<8x128xf32>
    %159 = vector.extract_strided_slice %147 {offsets = [0, 256], sizes = [8, 128], strides = [1, 1]} : vector<8x384xf32> to vector<8x128xf32>
    %160 = arith.mulf %156, %159 : vector<8x128xf32>
    %161 = arith.addf %158, %160 : vector<8x128xf32>
    %162 = math.tanh %161 : vector<8x128xf32>
    %cst_32 = arith.constant 1.000000e+00 : f32
    %163 = vector.broadcast %cst_32 : f32 to vector<8x128xf32>
    %164 = arith.subf %163, %157 : vector<8x128xf32>
    %165 = arith.mulf %164, %162 : vector<8x128xf32>
    %166 = arith.mulf %157, %143 : vector<8x128xf32>
    %167 = arith.addf %165, %166 : vector<8x128xf32>
    %168 = vector.extract_strided_slice %15 {offsets = [48, 0], sizes = [8, 384], strides = [1, 1]} : vector<64x384xf32> to vector<8x384xf32>
    %cst_33 = arith.constant dense<0.000000e+00> : vector<8x384xf32>
    %169 = tpu.matmul %167, %21, %cst_33 {dimension_numbers = #tpu.dot_dimension_numbers<[1], [0], [0], [1], [0, 0, 1, 1], [], []>} : vector<8x128xf32>, vector<128x384xf32>, vector<8x384xf32> -> vector<8x384xf32>
    %170 = vector.broadcast %22 : vector<1x384xf32> to vector<8x384xf32>
    %171 = arith.addf %169, %170 : vector<8x384xf32>
    %172 = vector.extract_strided_slice %168 {offsets = [0, 0], sizes = [8, 256], strides = [1, 1]} : vector<8x384xf32> to vector<8x256xf32>
    %173 = vector.extract_strided_slice %171 {offsets = [0, 0], sizes = [8, 256], strides = [1, 1]} : vector<8x384xf32> to vector<8x256xf32>
    %174 = arith.addf %172, %173 : vector<8x256xf32>
    %175 = arith.negf %174 : vector<8x256xf32>
    %176 = math.exp %175 : vector<8x256xf32>
    %cst_34 = arith.constant 1.000000e+00 : f32
    %177 = vector.broadcast %cst_34 : f32 to vector<8x256xf32>
    %178 = arith.addf %177, %176 : vector<8x256xf32>
    %179 = arith.divf %177, %178 : vector<8x256xf32>
    %180 = vector.extract_strided_slice %179 {offsets = [0, 0], sizes = [8, 128], strides = [1, 1]} : vector<8x256xf32> to vector<8x128xf32>
    %181 = vector.extract_strided_slice %179 {offsets = [0, 128], sizes = [8, 128], strides = [1, 1]} : vector<8x256xf32> to vector<8x128xf32>
    %182 = vector.extract_strided_slice %168 {offsets = [0, 256], sizes = [8, 128], strides = [1, 1]} : vector<8x384xf32> to vector<8x128xf32>
    %183 = vector.extract_strided_slice %171 {offsets = [0, 256], sizes = [8, 128], strides = [1, 1]} : vector<8x384xf32> to vector<8x128xf32>
    %184 = arith.mulf %180, %183 : vector<8x128xf32>
    %185 = arith.addf %182, %184 : vector<8x128xf32>
    %186 = math.tanh %185 : vector<8x128xf32>
    %cst_35 = arith.constant 1.000000e+00 : f32
    %187 = vector.broadcast %cst_35 : f32 to vector<8x128xf32>
    %188 = arith.subf %187, %181 : vector<8x128xf32>
    %189 = arith.mulf %188, %186 : vector<8x128xf32>
    %190 = arith.mulf %181, %167 : vector<8x128xf32>
    %191 = arith.addf %189, %190 : vector<8x128xf32>
    %192 = vector.extract_strided_slice %15 {offsets = [56, 0], sizes = [8, 384], strides = [1, 1]} : vector<64x384xf32> to vector<8x384xf32>
    %cst_36 = arith.constant dense<0.000000e+00> : vector<8x384xf32>
    %193 = tpu.matmul %191, %21, %cst_36 {dimension_numbers = #tpu.dot_dimension_numbers<[1], [0], [0], [1], [0, 0, 1, 1], [], []>} : vector<8x128xf32>, vector<128x384xf32>, vector<8x384xf32> -> vector<8x384xf32>
    %194 = vector.broadcast %22 : vector<1x384xf32> to vector<8x384xf32>
    %195 = arith.addf %193, %194 : vector<8x384xf32>
    %196 = vector.extract_strided_slice %192 {offsets = [0, 0], sizes = [8, 256], strides = [1, 1]} : vector<8x384xf32> to vector<8x256xf32>
    %197 = vector.extract_strided_slice %195 {offsets = [0, 0], sizes = [8, 256], strides = [1, 1]} : vector<8x384xf32> to vector<8x256xf32>
    %198 = arith.addf %196, %197 : vector<8x256xf32>
    %199 = arith.negf %198 : vector<8x256xf32>
    %200 = math.exp %199 : vector<8x256xf32>
    %cst_37 = arith.constant 1.000000e+00 : f32
    %201 = vector.broadcast %cst_37 : f32 to vector<8x256xf32>
    %202 = arith.addf %201, %200 : vector<8x256xf32>
    %203 = arith.divf %201, %202 : vector<8x256xf32>
    %204 = vector.extract_strided_slice %203 {offsets = [0, 0], sizes = [8, 128], strides = [1, 1]} : vector<8x256xf32> to vector<8x128xf32>
    %205 = vector.extract_strided_slice %203 {offsets = [0, 128], sizes = [8, 128], strides = [1, 1]} : vector<8x256xf32> to vector<8x128xf32>
    %206 = vector.extract_strided_slice %192 {offsets = [0, 256], sizes = [8, 128], strides = [1, 1]} : vector<8x384xf32> to vector<8x128xf32>
    %207 = vector.extract_strided_slice %195 {offsets = [0, 256], sizes = [8, 128], strides = [1, 1]} : vector<8x384xf32> to vector<8x128xf32>
    %208 = arith.mulf %204, %207 : vector<8x128xf32>
    %209 = arith.addf %206, %208 : vector<8x128xf32>
    %210 = math.tanh %209 : vector<8x128xf32>
    %cst_38 = arith.constant 1.000000e+00 : f32
    %211 = vector.broadcast %cst_38 : f32 to vector<8x128xf32>
    %212 = arith.subf %211, %205 : vector<8x128xf32>
    %213 = arith.mulf %212, %210 : vector<8x128xf32>
    %214 = arith.mulf %205, %191 : vector<8x128xf32>
    %215 = arith.addf %213, %214 : vector<8x128xf32>
    %c0_39 = arith.constant 0 : index
    %c768 = arith.constant 768 : index
    %216 = vector.load %arg2[%c0_39, %c768] : memref<128x2688xf32, #tpu.memory_space<vmem>>, vector<128x256xf32>
    %cst_40 = arith.constant dense<0.000000e+00> : vector<8x256xf32>
    %217 = tpu.matmul %215, %216, %cst_40 {dimension_numbers = #tpu.dot_dimension_numbers<[1], [0], [0], [1], [0, 0, 1, 1], [], []>} : vector<8x128xf32>, vector<128x256xf32>, vector<8x256xf32> -> vector<8x256xf32>
    %c0_41 = arith.constant 0 : index
    %c768_42 = arith.constant 768 : index
    %218 = vector.load %arg3[%c0_41, %c768_42] : memref<1x2432xf32, #tpu.memory_space<vmem>>, vector<1x256xf32>
    %219 = vector.broadcast %218 : vector<1x256xf32> to vector<8x256xf32>
    %220 = arith.addf %217, %219 : vector<8x256xf32>
    %221 = vector.extract_strided_slice %220 {offsets = [0, 0], sizes = [8, 128], strides = [1, 1]} : vector<8x256xf32> to vector<8x128xf32>
    %222 = vector.extract_strided_slice %220 {offsets = [0, 128], sizes = [8, 128], strides = [1, 1]} : vector<8x256xf32> to vector<8x128xf32>
    %223 = tpu.iota {dimensions = array<i32: 0>} : vector<8x1xi32>
    %c2_i32 = arith.constant 2 : i32
    %224 = vector.broadcast %c2_i32 : i32 to vector<8x1xi32>
    %225 = arith.cmpi slt, %223, %224 : vector<8x1xi32>
    %226 = math.exp %222 : vector<8x128xf32>
    %227 = arith.mulf %221, %221 : vector<8x128xf32>
    %228 = arith.addf %226, %227 : vector<8x128xf32>
    %cst_43 = arith.constant 1.000000e+00 : f32
    %229 = vector.broadcast %cst_43 : f32 to vector<8x128xf32>
    %230 = arith.subf %228, %229 : vector<8x128xf32>
    %231 = arith.subf %230, %222 : vector<8x128xf32>
    %cst_44 = arith.constant dense<0.000000e+00> : vector<8xf32>
    %232 = vector.multi_reduction <add>, %231, %cst_44 [1] : vector<8x128xf32> to vector<8xf32>
    %233 = vector.shape_cast %232 : vector<8xf32> to vector<8x1xf32>
    %cst_45 = arith.constant 5.000000e-01 : f32
    %234 = vector.broadcast %cst_45 : f32 to vector<8x1xf32>
    %235 = arith.mulf %234, %233 : vector<8x1xf32>
    %cst_46 = arith.constant 0.000000e+00 : f32
    %236 = vector.broadcast %cst_46 : f32 to vector<8x1xf32>
    %237 = arith.select %225, %235, %236 : vector<8x1xi1>, vector<8x1xf32>
    %cst_47 = arith.constant dense<0.000000e+00> : vector<1xf32>
    %238 = vector.multi_reduction <add>, %237, %cst_47 [0] : vector<8x1xf32> to vector<1xf32>
    %239 = vector.shape_cast %238 : vector<1xf32> to vector<1x1xf32>
    %cst_48 = arith.constant 2.000000e+00 : f32
    %240 = vector.broadcast %cst_48 : f32 to vector<1x1xf32>
    %241 = arith.divf %239, %240 : vector<1x1xf32>
    %cst_49 = arith.constant 5.000000e-01 : f32
    %242 = vector.broadcast %cst_49 : f32 to vector<8x128xf32>
    %243 = arith.mulf %222, %242 : vector<8x128xf32>
    %244 = math.exp %243 : vector<8x128xf32>
    %c0_50 = arith.constant 0 : index
    %c0_51 = arith.constant 0 : index
    %245 = vector.load %arg1[%c0_50, %c0_51] : memref<1x128xf32, #tpu.memory_space<vmem>>, vector<1x128xf32>
    %246 = vector.broadcast %245 : vector<1x128xf32> to vector<8x128xf32>
    %247 = arith.mulf %244, %246 : vector<8x128xf32>
    %248 = arith.addf %221, %247 : vector<8x128xf32>
    %249 = arith.mulf %248, %248 : vector<8x128xf32>
    %cst_52 = arith.constant 0.000000e+00 : f32
    %250 = vector.shape_cast %225 : vector<8x1xi1> to vector<8x1xi1>
    %251 = vector.broadcast %250 : vector<8x1xi1> to vector<8x128xi1>
    %252 = vector.broadcast %cst_52 : f32 to vector<8x128xf32>
    %253 = arith.select %251, %249, %252 : vector<8x128xi1>, vector<8x128xf32>
    %254 = vector.shape_cast %253 : vector<8x128xf32> to vector<1x8x128xf32>
    %cst_53 = arith.constant dense<0.000000e+00> : vector<1xf32>
    %255 = vector.multi_reduction <add>, %254, %cst_53 [1, 2] : vector<1x8x128xf32> to vector<1xf32>
    %256 = vector.shape_cast %255 : vector<1xf32> to vector<1x1x1xf32>
    %257 = vector.extract %256[0, 0, 0] : f32 from vector<1x1x1xf32>
    %258 = vector.broadcast %257 : f32 to vector<1x1xf32>
    %259 = math.rsqrt %258 : vector<1x1xf32>
    %260 = vector.broadcast %259 : vector<1x1xf32> to vector<8x128xf32>
    %261 = arith.mulf %248, %260 : vector<8x128xf32>
    %c0_54 = arith.constant 0 : index
    %c1408 = arith.constant 1408 : index
    %262 = vector.load %arg2[%c0_54, %c1408] : memref<128x2688xf32, #tpu.memory_space<vmem>>, vector<128x384xf32>
    %cst_55 = arith.constant dense<0.000000e+00> : vector<8x384xf32>
    %263 = tpu.matmul %261, %262, %cst_55 {dimension_numbers = #tpu.dot_dimension_numbers<[1], [0], [0], [1], [0, 0, 1, 1], [], []>} : vector<8x128xf32>, vector<128x384xf32>, vector<8x384xf32> -> vector<8x384xf32>
    %c0_56 = arith.constant 0 : index
    %c1792 = arith.constant 1792 : index
    %264 = vector.load %arg2[%c0_56, %c1792] : memref<128x2688xf32, #tpu.memory_space<vmem>>, vector<128x384xf32>
    %c0_57 = arith.constant 0 : index
    %c1792_58 = arith.constant 1792 : index
    %265 = vector.load %arg3[%c0_57, %c1792_58] : memref<1x2432xf32, #tpu.memory_space<vmem>>, vector<1x384xf32>
    %266 = vector.extract_strided_slice %20 {offsets = [0, 0], sizes = [8, 384], strides = [1, 1]} : vector<64x384xf32> to vector<8x384xf32>
    %267 = arith.addf %266, %263 : vector<8x384xf32>
    %cst_59 = arith.constant dense<0.000000e+00> : vector<8x384xf32>
    %268 = tpu.matmul %261, %264, %cst_59 {dimension_numbers = #tpu.dot_dimension_numbers<[1], [0], [0], [1], [0, 0, 1, 1], [], []>} : vector<8x128xf32>, vector<128x384xf32>, vector<8x384xf32> -> vector<8x384xf32>
    %269 = vector.broadcast %265 : vector<1x384xf32> to vector<8x384xf32>
    %270 = arith.addf %268, %269 : vector<8x384xf32>
    %271 = vector.extract_strided_slice %267 {offsets = [0, 0], sizes = [8, 256], strides = [1, 1]} : vector<8x384xf32> to vector<8x256xf32>
    %272 = vector.extract_strided_slice %270 {offsets = [0, 0], sizes = [8, 256], strides = [1, 1]} : vector<8x384xf32> to vector<8x256xf32>
    %273 = arith.addf %271, %272 : vector<8x256xf32>
    %274 = arith.negf %273 : vector<8x256xf32>
    %275 = math.exp %274 : vector<8x256xf32>
    %cst_60 = arith.constant 1.000000e+00 : f32
    %276 = vector.broadcast %cst_60 : f32 to vector<8x256xf32>
    %277 = arith.addf %276, %275 : vector<8x256xf32>
    %278 = arith.divf %276, %277 : vector<8x256xf32>
    %279 = vector.extract_strided_slice %278 {offsets = [0, 0], sizes = [8, 128], strides = [1, 1]} : vector<8x256xf32> to vector<8x128xf32>
    %280 = vector.extract_strided_slice %278 {offsets = [0, 128], sizes = [8, 128], strides = [1, 1]} : vector<8x256xf32> to vector<8x128xf32>
    %281 = vector.extract_strided_slice %267 {offsets = [0, 256], sizes = [8, 128], strides = [1, 1]} : vector<8x384xf32> to vector<8x128xf32>
    %282 = vector.extract_strided_slice %270 {offsets = [0, 256], sizes = [8, 128], strides = [1, 1]} : vector<8x384xf32> to vector<8x128xf32>
    %283 = arith.mulf %279, %282 : vector<8x128xf32>
    %284 = arith.addf %281, %283 : vector<8x128xf32>
    %285 = math.tanh %284 : vector<8x128xf32>
    %cst_61 = arith.constant 1.000000e+00 : f32
    %286 = vector.broadcast %cst_61 : f32 to vector<8x128xf32>
    %287 = arith.subf %286, %280 : vector<8x128xf32>
    %288 = arith.mulf %287, %285 : vector<8x128xf32>
    %289 = arith.mulf %280, %261 : vector<8x128xf32>
    %290 = arith.addf %288, %289 : vector<8x128xf32>
    %291 = vector.extract_strided_slice %20 {offsets = [8, 0], sizes = [8, 384], strides = [1, 1]} : vector<64x384xf32> to vector<8x384xf32>
    %292 = arith.addf %291, %263 : vector<8x384xf32>
    %cst_62 = arith.constant dense<0.000000e+00> : vector<8x384xf32>
    %293 = tpu.matmul %290, %264, %cst_62 {dimension_numbers = #tpu.dot_dimension_numbers<[1], [0], [0], [1], [0, 0, 1, 1], [], []>} : vector<8x128xf32>, vector<128x384xf32>, vector<8x384xf32> -> vector<8x384xf32>
    %294 = vector.broadcast %265 : vector<1x384xf32> to vector<8x384xf32>
    %295 = arith.addf %293, %294 : vector<8x384xf32>
    %296 = vector.extract_strided_slice %292 {offsets = [0, 0], sizes = [8, 256], strides = [1, 1]} : vector<8x384xf32> to vector<8x256xf32>
    %297 = vector.extract_strided_slice %295 {offsets = [0, 0], sizes = [8, 256], strides = [1, 1]} : vector<8x384xf32> to vector<8x256xf32>
    %298 = arith.addf %296, %297 : vector<8x256xf32>
    %299 = arith.negf %298 : vector<8x256xf32>
    %300 = math.exp %299 : vector<8x256xf32>
    %cst_63 = arith.constant 1.000000e+00 : f32
    %301 = vector.broadcast %cst_63 : f32 to vector<8x256xf32>
    %302 = arith.addf %301, %300 : vector<8x256xf32>
    %303 = arith.divf %301, %302 : vector<8x256xf32>
    %304 = vector.extract_strided_slice %303 {offsets = [0, 0], sizes = [8, 128], strides = [1, 1]} : vector<8x256xf32> to vector<8x128xf32>
    %305 = vector.extract_strided_slice %303 {offsets = [0, 128], sizes = [8, 128], strides = [1, 1]} : vector<8x256xf32> to vector<8x128xf32>
    %306 = vector.extract_strided_slice %292 {offsets = [0, 256], sizes = [8, 128], strides = [1, 1]} : vector<8x384xf32> to vector<8x128xf32>
    %307 = vector.extract_strided_slice %295 {offsets = [0, 256], sizes = [8, 128], strides = [1, 1]} : vector<8x384xf32> to vector<8x128xf32>
    %308 = arith.mulf %304, %307 : vector<8x128xf32>
    %309 = arith.addf %306, %308 : vector<8x128xf32>
    %310 = math.tanh %309 : vector<8x128xf32>
    %cst_64 = arith.constant 1.000000e+00 : f32
    %311 = vector.broadcast %cst_64 : f32 to vector<8x128xf32>
    %312 = arith.subf %311, %305 : vector<8x128xf32>
    %313 = arith.mulf %312, %310 : vector<8x128xf32>
    %314 = arith.mulf %305, %290 : vector<8x128xf32>
    %315 = arith.addf %313, %314 : vector<8x128xf32>
    %316 = vector.extract_strided_slice %20 {offsets = [16, 0], sizes = [8, 384], strides = [1, 1]} : vector<64x384xf32> to vector<8x384xf32>
    %317 = arith.addf %316, %263 : vector<8x384xf32>
    %cst_65 = arith.constant dense<0.000000e+00> : vector<8x384xf32>
    %318 = tpu.matmul %315, %264, %cst_65 {dimension_numbers = #tpu.dot_dimension_numbers<[1], [0], [0], [1], [0, 0, 1, 1], [], []>} : vector<8x128xf32>, vector<128x384xf32>, vector<8x384xf32> -> vector<8x384xf32>
    %319 = vector.broadcast %265 : vector<1x384xf32> to vector<8x384xf32>
    %320 = arith.addf %318, %319 : vector<8x384xf32>
    %321 = vector.extract_strided_slice %317 {offsets = [0, 0], sizes = [8, 256], strides = [1, 1]} : vector<8x384xf32> to vector<8x256xf32>
    %322 = vector.extract_strided_slice %320 {offsets = [0, 0], sizes = [8, 256], strides = [1, 1]} : vector<8x384xf32> to vector<8x256xf32>
    %323 = arith.addf %321, %322 : vector<8x256xf32>
    %324 = arith.negf %323 : vector<8x256xf32>
    %325 = math.exp %324 : vector<8x256xf32>
    %cst_66 = arith.constant 1.000000e+00 : f32
    %326 = vector.broadcast %cst_66 : f32 to vector<8x256xf32>
    %327 = arith.addf %326, %325 : vector<8x256xf32>
    %328 = arith.divf %326, %327 : vector<8x256xf32>
    %329 = vector.extract_strided_slice %328 {offsets = [0, 0], sizes = [8, 128], strides = [1, 1]} : vector<8x256xf32> to vector<8x128xf32>
    %330 = vector.extract_strided_slice %328 {offsets = [0, 128], sizes = [8, 128], strides = [1, 1]} : vector<8x256xf32> to vector<8x128xf32>
    %331 = vector.extract_strided_slice %317 {offsets = [0, 256], sizes = [8, 128], strides = [1, 1]} : vector<8x384xf32> to vector<8x128xf32>
    %332 = vector.extract_strided_slice %320 {offsets = [0, 256], sizes = [8, 128], strides = [1, 1]} : vector<8x384xf32> to vector<8x128xf32>
    %333 = arith.mulf %329, %332 : vector<8x128xf32>
    %334 = arith.addf %331, %333 : vector<8x128xf32>
    %335 = math.tanh %334 : vector<8x128xf32>
    %cst_67 = arith.constant 1.000000e+00 : f32
    %336 = vector.broadcast %cst_67 : f32 to vector<8x128xf32>
    %337 = arith.subf %336, %330 : vector<8x128xf32>
    %338 = arith.mulf %337, %335 : vector<8x128xf32>
    %339 = arith.mulf %330, %315 : vector<8x128xf32>
    %340 = arith.addf %338, %339 : vector<8x128xf32>
    %341 = vector.extract_strided_slice %20 {offsets = [24, 0], sizes = [8, 384], strides = [1, 1]} : vector<64x384xf32> to vector<8x384xf32>
    %342 = arith.addf %341, %263 : vector<8x384xf32>
    %cst_68 = arith.constant dense<0.000000e+00> : vector<8x384xf32>
    %343 = tpu.matmul %340, %264, %cst_68 {dimension_numbers = #tpu.dot_dimension_numbers<[1], [0], [0], [1], [0, 0, 1, 1], [], []>} : vector<8x128xf32>, vector<128x384xf32>, vector<8x384xf32> -> vector<8x384xf32>
    %344 = vector.broadcast %265 : vector<1x384xf32> to vector<8x384xf32>
    %345 = arith.addf %343, %344 : vector<8x384xf32>
    %346 = vector.extract_strided_slice %342 {offsets = [0, 0], sizes = [8, 256], strides = [1, 1]} : vector<8x384xf32> to vector<8x256xf32>
    %347 = vector.extract_strided_slice %345 {offsets = [0, 0], sizes = [8, 256], strides = [1, 1]} : vector<8x384xf32> to vector<8x256xf32>
    %348 = arith.addf %346, %347 : vector<8x256xf32>
    %349 = arith.negf %348 : vector<8x256xf32>
    %350 = math.exp %349 : vector<8x256xf32>
    %cst_69 = arith.constant 1.000000e+00 : f32
    %351 = vector.broadcast %cst_69 : f32 to vector<8x256xf32>
    %352 = arith.addf %351, %350 : vector<8x256xf32>
    %353 = arith.divf %351, %352 : vector<8x256xf32>
    %354 = vector.extract_strided_slice %353 {offsets = [0, 0], sizes = [8, 128], strides = [1, 1]} : vector<8x256xf32> to vector<8x128xf32>
    %355 = vector.extract_strided_slice %353 {offsets = [0, 128], sizes = [8, 128], strides = [1, 1]} : vector<8x256xf32> to vector<8x128xf32>
    %356 = vector.extract_strided_slice %342 {offsets = [0, 256], sizes = [8, 128], strides = [1, 1]} : vector<8x384xf32> to vector<8x128xf32>
    %357 = vector.extract_strided_slice %345 {offsets = [0, 256], sizes = [8, 128], strides = [1, 1]} : vector<8x384xf32> to vector<8x128xf32>
    %358 = arith.mulf %354, %357 : vector<8x128xf32>
    %359 = arith.addf %356, %358 : vector<8x128xf32>
    %360 = math.tanh %359 : vector<8x128xf32>
    %cst_70 = arith.constant 1.000000e+00 : f32
    %361 = vector.broadcast %cst_70 : f32 to vector<8x128xf32>
    %362 = arith.subf %361, %355 : vector<8x128xf32>
    %363 = arith.mulf %362, %360 : vector<8x128xf32>
    %364 = arith.mulf %355, %340 : vector<8x128xf32>
    %365 = arith.addf %363, %364 : vector<8x128xf32>
    %366 = vector.extract_strided_slice %20 {offsets = [32, 0], sizes = [8, 384], strides = [1, 1]} : vector<64x384xf32> to vector<8x384xf32>
    %367 = arith.addf %366, %263 : vector<8x384xf32>
    %cst_71 = arith.constant dense<0.000000e+00> : vector<8x384xf32>
    %368 = tpu.matmul %365, %264, %cst_71 {dimension_numbers = #tpu.dot_dimension_numbers<[1], [0], [0], [1], [0, 0, 1, 1], [], []>} : vector<8x128xf32>, vector<128x384xf32>, vector<8x384xf32> -> vector<8x384xf32>
    %369 = vector.broadcast %265 : vector<1x384xf32> to vector<8x384xf32>
    %370 = arith.addf %368, %369 : vector<8x384xf32>
    %371 = vector.extract_strided_slice %367 {offsets = [0, 0], sizes = [8, 256], strides = [1, 1]} : vector<8x384xf32> to vector<8x256xf32>
    %372 = vector.extract_strided_slice %370 {offsets = [0, 0], sizes = [8, 256], strides = [1, 1]} : vector<8x384xf32> to vector<8x256xf32>
    %373 = arith.addf %371, %372 : vector<8x256xf32>
    %374 = arith.negf %373 : vector<8x256xf32>
    %375 = math.exp %374 : vector<8x256xf32>
    %cst_72 = arith.constant 1.000000e+00 : f32
    %376 = vector.broadcast %cst_72 : f32 to vector<8x256xf32>
    %377 = arith.addf %376, %375 : vector<8x256xf32>
    %378 = arith.divf %376, %377 : vector<8x256xf32>
    %379 = vector.extract_strided_slice %378 {offsets = [0, 0], sizes = [8, 128], strides = [1, 1]} : vector<8x256xf32> to vector<8x128xf32>
    %380 = vector.extract_strided_slice %378 {offsets = [0, 128], sizes = [8, 128], strides = [1, 1]} : vector<8x256xf32> to vector<8x128xf32>
    %381 = vector.extract_strided_slice %367 {offsets = [0, 256], sizes = [8, 128], strides = [1, 1]} : vector<8x384xf32> to vector<8x128xf32>
    %382 = vector.extract_strided_slice %370 {offsets = [0, 256], sizes = [8, 128], strides = [1, 1]} : vector<8x384xf32> to vector<8x128xf32>
    %383 = arith.mulf %379, %382 : vector<8x128xf32>
    %384 = arith.addf %381, %383 : vector<8x128xf32>
    %385 = math.tanh %384 : vector<8x128xf32>
    %cst_73 = arith.constant 1.000000e+00 : f32
    %386 = vector.broadcast %cst_73 : f32 to vector<8x128xf32>
    %387 = arith.subf %386, %380 : vector<8x128xf32>
    %388 = arith.mulf %387, %385 : vector<8x128xf32>
    %389 = arith.mulf %380, %365 : vector<8x128xf32>
    %390 = arith.addf %388, %389 : vector<8x128xf32>
    %391 = vector.extract_strided_slice %20 {offsets = [40, 0], sizes = [8, 384], strides = [1, 1]} : vector<64x384xf32> to vector<8x384xf32>
    %392 = arith.addf %391, %263 : vector<8x384xf32>
    %cst_74 = arith.constant dense<0.000000e+00> : vector<8x384xf32>
    %393 = tpu.matmul %390, %264, %cst_74 {dimension_numbers = #tpu.dot_dimension_numbers<[1], [0], [0], [1], [0, 0, 1, 1], [], []>} : vector<8x128xf32>, vector<128x384xf32>, vector<8x384xf32> -> vector<8x384xf32>
    %394 = vector.broadcast %265 : vector<1x384xf32> to vector<8x384xf32>
    %395 = arith.addf %393, %394 : vector<8x384xf32>
    %396 = vector.extract_strided_slice %392 {offsets = [0, 0], sizes = [8, 256], strides = [1, 1]} : vector<8x384xf32> to vector<8x256xf32>
    %397 = vector.extract_strided_slice %395 {offsets = [0, 0], sizes = [8, 256], strides = [1, 1]} : vector<8x384xf32> to vector<8x256xf32>
    %398 = arith.addf %396, %397 : vector<8x256xf32>
    %399 = arith.negf %398 : vector<8x256xf32>
    %400 = math.exp %399 : vector<8x256xf32>
    %cst_75 = arith.constant 1.000000e+00 : f32
    %401 = vector.broadcast %cst_75 : f32 to vector<8x256xf32>
    %402 = arith.addf %401, %400 : vector<8x256xf32>
    %403 = arith.divf %401, %402 : vector<8x256xf32>
    %404 = vector.extract_strided_slice %403 {offsets = [0, 0], sizes = [8, 128], strides = [1, 1]} : vector<8x256xf32> to vector<8x128xf32>
    %405 = vector.extract_strided_slice %403 {offsets = [0, 128], sizes = [8, 128], strides = [1, 1]} : vector<8x256xf32> to vector<8x128xf32>
    %406 = vector.extract_strided_slice %392 {offsets = [0, 256], sizes = [8, 128], strides = [1, 1]} : vector<8x384xf32> to vector<8x128xf32>
    %407 = vector.extract_strided_slice %395 {offsets = [0, 256], sizes = [8, 128], strides = [1, 1]} : vector<8x384xf32> to vector<8x128xf32>
    %408 = arith.mulf %404, %407 : vector<8x128xf32>
    %409 = arith.addf %406, %408 : vector<8x128xf32>
    %410 = math.tanh %409 : vector<8x128xf32>
    %cst_76 = arith.constant 1.000000e+00 : f32
    %411 = vector.broadcast %cst_76 : f32 to vector<8x128xf32>
    %412 = arith.subf %411, %405 : vector<8x128xf32>
    %413 = arith.mulf %412, %410 : vector<8x128xf32>
    %414 = arith.mulf %405, %390 : vector<8x128xf32>
    %415 = arith.addf %413, %414 : vector<8x128xf32>
    %416 = vector.extract_strided_slice %20 {offsets = [48, 0], sizes = [8, 384], strides = [1, 1]} : vector<64x384xf32> to vector<8x384xf32>
    %417 = arith.addf %416, %263 : vector<8x384xf32>
    %cst_77 = arith.constant dense<0.000000e+00> : vector<8x384xf32>
    %418 = tpu.matmul %415, %264, %cst_77 {dimension_numbers = #tpu.dot_dimension_numbers<[1], [0], [0], [1], [0, 0, 1, 1], [], []>} : vector<8x128xf32>, vector<128x384xf32>, vector<8x384xf32> -> vector<8x384xf32>
    %419 = vector.broadcast %265 : vector<1x384xf32> to vector<8x384xf32>
    %420 = arith.addf %418, %419 : vector<8x384xf32>
    %421 = vector.extract_strided_slice %417 {offsets = [0, 0], sizes = [8, 256], strides = [1, 1]} : vector<8x384xf32> to vector<8x256xf32>
    %422 = vector.extract_strided_slice %420 {offsets = [0, 0], sizes = [8, 256], strides = [1, 1]} : vector<8x384xf32> to vector<8x256xf32>
    %423 = arith.addf %421, %422 : vector<8x256xf32>
    %424 = arith.negf %423 : vector<8x256xf32>
    %425 = math.exp %424 : vector<8x256xf32>
    %cst_78 = arith.constant 1.000000e+00 : f32
    %426 = vector.broadcast %cst_78 : f32 to vector<8x256xf32>
    %427 = arith.addf %426, %425 : vector<8x256xf32>
    %428 = arith.divf %426, %427 : vector<8x256xf32>
    %429 = vector.extract_strided_slice %428 {offsets = [0, 0], sizes = [8, 128], strides = [1, 1]} : vector<8x256xf32> to vector<8x128xf32>
    %430 = vector.extract_strided_slice %428 {offsets = [0, 128], sizes = [8, 128], strides = [1, 1]} : vector<8x256xf32> to vector<8x128xf32>
    %431 = vector.extract_strided_slice %417 {offsets = [0, 256], sizes = [8, 128], strides = [1, 1]} : vector<8x384xf32> to vector<8x128xf32>
    %432 = vector.extract_strided_slice %420 {offsets = [0, 256], sizes = [8, 128], strides = [1, 1]} : vector<8x384xf32> to vector<8x128xf32>
    %433 = arith.mulf %429, %432 : vector<8x128xf32>
    %434 = arith.addf %431, %433 : vector<8x128xf32>
    %435 = math.tanh %434 : vector<8x128xf32>
    %cst_79 = arith.constant 1.000000e+00 : f32
    %436 = vector.broadcast %cst_79 : f32 to vector<8x128xf32>
    %437 = arith.subf %436, %430 : vector<8x128xf32>
    %438 = arith.mulf %437, %435 : vector<8x128xf32>
    %439 = arith.mulf %430, %415 : vector<8x128xf32>
    %440 = arith.addf %438, %439 : vector<8x128xf32>
    %441 = vector.extract_strided_slice %20 {offsets = [56, 0], sizes = [8, 384], strides = [1, 1]} : vector<64x384xf32> to vector<8x384xf32>
    %442 = arith.addf %441, %263 : vector<8x384xf32>
    %cst_80 = arith.constant dense<0.000000e+00> : vector<8x384xf32>
    %443 = tpu.matmul %440, %264, %cst_80 {dimension_numbers = #tpu.dot_dimension_numbers<[1], [0], [0], [1], [0, 0, 1, 1], [], []>} : vector<8x128xf32>, vector<128x384xf32>, vector<8x384xf32> -> vector<8x384xf32>
    %444 = vector.broadcast %265 : vector<1x384xf32> to vector<8x384xf32>
    %445 = arith.addf %443, %444 : vector<8x384xf32>
    %446 = vector.extract_strided_slice %442 {offsets = [0, 0], sizes = [8, 256], strides = [1, 1]} : vector<8x384xf32> to vector<8x256xf32>
    %447 = vector.extract_strided_slice %445 {offsets = [0, 0], sizes = [8, 256], strides = [1, 1]} : vector<8x384xf32> to vector<8x256xf32>
    %448 = arith.addf %446, %447 : vector<8x256xf32>
    %449 = arith.negf %448 : vector<8x256xf32>
    %450 = math.exp %449 : vector<8x256xf32>
    %cst_81 = arith.constant 1.000000e+00 : f32
    %451 = vector.broadcast %cst_81 : f32 to vector<8x256xf32>
    %452 = arith.addf %451, %450 : vector<8x256xf32>
    %453 = arith.divf %451, %452 : vector<8x256xf32>
    %454 = vector.extract_strided_slice %453 {offsets = [0, 0], sizes = [8, 128], strides = [1, 1]} : vector<8x256xf32> to vector<8x128xf32>
    %455 = vector.extract_strided_slice %453 {offsets = [0, 128], sizes = [8, 128], strides = [1, 1]} : vector<8x256xf32> to vector<8x128xf32>
    %456 = vector.extract_strided_slice %442 {offsets = [0, 256], sizes = [8, 128], strides = [1, 1]} : vector<8x384xf32> to vector<8x128xf32>
    %457 = vector.extract_strided_slice %445 {offsets = [0, 256], sizes = [8, 128], strides = [1, 1]} : vector<8x384xf32> to vector<8x128xf32>
    %458 = arith.mulf %454, %457 : vector<8x128xf32>
    %459 = arith.addf %456, %458 : vector<8x128xf32>
    %460 = math.tanh %459 : vector<8x128xf32>
    %cst_82 = arith.constant 1.000000e+00 : f32
    %461 = vector.broadcast %cst_82 : f32 to vector<8x128xf32>
    %462 = arith.subf %461, %455 : vector<8x128xf32>
    %463 = arith.mulf %462, %460 : vector<8x128xf32>
    %464 = arith.mulf %455, %440 : vector<8x128xf32>
    %465 = arith.addf %463, %464 : vector<8x128xf32>
    %466 = tpu.concatenate %290, %315, %340, %365, %390, %415, %440, %465 in 0 : vector<8x128xf32>, vector<8x128xf32>, vector<8x128xf32>, vector<8x128xf32>, vector<8x128xf32>, vector<8x128xf32>, vector<8x128xf32>, vector<8x128xf32> -> vector<64x128xf32>
    %c0_83 = arith.constant 0 : index
    %c2176 = arith.constant 2176 : index
    %467 = vector.load %arg2[%c0_83, %c2176] : memref<128x2688xf32, #tpu.memory_space<vmem>>, vector<128x256xf32>
    %cst_84 = arith.constant dense<0.000000e+00> : vector<64x256xf32>
    %468 = tpu.matmul %466, %467, %cst_84 {dimension_numbers = #tpu.dot_dimension_numbers<[1], [0], [0], [1], [0, 0, 1, 1], [], []>} : vector<64x128xf32>, vector<128x256xf32>, vector<64x256xf32> -> vector<64x256xf32>
    %c0_85 = arith.constant 0 : index
    %c2176_86 = arith.constant 2176 : index
    %469 = vector.load %arg3[%c0_85, %c2176_86] : memref<1x2432xf32, #tpu.memory_space<vmem>>, vector<1x256xf32>
    %470 = vector.broadcast %469 : vector<1x256xf32> to vector<64x256xf32>
    %471 = arith.addf %468, %470 : vector<64x256xf32>
    %cst_87 = arith.constant dense<0xFF800000> : vector<64xf32>
    %472 = vector.multi_reduction <maximumf>, %471, %cst_87 [1] : vector<64x256xf32> to vector<64xf32>
    %473 = vector.shape_cast %472 : vector<64xf32> to vector<64x1xf32>
    %474 = vector.broadcast %473 : vector<64x1xf32> to vector<64x256xf32>
    %475 = arith.subf %471, %474 : vector<64x256xf32>
    %476 = math.exp %475 : vector<64x256xf32>
    %cst_88 = arith.constant dense<0.000000e+00> : vector<64xf32>
    %477 = vector.multi_reduction <add>, %476, %cst_88 [1] : vector<64x256xf32> to vector<64xf32>
    %478 = vector.shape_cast %477 : vector<64xf32> to vector<64x1xf32>
    %479 = math.log %478 : vector<64x1xf32>
    %480 = arith.addf %479, %473 : vector<64x1xf32>
    %481 = vector.extract_strided_slice %0 {offsets = [128, 0], sizes = [64, 1], strides = [1, 1]} : vector<192x1xi32> to vector<64x1xi32>
    %482 = tpu.iota {dimensions = array<i32: 1>} : vector<64x256xi32>
    %483 = vector.broadcast %481 : vector<64x1xi32> to vector<64x256xi32>
    %484 = arith.cmpi eq, %482, %483 : vector<64x256xi32>
    %cst_89 = arith.constant 0.000000e+00 : f32
    %485 = vector.broadcast %cst_89 : f32 to vector<64x256xf32>
    %486 = arith.select %484, %471, %485 : vector<64x256xi1>, vector<64x256xf32>
    %cst_90 = arith.constant dense<0.000000e+00> : vector<64xf32>
    %487 = vector.multi_reduction <add>, %486, %cst_90 [1] : vector<64x256xf32> to vector<64xf32>
    %488 = vector.shape_cast %487 : vector<64xf32> to vector<64x1xf32>
    %489 = tpu.iota {dimensions = array<i32: 0>} : vector<64x1xi32>
    %c7_i32 = arith.constant 7 : i32
    %490 = vector.broadcast %c7_i32 : i32 to vector<64x1xi32>
    %491 = arith.andi %489, %490 : vector<64x1xi32>
    %c2_i32_91 = arith.constant 2 : i32
    %492 = vector.broadcast %c2_i32_91 : i32 to vector<64x1xi32>
    %493 = arith.cmpi slt, %491, %492 : vector<64x1xi32>
    %494 = arith.subf %480, %488 : vector<64x1xf32>
    %cst_92 = arith.constant 0.000000e+00 : f32
    %495 = vector.broadcast %cst_92 : f32 to vector<64x1xf32>
    %496 = arith.select %493, %494, %495 : vector<64x1xi1>, vector<64x1xf32>
    %cst_93 = arith.constant dense<0.000000e+00> : vector<1xf32>
    %497 = vector.multi_reduction <add>, %496, %cst_93 [0] : vector<64x1xf32> to vector<1xf32>
    %498 = vector.shape_cast %497 : vector<1xf32> to vector<1x1xf32>
    %cst_94 = arith.constant 1.600000e+01 : f32
    %499 = vector.broadcast %cst_94 : f32 to vector<1x1xf32>
    %500 = arith.divf %498, %499 : vector<1x1xf32>
    %501 = tpu.iota {dimensions = array<i32: 1>} : vector<1x128xi32>
    %c0_i32 = arith.constant 0 : i32
    %502 = vector.broadcast %c0_i32 : i32 to vector<1x128xi32>
    %503 = arith.cmpi eq, %501, %502 : vector<1x128xi32>
    %cst_95 = arith.constant 0.000000e+00 : f32
    %504 = vector.shape_cast %500 : vector<1x1xf32> to vector<1x1xf32>
    %505 = vector.broadcast %504 : vector<1x1xf32> to vector<1x128xf32>
    %506 = vector.broadcast %cst_95 : f32 to vector<1x128xf32>
    %507 = arith.select %503, %505, %506 : vector<1x128xi1>, vector<1x128xf32>
    %c1_i32 = arith.constant 1 : i32
    %508 = vector.broadcast %c1_i32 : i32 to vector<1x128xi32>
    %509 = arith.cmpi eq, %501, %508 : vector<1x128xi32>
    %cst_96 = arith.constant 0.000000e+00 : f32
    %510 = vector.shape_cast %241 : vector<1x1xf32> to vector<1x1xf32>
    %511 = vector.broadcast %510 : vector<1x1xf32> to vector<1x128xf32>
    %512 = vector.broadcast %cst_96 : f32 to vector<1x128xf32>
    %513 = arith.select %509, %511, %512 : vector<1x128xi1>, vector<1x128xf32>
    %514 = arith.addf %507, %513 : vector<1x128xf32>
    %c0_97 = arith.constant 0 : index
    %c0_98 = arith.constant 0 : index
    %515 = vector.load %arg4[%c0_97, %c0_98] : memref<1x128xf32, #tpu.memory_space<vmem>>, vector<1x128xf32>
    tpu.vector_store %arg4[%c0_97, %c0_98], %514 {strides = array<i32>} : memref<1x128xf32, #tpu.memory_space<vmem>>, vector<1x128xf32>,
    return
  }
}

</mosaic_0001>

<llo_original>
// kernel: rnn_vae_forward.1
$region0: #{rnn_vae_forward.1}
  #allocation0 [shape = 'u32[]', space=smem, size = 0x4, offset = 0x4, fixed_abs, tag = 'smem constant byte address 0x4 - core index']
  #allocation1 [shape = 'u32[72,128]{1,0:T(1,128)}', space=vmem, size = 0x9000, scoped, tag = 'internal scratch']
  %s0 = inlined_call_operand.vmem [shape: s32[192,1], index: 0, kind: input, shape index: {}]
  %s1 = inlined_call_operand.vmem [shape: f32[1,128], index: 1, kind: input, shape index: {}]
  %s2 = inlined_call_operand.hbm [shape: f32[128,2688], index: 2, kind: input, shape index: {}]
  %s3 = inlined_call_operand.hbm [shape: f32[1,2432], index: 3, kind: input, shape index: {}]
  %s4 = inlined_call_operand.vmem [shape: f32[1,128], index: 4, kind: output, shape index: {}]
  %s5 = sld [smem:[#allocation0]]
  $region34: #{rnn_vae_forward.1} parent=0
    _
  %s7 = ssub.s32 1, %s5
  %s8 = scalar_select 0, %s7, %s5
  $region1: #{rnn_vae_forward.1} parent=0
    #allocation2 [shape = 'u8[1376256]{0}', space=vmem, size = 0x150000, scoped, tag = 'input window, operand 2, single buffered']
    #allocation3 [shape = 's32[1]{0}', space=sflag, size = 0x4, scoped, tag = 'scoped memory for rnn_vae_forward.1']
    #allocation4 [shape = 'u8[9728]{0}', space=vmem, size = 0x2800, scoped, tag = 'input window, operand 3, single buffered']
    #allocation5 [shape = 's32[1]{0}', space=sflag, size = 0x4, scoped, tag = 'scoped memory for rnn_vae_forward.1']
    %9 = vsyncpa [#allocation3], 0
    %10 = vsyncpa [#allocation5], 0
    // Predicated region
    $region2: #{rnn_vae_forward.1} parent=1 // pred_check
      _
    $region3: #{rnn_vae_forward.1} parent=1 // pred_check_branch
      %12 = sbr.rel (0) target = $region5
    $region4: #{rnn_vae_forward.1} parent=1 // pred_region
      _
    $region5: #{rnn_vae_forward.1} parent=1 // pred_fallthru
      _
    // Predicated region
    $region6: #{rnn_vae_forward.1} parent=1 // pred_check
      _
    $region7: #{rnn_vae_forward.1} parent=1 // pred_check_branch
      %14 = sbr.rel (0) target = $region9
    $region8: #{rnn_vae_forward.1} parent=1 // pred_region
      _
    $region9: #{rnn_vae_forward.1} parent=1 // pred_fallthru
      _
    // Predicated region
    $region10: #{rnn_vae_forward.1} parent=1 // pred_check
      _
    $region11: #{rnn_vae_forward.1} parent=1 // pred_check_branch
      %16 = sbr.rel (0) target = $region13
    $region12: #{rnn_vae_forward.1} parent=1 // pred_region
      %18 = vsyncadd [#allocation3], 0
      %s19 = sshll.u32 %s2, 4
      %s20 = int_to_ptr.hbm [resolvable:$true] %s19
      %s21 = sshll.u32 [#allocation2], 4
      %s22 = int_to_ptr.vmem [resolvable:$true] %s21
      %27 = dma.hbm_to_vmem [thread:$0]  %s20, 43008, %s22, [#allocation3], 2688, 2688, 168
    $region13: #{rnn_vae_forward.1} parent=1 // pred_fallthru
      _
    // Predicated region
    $region14: #{rnn_vae_forward.1} parent=1 // pred_check
      _
    $region15: #{rnn_vae_forward.1} parent=1 // pred_check_branch
      %29 = sbr.rel (0) target = $region17
    $region16: #{rnn_vae_forward.1} parent=1 // pred_region
      %31 = vsyncadd [#allocation5], 0
      %s33 = sshll.u32 %s3, 4
      %s34 = int_to_ptr.hbm [resolvable:$true] %s33
      %s35 = sshll.u32 [#allocation4], 4
      %s36 = int_to_ptr.vmem [resolvable:$true] %s35
      %38 = dma.hbm_to_vmem [thread:$0]  %s34, 304, %s36, [#allocation5]
    $region17: #{rnn_vae_forward.1} parent=1 // pred_fallthru
      _
    // Predicated region
    $region18: #{rnn_vae_forward.1} parent=1 // pred_check
      _
    $region19: #{rnn_vae_forward.1} parent=1 // pred_check_branch
      %40 = sbr.rel (0) target = $region21
    $region20: #{rnn_vae_forward.1} parent=1 // pred_region
      %42 = dma.done [#allocation3], 43008
    $region21: #{rnn_vae_forward.1} parent=1 // pred_fallthru
      _
    // Predicated region
    $region22: #{rnn_vae_forward.1} parent=1 // pred_check
      _
    $region23: #{rnn_vae_forward.1} parent=1 // pred_check_branch
      %44 = sbr.rel (0) target = $region25
    $region24: #{rnn_vae_forward.1} parent=1 // pred_region
      %46 = dma.done [#allocation5], 304
    $region25: #{rnn_vae_forward.1} parent=1 // pred_fallthru
      _
    %v47 = vld [vmem:[%s0] sm:$0xff]
    %v48 = vld [vmem:[%s0 + $0x8] sm:$0xff]
    %v49 = vld [vmem:[%s0 + $0x10] sm:$0xff]
    %v50 = vld [vmem:[%s0 + $0x18] sm:$0xff]
    %v51 = vld [vmem:[%s0 + $0x20] sm:$0xff]
    %v52 = vld [vmem:[%s0 + $0x28] sm:$0xff]
    %v53 = vld [vmem:[%s0 + $0x30] sm:$0xff]
    %v54 = vld [vmem:[%s0 + $0x38] sm:$0xff]
    %v55 = vld [vmem:[%s0 + $0x40] sm:$0xff]
    %v56 = vld [vmem:[%s0 + $0x48] sm:$0xff]
    %v57 = vld [vmem:[%s0 + $0x50] sm:$0xff]
    %v58 = vld [vmem:[%s0 + $0x58] sm:$0xff]
    %v59 = vld [vmem:[%s0 + $0x60] sm:$0xff]
    %v60 = vld [vmem:[%s0 + $0x68] sm:$0xff]
    %v61 = vld [vmem:[%s0 + $0x70] sm:$0xff]
    %v62 = vld [vmem:[%s0 + $0x78] sm:$0xff]
    %v63 = vld [vmem:[%s0 + $0x80] sm:$0xff]
    %v64 = vld [vmem:[%s0 + $0x88] sm:$0xff]
    %v65 = vld [vmem:[%s0 + $0x90] sm:$0xff]
    %v66 = vld [vmem:[%s0 + $0x98] sm:$0xff]
    %v67 = vld [vmem:[%s0 + $0xa0] sm:$0xff]
    %v68 = vld [vmem:[%s0 + $0xa8] sm:$0xff]
    %v69 = vld [vmem:[%s0 + $0xb0] sm:$0xff]
    %v70 = vld [vmem:[%s0 + $0xb8] sm:$0xff]
    %v71 = vld [vmem:[#allocation2 + $0x98] sm:$0xff]
    %v72 = vld [vmem:[#allocation2 + $0xa0] sm:$0xff]
    %v73 = vld [vmem:[#allocation2 + $0x140] sm:$0xff]
    %v74 = vld [vmem:[#allocation2 + $0x148] sm:$0xff]
    %v75 = vld [vmem:[#allocation2 + $0x1e8] sm:$0xff]
    %v76 = vld [vmem:[#allocation2 + $0x1f0] sm:$0xff]
    %v77 = vld [vmem:[#allocation2 + $0x290] sm:$0xff]
    %v78 = vld [vmem:[#allocation2 + $0x298] sm:$0xff]
    %v79 = vld [vmem:[#allocation2 + $0x338] sm:$0xff]
    %v80 = vld [vmem:[#allocation2 + $0x340] sm:$0xff]
    %v81 = vld [vmem:[#allocation2 + $0x3e0] sm:$0xff]
    %v82 = vld [vmem:[#allocation2 + $0x3e8] sm:$0xff]
    %v83 = vld [vmem:[#allocation2 + $0x488] sm:$0xff]
    %v84 = vld [vmem:[#allocation2 + $0x490] sm:$0xff]
    %v85 = vld [vmem:[#allocation2 + $0x530] sm:$0xff]
    %v86 = vld [vmem:[#allocation2 + $0x538] sm:$0xff]
    %v87 = vld [vmem:[#allocation2 + $0x5d8] sm:$0xff]
    %v88 = vld [vmem:[#allocation2 + $0x5e0] sm:$0xff]
    %v89 = vld [vmem:[#allocation2 + $0x680] sm:$0xff]
    %v90 = vld [vmem:[#allocation2 + $0x688] sm:$0xff]
    %v91 = vld [vmem:[#allocation2 + $0x728] sm:$0xff]
    %v92 = vld [vmem:[#allocation2 + $0x730] sm:$0xff]
    %v93 = vld [vmem:[#allocation2 + $0x7d0] sm:$0xff]
    %v94 = vld [vmem:[#allocation2 + $0x7d8] sm:$0xff]
    %v95 = vld [vmem:[#allocation2 + $0x878] sm:$0xff]
    %v96 = vld [vmem:[#allocation2 + $0x880] sm:$0xff]
    %v97 = vld [vmem:[#allocation2 + $0x920] sm:$0xff]
    %v98 = vld [vmem:[#allocation2 + $0x928] sm:$0xff]
    %v99 = vld [vmem:[#allocation2 + $0x9c8] sm:$0xff]
    %v100 = vld [vmem:[#allocation2 + $0x9d0] sm:$0xff]
    %v101 = vld [vmem:[#allocation2 + $0xa70] sm:$0xff]
    %v102 = vld [vmem:[#allocation2 + $0xa78] sm:$0xff]
    %v103 = vlaneseq
    %v104 = vand.u32 %v103, 127
    %v105 = vadd.s32 %v104, 128
    %106 = vset.pattern.permute.xlu0 0
    %107 = vperm.xlu0 %106, %v47
    %v108 = vpop.permute.xlu0 %107
    %109 = vset.pattern.permute.xlu0 0
    %110 = vperm.xlu0 %109, %v48
    %v111 = vpop.permute.xlu0 %110
    %112 = vset.pattern.permute.xlu0 0
    %113 = vperm.xlu0 %112, %v49
    %v114 = vpop.permute.xlu0 %113
    %115 = vset.pattern.permute.xlu0 0
    %116 = vperm.xlu0 %115, %v50
    %v117 = vpop.permute.xlu0 %116
    %118 = vset.pattern.permute.xlu0 0
    %119 = vperm.xlu0 %118, %v51
    %v120 = vpop.permute.xlu0 %119
    %121 = vset.pattern.permute.xlu0 0
    %122 = vperm.xlu0 %121, %v52
    %v123 = vpop.permute.xlu0 %122
    %124 = vset.pattern.permute.xlu0 0
    %125 = vperm.xlu0 %124, %v53
    %v126 = vpop.permute.xlu0 %125
    %127 = vset.pattern.permute.xlu0 0
    %128 = vperm.xlu0 %127, %v54
    %v129 = vpop.permute.xlu0 %128
    %130 = vset.pattern.permute.xlu0 0
    %131 = vperm.xlu0 %130, %v55
    %v132 = vpop.permute.xlu0 %131
    %133 = vset.pattern.permute.xlu0 0
    %134 = vperm.xlu0 %133, %v56
    %v135 = vpop.permute.xlu0 %134
    %136 = vset.pattern.permute.xlu0 0
    %137 = vperm.xlu0 %136, %v57
    %v138 = vpop.permute.xlu0 %137
    %139 = vset.pattern.permute.xlu0 0
    %140 = vperm.xlu0 %139, %v58
    %v141 = vpop.permute.xlu0 %140
    %142 = vset.pattern.permute.xlu0 0
    %143 = vperm.xlu0 %142, %v59
    %v144 = vpop.permute.xlu0 %143
    %145 = vset.pattern.permute.xlu0 0
    %146 = vperm.xlu0 %145, %v60
    %v147 = vpop.permute.xlu0 %146
    %148 = vset.pattern.permute.xlu0 0
    %149 = vperm.xlu0 %148, %v61
    %v150 = vpop.permute.xlu0 %149
    %151 = vset.pattern.permute.xlu0 0
    %152 = vperm.xlu0 %151, %v62
    %v153 = vpop.permute.xlu0 %152
    %vm154 = vcmp.eq.s32.totalorder %v104, %v108
    %vm155 = vcmp.eq.s32.totalorder %v105, %v108
    %vm156 = vcmp.eq.s32.totalorder %v104, %v111
    %vm157 = vcmp.eq.s32.totalorder %v105, %v111
    %vm158 = vcmp.eq.s32.totalorder %v104, %v114
    %vm159 = vcmp.eq.s32.totalorder %v105, %v114
    %vm160 = vcmp.eq.s32.totalorder %v104, %v117
    %vm161 = vcmp.eq.s32.totalorder %v105, %v117
    %vm162 = vcmp.eq.s32.totalorder %v104, %v120
    %vm163 = vcmp.eq.s32.totalorder %v105, %v120
    %vm164 = vcmp.eq.s32.totalorder %v104, %v123
    %vm165 = vcmp.eq.s32.totalorder %v105, %v123
    %vm166 = vcmp.eq.s32.totalorder %v104, %v126
    %vm167 = vcmp.eq.s32.totalorder %v105, %v126
    %vm168 = vcmp.eq.s32.totalorder %v104, %v129
    %vm169 = vcmp.eq.s32.totalorder %v105, %v129
    %vm170 = vcmp.eq.s32.totalorder %v104, %v132
    %vm171 = vcmp.eq.s32.totalorder %v105, %v132
    %vm172 = vcmp.eq.s32.totalorder %v104, %v135
    %vm173 = vcmp.eq.s32.totalorder %v105, %v135
    %vm174 = vcmp.eq.s32.totalorder %v104, %v138
    %vm175 = vcmp.eq.s32.totalorder %v105, %v138
    %vm176 = vcmp.eq.s32.totalorder %v104, %v141
    %vm177 = vcmp.eq.s32.totalorder %v105, %v141
    %vm178 = vcmp.eq.s32.totalorder %v104, %v144
    %vm179 = vcmp.eq.s32.totalorder %v105, %v144
    %vm180 = vcmp.eq.s32.totalorder %v104, %v147
    %vm181 = vcmp.eq.s32.totalorder %v105, %v147
    %vm182 = vcmp.eq.s32.totalorder %v104, %v150
    %vm183 = vcmp.eq.s32.totalorder %v105, %v150
    %vm184 = vcmp.eq.s32.totalorder %v104, %v153
    %vm185 = vcmp.eq.s32.totalorder %v105, %v153
    %v186 = vsel %vm154, 1, 0
    %v187 = vsel %vm155, 1, 0
    %v188 = vsel %vm156, 1, 0
    %v189 = vsel %vm157, 1, 0
    %v190 = vsel %vm158, 1, 0
    %v191 = vsel %vm159, 1, 0
    %v192 = vsel %vm160, 1, 0
    %v193 = vsel %vm161, 1, 0
    %v194 = vsel %vm162, 1, 0
    %v195 = vsel %vm163, 1, 0
    %v196 = vsel %vm164, 1, 0
    %v197 = vsel %vm165, 1, 0
    %v198 = vsel %vm166, 1, 0
    %v199 = vsel %vm167, 1, 0
    %v200 = vsel %vm168, 1, 0
    %v201 = vsel %vm169, 1, 0
    %v202 = vsel %vm170, 1, 0
    %v203 = vsel %vm171, 1, 0
    %v204 = vsel %vm172, 1, 0
    %v205 = vsel %vm173, 1, 0
    %v206 = vsel %vm174, 1, 0
    %v207 = vsel %vm175, 1, 0
    %v208 = vsel %vm176, 1, 0
    %v209 = vsel %vm177, 1, 0
    %v210 = vsel %vm178, 1, 0
    %v211 = vsel %vm179, 1, 0
    %v212 = vsel %vm180, 1, 0
    %v213 = vsel %vm181, 1, 0
    %v214 = vsel %vm182, 1, 0
    %v215 = vsel %vm183, 1, 0
    %v216 = vsel %vm184, 1, 0
    %v217 = vsel %vm185, 1, 0
    %v218 = vcvt.s32.f32 %v186
    %v219 = vcvt.s32.f32 %v187
    %v220 = vcvt.s32.f32 %v188
    %v221 = vcvt.s32.f32 %v189
    %v222 = vcvt.s32.f32 %v190
    %v223 = vcvt.s32.f32 %v191
    %v224 = vcvt.s32.f32 %v192
    %v225 = vcvt.s32.f32 %v193
    %v226 = vcvt.s32.f32 %v194
    %v227 = vcvt.s32.f32 %v195
    %v228 = vcvt.s32.f32 %v196
    %v229 = vcvt.s32.f32 %v197
    %v230 = vcvt.s32.f32 %v198
    %v231 = vcvt.s32.f32 %v199
    %v232 = vcvt.s32.f32 %v200
    %v233 = vcvt.s32.f32 %v201
    %v234 = vcvt.s32.f32 %v202
    %v235 = vcvt.s32.f32 %v203
    %v236 = vcvt.s32.f32 %v204
    %v237 = vcvt.s32.f32 %v205
    %v238 = vcvt.s32.f32 %v206
    %v239 = vcvt.s32.f32 %v207
    %v240 = vcvt.s32.f32 %v208
    %v241 = vcvt.s32.f32 %v209
    %v242 = vcvt.s32.f32 %v210
    %v243 = vcvt.s32.f32 %v211
    %v244 = vcvt.s32.f32 %v212
    %v245 = vcvt.s32.f32 %v213
    %v246 = vcvt.s32.f32 %v214
    %v247 = vcvt.s32.f32 %v215
    %v248 = vcvt.s32.f32 %v216
    %v249 = vcvt.s32.f32 %v217
    %250 = vmatpush.xpose.msra.mxu0 %v101
    %251 = vmatpush.xpose.msra.mxu0 %v99
    %252 = vmatpush.xpose.msra.mxu0 %v97
    %253 = vmatpush.xpose.msra.mxu0 %v95
    %254 = vmatpush.xpose.msra.mxu0 %v93
    %255 = vmatpush.xpose.msra.mxu0 %v91
    %256 = vmatpush.xpose.msra.mxu0 %v89
    %257 = vmatpush.xpose.msra.mxu0 %v87
    %258 = vmatpush.xpose.msra.mxu0 %v85
    %259 = vmatpush.xpose.msra.mxu0 %v83
    %260 = vmatpush.xpose.msra.mxu0 %v81
    %261 = vmatpush.xpose.msra.mxu0 %v79
    %262 = vmatpush.xpose.msra.mxu0 %v77
    %263 = vmatpush.xpose.msra.mxu0 %v75
    %264 = vmatpush.xpose.msra.mxu0 %v73
    %265 = vmatpush.xpose.msra.mxu0 %v71
    %266 = vmatmul.f32.gmra.mxu0 %v218
    %v267 = vpop.f32.mrf.mxu0
    %v268 = vadd.f32 0.0, %v267
    %269 = vmatmul.f32.gmra.mxu0 %v220
    %v270 = vpop.f32.mrf.mxu0
    %v271 = vadd.f32 0.0, %v270
    %272 = vmatmul.f32.gmra.mxu0 %v222
    %v273 = vpop.f32.mrf.mxu0
    %v274 = vadd.f32 0.0, %v273
    %275 = vmatmul.f32.gmra.mxu0 %v224
    %v276 = vpop.f32.mrf.mxu0
    %v277 = vadd.f32 0.0, %v276
    %278 = vmatmul.f32.gmra.mxu0 %v226
    %v279 = vpop.f32.mrf.mxu0
    %v280 = vadd.f32 0.0, %v279
    %281 = vmatmul.f32.gmra.mxu0 %v228
    %v282 = vpop.f32.mrf.mxu0
    %v283 = vadd.f32 0.0, %v282
    %284 = vmatmul.f32.gmra.mxu0 %v230
    %v285 = vpop.f32.mrf.mxu0
    %v286 = vadd.f32 0.0, %v285
    %287 = vmatmul.f32.gmra.mxu0 %v232
    %v288 = vpop.f32.mrf.mxu0
    %v289 = vadd.f32 0.0, %v288
    %290 = vmatmul.f32.gmra.mxu0 %v234
    %v291 = vpop.f32.mrf.mxu0
    %v292 = vadd.f32 0.0, %v291
    %293 = vmatmul.f32.gmra.mxu0 %v236
    %v294 = vpop.f32.mrf.mxu0
    %v295 = vadd.f32 0.0, %v294
    %296 = vmatmul.f32.gmra.mxu0 %v238
    %v297 = vpop.f32.mrf.mxu0
    %v298 = vadd.f32 0.0, %v297
    %299 = vmatmul.f32.gmra.mxu0 %v240
    %v300 = vpop.f32.mrf.mxu0
    %v301 = vadd.f32 0.0, %v300
    %302 = vmatmul.f32.gmra.mxu0 %v242
    %v303 = vpop.f32.mrf.mxu0
    %v304 = vadd.f32 0.0, %v303
    %305 = vmatmul.f32.gmra.mxu0 %v244
    %v306 = vpop.f32.mrf.mxu0
    %v307 = vadd.f32 0.0, %v306
    %308 = vmatmul.f32.gmra.mxu0 %v246
    %v309 = vpop.f32.mrf.mxu0
    %v310 = vadd.f32 0.0, %v309
    %311 = vmatmul.f32.gmra.mxu0 %v248
    %v312 = vpop.f32.mrf.mxu0
    %v313 = vadd.f32 0.0, %v312
    %314 = vdwg.mxu0
    %315 = vmatpush.xpose.msra.mxu0 %v102
    %316 = vmatpush.xpose.msra.mxu0 %v100
    %317 = vmatpush.xpose.msra.mxu0 %v98
    %318 = vmatpush.xpose.msra.mxu0 %v96
    %319 = vmatpush.xpose.msra.mxu0 %v94
    %320 = vmatpush.xpose.msra.mxu0 %v92
    %321 = vmatpush.xpose.msra.mxu0 %v90
    %322 = vmatpush.xpose.msra.mxu0 %v88
    %323 = vmatpush.xpose.msra.mxu0 %v86
    %324 = vmatpush.xpose.msra.mxu0 %v84
    %325 = vmatpush.xpose.msra.mxu0 %v82
    %326 = vmatpush.xpose.msra.mxu0 %v80
    %327 = vmatpush.xpose.msra.mxu0 %v78
    %328 = vmatpush.xpose.msra.mxu0 %v76
    %329 = vmatpush.xpose.msra.mxu0 %v74
    %330 = vmatpush.xpose.msra.mxu0 %v72
    %331 = vmatmul.f32.gmra.mxu0 %v219
    %v332 = vpop.f32.mrf.mxu0
    %v333 = vadd.f32 %v268, %v332
    %334 = vmatmul.f32.gmra.mxu0 %v221
    %v335 = vpop.f32.mrf.mxu0
    %v336 = vadd.f32 %v271, %v335
    %337 = vmatmul.f32.gmra.mxu0 %v223
    %v338 = vpop.f32.mrf.mxu0
    %v339 = vadd.f32 %v274, %v338
    %340 = vmatmul.f32.gmra.mxu0 %v225
    %v341 = vpop.f32.mrf.mxu0
    %v342 = vadd.f32 %v277, %v341
    %343 = vmatmul.f32.gmra.mxu0 %v227
    %v344 = vpop.f32.mrf.mxu0
    %v345 = vadd.f32 %v280, %v344
    %346 = vmatmul.f32.gmra.mxu0 %v229
    %v347 = vpop.f32.mrf.mxu0
    %v348 = vadd.f32 %v283, %v347
    %349 = vmatmul.f32.gmra.mxu0 %v231
    %v350 = vpop.f32.mrf.mxu0
    %v351 = vadd.f32 %v286, %v350
    %352 = vmatmul.f32.gmra.mxu0 %v233
    %v353 = vpop.f32.mrf.mxu0
    %v354 = vadd.f32 %v289, %v353
    %355 = vmatmul.f32.gmra.mxu0 %v235
    %v356 = vpop.f32.mrf.mxu0
    %v357 = vadd.f32 %v292, %v356
    %358 = vmatmul.f32.gmra.mxu0 %v237
    %v359 = vpop.f32.mrf.mxu0
    %v360 = vadd.f32 %v295, %v359
    %361 = vmatmul.f32.gmra.mxu0 %v239
    %v362 = vpop.f32.mrf.mxu0
    %v363 = vadd.f32 %v298, %v362
    %364 = vmatmul.f32.gmra.mxu0 %v241
    %v365 = vpop.f32.mrf.mxu0
    %v366 = vadd.f32 %v301, %v365
    %367 = vmatmul.f32.gmra.mxu0 %v243
    %v368 = vpop.f32.mrf.mxu0
    %v369 = vadd.f32 %v304, %v368
    %370 = vmatmul.f32.gmra.mxu0 %v245
    %v371 = vpop.f32.mrf.mxu0
    %v372 = vadd.f32 %v307, %v371
    %373 = vmatmul.f32.gmra.mxu0 %v247
    %v374 = vpop.f32.mrf.mxu0
    %v375 = vadd.f32 %v310, %v374
    %376 = vmatmul.f32.gmra.mxu0 %v249
    %v377 = vpop.f32.mrf.mxu0
    %v378 = vadd.f32 %v313, %v377
    %379 = vdwg.mxu0
    %v380 = vld [vmem:[#allocation2] sm:$0xff]
    %v381 = vld [vmem:[#allocation2 + $0x8] sm:$0xff]
    %v382 = vld [vmem:[#allocation2 + $0x10] sm:$0xff]
    %v383 = vld [vmem:[#allocation2 + $0xa8] sm:$0xff]
    %v384 = vld [vmem:[#allocation2 + $0xb0] sm:$0xff]
    %v385 = vld [vmem:[#allocation2 + $0xb8] sm:$0xff]
    %v386 = vld [vmem:[#allocation2 + $0x150] sm:$0xff]
    %v387 = vld [vmem:[#allocation2 + $0x158] sm:$0xff]
    %v388 = vld [vmem:[#allocation2 + $0x160] sm:$0xff]
    %v389 = vld [vmem:[#allocation2 + $0x1f8] sm:$0xff]
    %v390 = vld [vmem:[#allocation2 + $0x200] sm:$0xff]
    %v391 = vld [vmem:[#allocation2 + $0x208] sm:$0xff]
    %v392 = vld [vmem:[#allocation2 + $0x2a0] sm:$0xff]
    %v393 = vld [vmem:[#allocation2 + $0x2a8] sm:$0xff]
    %v394 = vld [vmem:[#allocation2 + $0x2b0] sm:$0xff]
    %v395 = vld [vmem:[#allocation2 + $0x348] sm:$0xff]
    %v396 = vld [vmem:[#allocation2 + $0x350] sm:$0xff]
    %v397 = vld [vmem:[#allocation2 + $0x358] sm:$0xff]
    %v398 = vld [vmem:[#allocation2 + $0x3f0] sm:$0xff]
    %v399 = vld [vmem:[#allocation2 + $0x3f8] sm:$0xff]
    %v400 = vld [vmem:[#allocation2 + $0x400] sm:$0xff]
    %v401 = vld [vmem:[#allocation2 + $0x498] sm:$0xff]
    %v402 = vld [vmem:[#allocation2 + $0x4a0] sm:$0xff]
    %v403 = vld [vmem:[#allocation2 + $0x4a8] sm:$0xff]
    %v404 = vld [vmem:[#allocation2 + $0x540] sm:$0xff]
    %v405 = vld [vmem:[#allocation2 + $0x548] sm:$0xff]
    %v406 = vld [vmem:[#allocation2 + $0x550] sm:$0xff]
    %v407 = vld [vmem:[#allocation2 + $0x5e8] sm:$0xff]
    %v408 = vld [vmem:[#allocation2 + $0x5f0] sm:$0xff]
    %v409 = vld [vmem:[#allocation2 + $0x5f8] sm:$0xff]
    %v410 = vld [vmem:[#allocation2 + $0x690] sm:$0xff]
    %v411 = vld [vmem:[#allocation2 + $0x698] sm:$0xff]
    %v412 = vld [vmem:[#allocation2 + $0x6a0] sm:$0xff]
    %v413 = vld [vmem:[#allocation2 + $0x738] sm:$0xff]
    %v414 = vld [vmem:[#allocation2 + $0x740] sm:$0xff]
    %v415 = vld [vmem:[#allocation2 + $0x748] sm:$0xff]
    %v416 = vld [vmem:[#allocation2 + $0x7e0] sm:$0xff]
    %v417 = vld [vmem:[#allocation2 + $0x7e8] sm:$0xff]
    %v418 = vld [vmem:[#allocation2 + $0x7f0] sm:$0xff]
    %v419 = vld [vmem:[#allocation2 + $0x888] sm:$0xff]
    %v420 = vld [vmem:[#allocation2 + $0x890] sm:$0xff]
    %v421 = vld [vmem:[#allocation2 + $0x898] sm:$0xff]
    %v422 = vld [vmem:[#allocation2 + $0x930] sm:$0xff]
    %v423 = vld [vmem:[#allocation2 + $0x938] sm:$0xff]
    %v424 = vld [vmem:[#allocation2 + $0x940] sm:$0xff]
    %v425 = vld [vmem:[#allocation2 + $0x9d8] sm:$0xff]
    %v426 = vld [vmem:[#allocation2 + $0x9e0] sm:$0xff]
    %v427 = vld [vmem:[#allocation2 + $0x9e8] sm:$0xff]
    %v428 = vld [vmem:[#allocation4] sm:$0x7]
    %v430 = vperm.slane %v428, 0
    %v431 = vperm.slane %v428, 1
    %v432 = vperm.slane %v428, 2
    %436 = vmatpush.msra.mxu0 %v425
    %437 = vmatpush.msra.mxu0 %v422
    %438 = vmatpush.msra.mxu0 %v419
    %439 = vmatpush.msra.mxu0 %v416
    %440 = vmatpush.msra.mxu0 %v413
    %441 = vmatpush.msra.mxu0 %v410
    %442 = vmatpush.msra.mxu0 %v407
    %443 = vmatpush.msra.mxu0 %v404
    %444 = vmatpush.msra.mxu0 %v401
    %445 = vmatpush.msra.mxu0 %v398
    %446 = vmatpush.msra.mxu0 %v395
    %447 = vmatpush.msra.mxu0 %v392
    %448 = vmatpush.msra.mxu0 %v389
    %449 = vmatpush.msra.mxu0 %v386
    %450 = vmatpush.msra.mxu0 %v383
    %451 = vmatpush.msra.mxu0 %v380
    %452 = vmatmul.f32.gmra.mxu0 %v333
    %v453 = vpop.f32.mrf.mxu0
    %v454 = vadd.f32 %v430, %v453
    %455 = vmatmul.f32.gmra.mxu0 %v336
    %v456 = vpop.f32.mrf.mxu0
    %v457 = vadd.f32 %v430, %v456
    %458 = vmatmul.f32.gmra.mxu0 %v339
    %v459 = vpop.f32.mrf.mxu0
    %v460 = vadd.f32 %v430, %v459
    %461 = vmatmul.f32.gmra.mxu0 %v342
    %v462 = vpop.f32.mrf.mxu0
    %v463 = vadd.f32 %v430, %v462
    %464 = vmatmul.f32.gmra.mxu0 %v345
    %v465 = vpop.f32.mrf.mxu0
    %v466 = vadd.f32 %v430, %v465
    %467 = vmatmul.f32.gmra.mxu0 %v348
    %v468 = vpop.f32.mrf.mxu0
    %v469 = vadd.f32 %v430, %v468
    %470 = vmatmul.f32.gmra.mxu0 %v351
    %v471 = vpop.f32.mrf.mxu0
    %v472 = vadd.f32 %v430, %v471
    %473 = vmatmul.f32.gmra.mxu0 %v354
    %v474 = vpop.f32.mrf.mxu0
    %v475 = vadd.f32 %v430, %v474
    %476 = vdwg.mxu0
    %477 = vmatpush.msra.mxu0 %v426
    %478 = vmatpush.msra.mxu0 %v423
    %479 = vmatpush.msra.mxu0 %v420
    %480 = vmatpush.msra.mxu0 %v417
    %481 = vmatpush.msra.mxu0 %v414
    %482 = vmatpush.msra.mxu0 %v411
    %483 = vmatpush.msra.mxu0 %v408
    %484 = vmatpush.msra.mxu0 %v405
    %485 = vmatpush.msra.mxu0 %v402
    %486 = vmatpush.msra.mxu0 %v399
    %487 = vmatpush.msra.mxu0 %v396
    %488 = vmatpush.msra.mxu0 %v393
    %489 = vmatpush.msra.mxu0 %v390
    %490 = vmatpush.msra.mxu0 %v387
    %491 = vmatpush.msra.mxu0 %v384
    %492 = vmatpush.msra.mxu0 %v381
    %493 = vmatmul.f32.gmra.mxu0 %v333
    %v494 = vpop.f32.mrf.mxu0
    %v495 = vadd.f32 %v431, %v494
    %496 = vmatmul.f32.gmra.mxu0 %v336
    %v497 = vpop.f32.mrf.mxu0
    %v498 = vadd.f32 %v431, %v497
    %499 = vmatmul.f32.gmra.mxu0 %v339
    %v500 = vpop.f32.mrf.mxu0
    %v501 = vadd.f32 %v431, %v500
    %502 = vmatmul.f32.gmra.mxu0 %v342
    %v503 = vpop.f32.mrf.mxu0
    %v504 = vadd.f32 %v431, %v503
    %505 = vmatmul.f32.gmra.mxu0 %v345
    %v506 = vpop.f32.mrf.mxu0
    %v507 = vadd.f32 %v431, %v506
    %508 = vmatmul.f32.gmra.mxu0 %v348
    %v509 = vpop.f32.mrf.mxu0
    %v510 = vadd.f32 %v431, %v509
    %511 = vmatmul.f32.gmra.mxu0 %v351
    %v512 = vpop.f32.mrf.mxu0
    %v513 = vadd.f32 %v431, %v512
    %514 = vmatmul.f32.gmra.mxu0 %v354
    %v515 = vpop.f32.mrf.mxu0
    %v516 = vadd.f32 %v431, %v515
    %517 = vdwg.mxu0
    %518 = vmatpush.msra.mxu0 %v427
    %519 = vmatpush.msra.mxu0 %v424
    %520 = vmatpush.msra.mxu0 %v421
    %521 = vmatpush.msra.mxu0 %v418
    %522 = vmatpush.msra.mxu0 %v415
    %523 = vmatpush.msra.mxu0 %v412
    %524 = vmatpush.msra.mxu0 %v409
    %525 = vmatpush.msra.mxu0 %v406
    %526 = vmatpush.msra.mxu0 %v403
    %527 = vmatpush.msra.mxu0 %v400
    %528 = vmatpush.msra.mxu0 %v397
    %529 = vmatpush.msra.mxu0 %v394
    %530 = vmatpush.msra.mxu0 %v391
    %531 = vmatpush.msra.mxu0 %v388
    %532 = vmatpush.msra.mxu0 %v385
    %533 = vmatpush.msra.mxu0 %v382
    %534 = vmatmul.f32.gmra.mxu0 %v333
    %v535 = vpop.f32.mrf.mxu0
    %v536 = vadd.f32 %v432, %v535
    %537 = vmatmul.f32.gmra.mxu0 %v336
    %v538 = vpop.f32.mrf.mxu0
    %v539 = vadd.f32 %v432, %v538
    %540 = vmatmul.f32.gmra.mxu0 %v339
    %v541 = vpop.f32.mrf.mxu0
    %v542 = vadd.f32 %v432, %v541
    %543 = vmatmul.f32.gmra.mxu0 %v342
    %v544 = vpop.f32.mrf.mxu0
    %v545 = vadd.f32 %v432, %v544
    %546 = vmatmul.f32.gmra.mxu0 %v345
    %v547 = vpop.f32.mrf.mxu0
    %v548 = vadd.f32 %v432, %v547
    %549 = vmatmul.f32.gmra.mxu0 %v348
    %v550 = vpop.f32.mrf.mxu0
    %v551 = vadd.f32 %v432, %v550
    %552 = vmatmul.f32.gmra.mxu0 %v351
    %v553 = vpop.f32.mrf.mxu0
    %v554 = vadd.f32 %v432, %v553
    %555 = vmatmul.f32.gmra.mxu0 %v354
    %v556 = vpop.f32.mrf.mxu0
    %v557 = vadd.f32 %v432, %v556
    %558 = vdwg.mxu0
    %v559 = vld [vmem:[#allocation2 + $0x40] sm:$0xff]
    %v560 = vld [vmem:[#allocation2 + $0x48] sm:$0xff]
    %v561 = vld [vmem:[#allocation2 + $0x50] sm:$0xff]
    %v562 = vld [vmem:[#allocation2 + $0xe8] sm:$0xff]
    %v563 = vld [vmem:[#allocation2 + $0xf0] sm:$0xff]
    %v564 = vld [vmem:[#allocation2 + $0xf8] sm:$0xff]
    %v565 = vld [vmem:[#allocation2 + $0x190] sm:$0xff]
    %v566 = vld [vmem:[#allocation2 + $0x198] sm:$0xff]
    %v567 = vld [vmem:[#allocation2 + $0x1a0] sm:$0xff]
    %v568 = vld [vmem:[#allocation2 + $0x238] sm:$0xff]
    %v569 = vld [vmem:[#allocation2 + $0x240] sm:$0xff]
    %v570 = vld [vmem:[#allocation2 + $0x248] sm:$0xff]
    %v571 = vld [vmem:[#allocation2 + $0x2e0] sm:$0xff]
    %v572 = vld [vmem:[#allocation2 + $0x2e8] sm:$0xff]
    %v573 = vld [vmem:[#allocation2 + $0x2f0] sm:$0xff]
    %v574 = vld [vmem:[#allocation2 + $0x388] sm:$0xff]
    %v575 = vld [vmem:[#allocation2 + $0x390] sm:$0xff]
    %v576 = vld [vmem:[#allocation2 + $0x398] sm:$0xff]
    %v577 = vld [vmem:[#allocation2 + $0x430] sm:$0xff]
    %v578 = vld [vmem:[#allocation2 + $0x438] sm:$0xff]
    %v579 = vld [vmem:[#allocation2 + $0x440] sm:$0xff]
    %v580 = vld [vmem:[#allocation2 + $0x4d8] sm:$0xff]
    %v581 = vld [vmem:[#allocation2 + $0x4e0] sm:$0xff]
    %v582 = vld [vmem:[#allocation2 + $0x4e8] sm:$0xff]
    %v583 = vld [vmem:[#allocation2 + $0x580] sm:$0xff]
    %v584 = vld [vmem:[#allocation2 + $0x588] sm:$0xff]
    %v585 = vld [vmem:[#allocation2 + $0x590] sm:$0xff]
    %v586 = vld [vmem:[#allocation2 + $0x628] sm:$0xff]
    %v587 = vld [vmem:[#allocation2 + $0x630] sm:$0xff]
    %v588 = vld [vmem:[#allocation2 + $0x638] sm:$0xff]
    %v589 = vld [vmem:[#allocation2 + $0x6d0] sm:$0xff]
    %v590 = vld [vmem:[#allocation2 + $0x6d8] sm:$0xff]
    %v591 = vld [vmem:[#allocation2 + $0x6e0] sm:$0xff]
    %v592 = vld [vmem:[#allocation2 + $0x778] sm:$0xff]
    %v593 = vld [vmem:[#allocation2 + $0x780] sm:$0xff]
    %v594 = vld [vmem:[#allocation2 + $0x788] sm:$0xff]
    %v595 = vld [vmem:[#allocation2 + $0x820] sm:$0xff]
    %v596 = vld [vmem:[#allocation2 + $0x828] sm:$0xff]
    %v597 = vld [vmem:[#allocation2 + $0x830] sm:$0xff]
    %v598 = vld [vmem:[#allocation2 + $0x8c8] sm:$0xff]
    %v599 = vld [vmem:[#allocation2 + $0x8d0] sm:$0xff]
    %v600 = vld [vmem:[#allocation2 + $0x8d8] sm:$0xff]
    %v601 = vld [vmem:[#allocation2 + $0x970] sm:$0xff]
    %v602 = vld [vmem:[#allocation2 + $0x978] sm:$0xff]
    %v603 = vld [vmem:[#allocation2 + $0x980] sm:$0xff]
    %v604 = vld [vmem:[#allocation2 + $0xa18] sm:$0xff]
    %v605 = vld [vmem:[#allocation2 + $0xa20] sm:$0xff]
    %v606 = vld [vmem:[#allocation2 + $0xa28] sm:$0xff]
    %v607 = vld [vmem:[#allocation4 + $0x8] sm:$0x7]
    %v609 = vperm.slane %v607, 0
    %v610 = vperm.slane %v607, 1
    %v611 = vperm.slane %v607, 2
    %615 = vmatpush.msra.mxu0 %v604
    %616 = vmatpush.msra.mxu0 %v601
    %617 = vmatpush.msra.mxu0 %v598
    %618 = vmatpush.msra.mxu0 %v595
    %619 = vmatpush.msra.mxu0 %v592
    %620 = vmatpush.msra.mxu0 %v589
    %621 = vmatpush.msra.mxu0 %v586
    %622 = vmatpush.msra.mxu0 %v583
    %623 = vmatpush.msra.mxu0 %v580
    %624 = vmatpush.msra.mxu0 %v577
    %625 = vmatpush.msra.mxu0 %v574
    %626 = vmatpush.msra.mxu0 %v571
    %627 = vmatpush.msra.mxu0 %v568
    %628 = vmatpush.msra.mxu0 %v565
    %629 = vmatpush.msra.mxu0 %v562
    %630 = vmatpush.msra.mxu0 %v559
    %631 = vmatmul.f32.gmra.mxu0 %v357
    %v632 = vpop.f32.mrf.mxu0
    %v633 = vadd.f32 %v609, %v632
    %634 = vmatmul.f32.gmra.mxu0 %v360
    %v635 = vpop.f32.mrf.mxu0
    %v636 = vadd.f32 %v609, %v635
    %637 = vmatmul.f32.gmra.mxu0 %v363
    %v638 = vpop.f32.mrf.mxu0
    %v639 = vadd.f32 %v609, %v638
    %640 = vmatmul.f32.gmra.mxu0 %v366
    %v641 = vpop.f32.mrf.mxu0
    %v642 = vadd.f32 %v609, %v641
    %643 = vmatmul.f32.gmra.mxu0 %v369
    %v644 = vpop.f32.mrf.mxu0
    %v645 = vadd.f32 %v609, %v644
    %646 = vmatmul.f32.gmra.mxu0 %v372
    %v647 = vpop.f32.mrf.mxu0
    %v648 = vadd.f32 %v609, %v647
    %649 = vmatmul.f32.gmra.mxu0 %v375
    %v650 = vpop.f32.mrf.mxu0
    %v651 = vadd.f32 %v609, %v650
    %652 = vmatmul.f32.gmra.mxu0 %v378
    %v653 = vpop.f32.mrf.mxu0
    %v654 = vadd.f32 %v609, %v653
    %655 = vdwg.mxu0
    %656 = vmatpush.msra.mxu0 %v605
    %657 = vmatpush.msra.mxu0 %v602
    %658 = vmatpush.msra.mxu0 %v599
    %659 = vmatpush.msra.mxu0 %v596
    %660 = vmatpush.msra.mxu0 %v593
    %661 = vmatpush.msra.mxu0 %v590
    %662 = vmatpush.msra.mxu0 %v587
    %663 = vmatpush.msra.mxu0 %v584
    %664 = vmatpush.msra.mxu0 %v581
    %665 = vmatpush.msra.mxu0 %v578
    %666 = vmatpush.msra.mxu0 %v575
    %667 = vmatpush.msra.mxu0 %v572
    %668 = vmatpush.msra.mxu0 %v569
    %669 = vmatpush.msra.mxu0 %v566
    %670 = vmatpush.msra.mxu0 %v563
    %671 = vmatpush.msra.mxu0 %v560
    %672 = vmatmul.f32.gmra.mxu0 %v357
    %v673 = vpop.f32.mrf.mxu0
    %v674 = vadd.f32 %v610, %v673
    %675 = vmatmul.f32.gmra.mxu0 %v360
    %v676 = vpop.f32.mrf.mxu0
    %v677 = vadd.f32 %v610, %v676
    %678 = vmatmul.f32.gmra.mxu0 %v363
    %v679 = vpop.f32.mrf.mxu0
    %v680 = vadd.f32 %v610, %v679
    %681 = vmatmul.f32.gmra.mxu0 %v366
    %v682 = vpop.f32.mrf.mxu0
    %v683 = vadd.f32 %v610, %v682
    %684 = vmatmul.f32.gmra.mxu0 %v369
    %v685 = vpop.f32.mrf.mxu0
    %v686 = vadd.f32 %v610, %v685
    %687 = vmatmul.f32.gmra.mxu0 %v372
    %v688 = vpop.f32.mrf.mxu0
    %v689 = vadd.f32 %v610, %v688
    %690 = vmatmul.f32.gmra.mxu0 %v375
    %v691 = vpop.f32.mrf.mxu0
    %v692 = vadd.f32 %v610, %v691
    %693 = vmatmul.f32.gmra.mxu0 %v378
    %v694 = vpop.f32.mrf.mxu0
    %v695 = vadd.f32 %v610, %v694
    %696 = vdwg.mxu0
    %697 = vmatpush.msra.mxu0 %v606
    %698 = vmatpush.msra.mxu0 %v603
    %699 = vmatpush.msra.mxu0 %v600
    %700 = vmatpush.msra.mxu0 %v597
    %701 = vmatpush.msra.mxu0 %v594
    %702 = vmatpush.msra.mxu0 %v591
    %703 = vmatpush.msra.mxu0 %v588
    %704 = vmatpush.msra.mxu0 %v585
    %705 = vmatpush.msra.mxu0 %v582
    %706 = vmatpush.msra.mxu0 %v579
    %707 = vmatpush.msra.mxu0 %v576
    %708 = vmatpush.msra.mxu0 %v573
    %709 = vmatpush.msra.mxu0 %v570
    %710 = vmatpush.msra.mxu0 %v567
    %711 = vmatpush.msra.mxu0 %v564
    %712 = vmatpush.msra.mxu0 %v561
    %713 = vmatmul.f32.gmra.mxu0 %v357
    %v714 = vpop.f32.mrf.mxu0
    %v715 = vadd.f32 %v611, %v714
    %716 = vmatmul.f32.gmra.mxu0 %v360
    %v717 = vpop.f32.mrf.mxu0
    %v718 = vadd.f32 %v611, %v717
    %719 = vmatmul.f32.gmra.mxu0 %v363
    %v720 = vpop.f32.mrf.mxu0
    %v721 = vadd.f32 %v611, %v720
    %722 = vmatmul.f32.gmra.mxu0 %v366
    %v723 = vpop.f32.mrf.mxu0
    %v724 = vadd.f32 %v611, %v723
    %725 = vmatmul.f32.gmra.mxu0 %v369
    %v726 = vpop.f32.mrf.mxu0
    %v727 = vadd.f32 %v611, %v726
    %728 = vmatmul.f32.gmra.mxu0 %v372
    %v729 = vpop.f32.mrf.mxu0
    %v730 = vadd.f32 %v611, %v729
    %731 = vmatmul.f32.gmra.mxu0 %v375
    %v732 = vpop.f32.mrf.mxu0
    %v733 = vadd.f32 %v611, %v732
    %734 = vmatmul.f32.gmra.mxu0 %v378
    %v735 = vpop.f32.mrf.mxu0
    %v736 = vadd.f32 %v611, %v735
    %737 = vdwg.mxu0
    %v738 = vld [vmem:[#allocation2 + $0x18] sm:$0xff]
    %v739 = vld [vmem:[#allocation2 + $0x20] sm:$0xff]
    %v740 = vld [vmem:[#allocation2 + $0x28] sm:$0xff]
    %v741 = vld [vmem:[#allocation2 + $0xc0] sm:$0xff]
    %v742 = vld [vmem:[#allocation2 + $0xc8] sm:$0xff]
    %v743 = vld [vmem:[#allocation2 + $0xd0] sm:$0xff]
    %v744 = vld [vmem:[#allocation2 + $0x168] sm:$0xff]
    %v745 = vld [vmem:[#allocation2 + $0x170] sm:$0xff]
    %v746 = vld [vmem:[#allocation2 + $0x178] sm:$0xff]
    %v747 = vld [vmem:[#allocation2 + $0x210] sm:$0xff]
    %v748 = vld [vmem:[#allocation2 + $0x218] sm:$0xff]
    %v749 = vld [vmem:[#allocation2 + $0x220] sm:$0xff]
    %v750 = vld [vmem:[#allocation2 + $0x2b8] sm:$0xff]
    %v751 = vld [vmem:[#allocation2 + $0x2c0] sm:$0xff]
    %v752 = vld [vmem:[#allocation2 + $0x2c8] sm:$0xff]
    %v753 = vld [vmem:[#allocation2 + $0x360] sm:$0xff]
    %v754 = vld [vmem:[#allocation2 + $0x368] sm:$0xff]
    %v755 = vld [vmem:[#allocation2 + $0x370] sm:$0xff]
    %v756 = vld [vmem:[#allocation2 + $0x408] sm:$0xff]
    %v757 = vld [vmem:[#allocation2 + $0x410] sm:$0xff]
    %v758 = vld [vmem:[#allocation2 + $0x418] sm:$0xff]
    %v759 = vld [vmem:[#allocation2 + $0x4b0] sm:$0xff]
    %v760 = vld [vmem:[#allocation2 + $0x4b8] sm:$0xff]
    %v761 = vld [vmem:[#allocation2 + $0x4c0] sm:$0xff]
    %v762 = vld [vmem:[#allocation2 + $0x558] sm:$0xff]
    %v763 = vld [vmem:[#allocation2 + $0x560] sm:$0xff]
    %v764 = vld [vmem:[#allocation2 + $0x568] sm:$0xff]
    %v765 = vld [vmem:[#allocation2 + $0x600] sm:$0xff]
    %v766 = vld [vmem:[#allocation2 + $0x608] sm:$0xff]
    %v767 = vld [vmem:[#allocation2 + $0x610] sm:$0xff]
    %v768 = vld [vmem:[#allocation2 + $0x6a8] sm:$0xff]
    %v769 = vld [vmem:[#allocation2 + $0x6b0] sm:$0xff]
    %v770 = vld [vmem:[#allocation2 + $0x6b8] sm:$0xff]
    %v771 = vld [vmem:[#allocation2 + $0x750] sm:$0xff]
    %v772 = vld [vmem:[#allocation2 + $0x758] sm:$0xff]
    %v773 = vld [vmem:[#allocation2 + $0x760] sm:$0xff]
    %v774 = vld [vmem:[#allocation2 + $0x7f8] sm:$0xff]
    %v775 = vld [vmem:[#allocation2 + $0x800] sm:$0xff]
    %v776 = vld [vmem:[#allocation2 + $0x808] sm:$0xff]
    %v777 = vld [vmem:[#allocation2 + $0x8a0] sm:$0xff]
    %v778 = vld [vmem:[#allocation2 + $0x8a8] sm:$0xff]
    %v779 = vld [vmem:[#allocation2 + $0x8b0] sm:$0xff]
    %v780 = vld [vmem:[#allocation2 + $0x948] sm:$0xff]
    %v781 = vld [vmem:[#allocation2 + $0x950] sm:$0xff]
    %v782 = vld [vmem:[#allocation2 + $0x958] sm:$0xff]
    %v783 = vld [vmem:[#allocation2 + $0x9f0] sm:$0xff]
    %v784 = vld [vmem:[#allocation2 + $0x9f8] sm:$0xff]
    %v785 = vld [vmem:[#allocation2 + $0xa00] sm:$0xff]
    %v786 = vld [vmem:[#allocation4 + $0x3] sm:$0x7]
    %v788 = vperm.slane %v786, 0
    %v789 = vperm.slane %v786, 1
    %v790 = vperm.slane %v786, 2
    %794 = vmatpush.msra.mxu0 %v783
    %795 = vmatpush.msra.mxu0 %v780
    %796 = vmatpush.msra.mxu0 %v777
    %797 = vmatpush.msra.mxu0 %v774
    %798 = vmatpush.msra.mxu0 %v771
    %799 = vmatpush.msra.mxu0 %v768
    %800 = vmatpush.msra.mxu0 %v765
    %801 = vmatpush.msra.mxu0 %v762
    %802 = vmatpush.msra.mxu0 %v759
    %803 = vmatpush.msra.mxu0 %v756
    %804 = vmatpush.msra.mxu0 %v753
    %805 = vmatpush.msra.mxu0 %v750
    %806 = vmatpush.msra.mxu0 %v747
    %807 = vmatpush.msra.mxu0 %v744
    %808 = vmatpush.msra.mxu0 %v741
    %809 = vmatpush.msra.mxu0 %v738
    %810 = vmatmul.f32.gmra.mxu0 0.0
    %v811 = vpop.f32.mrf.mxu0
    %v812 = vadd.f32 %v788, %v811
    %813 = vdwg.mxu0
    %814 = vmatpush.msra.mxu0 %v784
    %815 = vmatpush.msra.mxu0 %v781
    %816 = vmatpush.msra.mxu0 %v778
    %817 = vmatpush.msra.mxu0 %v775
    %818 = vmatpush.msra.mxu0 %v772
    %819 = vmatpush.msra.mxu0 %v769
    %820 = vmatpush.msra.mxu0 %v766
    %821 = vmatpush.msra.mxu0 %v763
    %822 = vmatpush.msra.mxu0 %v760
    %823 = vmatpush.msra.mxu0 %v757
    %824 = vmatpush.msra.mxu0 %v754
    %825 = vmatpush.msra.mxu0 %v751
    %826 = vmatpush.msra.mxu0 %v748
    %827 = vmatpush.msra.mxu0 %v745
    %828 = vmatpush.msra.mxu0 %v742
    %829 = vmatpush.msra.mxu0 %v739
    %830 = vmatmul.f32.gmra.mxu0 0.0
    %v831 = vpop.f32.mrf.mxu0
    %v832 = vadd.f32 %v789, %v831
    %833 = vdwg.mxu0
    %834 = vmatpush.msra.mxu0 %v785
    %835 = vmatpush.msra.mxu0 %v782
    %836 = vmatpush.msra.mxu0 %v779
    %837 = vmatpush.msra.mxu0 %v776
    %838 = vmatpush.msra.mxu0 %v773
    %839 = vmatpush.msra.mxu0 %v770
    %840 = vmatpush.msra.mxu0 %v767
    %841 = vmatpush.msra.mxu0 %v764
    %842 = vmatpush.msra.mxu0 %v761
    %843 = vmatpush.msra.mxu0 %v758
    %844 = vmatpush.msra.mxu0 %v755
    %845 = vmatpush.msra.mxu0 %v752
    %846 = vmatpush.msra.mxu0 %v749
    %847 = vmatpush.msra.mxu0 %v746
    %848 = vmatpush.msra.mxu0 %v743
    %849 = vmatpush.msra.mxu0 %v740
    %850 = vmatmul.f32.gmra.mxu0 0.0
    %v851 = vpop.f32.mrf.mxu0
    %v852 = vadd.f32 %v790, %v851
    %853 = vdwg.mxu0
    %v854 = vadd.f32 %v454, %v812
    %v855 = vadd.f32 %v495, %v832
    %v856 = vxor.u32 %v854, 2147483648
    %v857 = vxor.u32 %v855, 2147483648
    %v858 = vmul.f32 %v856, 1.442695
    %v859 = vpow.pop %v858
    %v860 = vmul.f32 %v857, 1.442695
    %v861 = vpow.pop %v860
    %v862 = vadd.f32 %v859, 1.0
    %v863 = vadd.f32 %v861, 1.0
    %v864 = vrcp.pop %v862
    %v865 = vmul.f32 %v862, %v864
    %v866 = vsub.f32 1.0, %v865
    %v867 = vmul.f32 %v864, %v866
    %v868 = vadd.f32 %v864, %v867
    %vm869 = vweird.f32 %v862
    %vm870 = vweird.f32 %v864
    %vm871 = vmor %vm869, %vm870
    %v872 = vsel %vm871, %v864, %v868
    %v873 = vand.u32 2147483647, %v862
    %vm874 = vcmp.eq.f32.partialorder %v873, 8.507059e+37
    %v875 = vand.u32 %v862, 2147483648
    %v876 = vor.u32 1.1754944e-38, %v875
    %v877 = vsel %vm874, %v876, %v872
    %v878 = vmul.f32 1.0, %v877
    %v879 = vrcp.pop %v863
    %v880 = vmul.f32 %v863, %v879
    %v881 = vsub.f32 1.0, %v880
    %v882 = vmul.f32 %v879, %v881
    %v883 = vadd.f32 %v879, %v882
    %vm884 = vweird.f32 %v863
    %vm885 = vweird.f32 %v879
    %vm886 = vmor %vm884, %vm885
    %v887 = vsel %vm886, %v879, %v883
    %v888 = vand.u32 2147483647, %v863
    %vm889 = vcmp.eq.f32.partialorder %v888, 8.507059e+37
    %v890 = vand.u32 %v863, 2147483648
    %v891 = vor.u32 1.1754944e-38, %v890
    %v892 = vsel %vm889, %v891, %v887
    %v893 = vmul.f32 1.0, %v892
    %v894 = vmul.f32 %v878, %v852
    %v895 = vadd.f32 %v536, %v894
    %v896 = vtanh.pop %v895
    %v897 = vsub.f32 1.0, %v893
    %v898 = vmul.f32 %v897, %v896
    %v899 = vmul.f32 %v893, 0.0
    %v900 = vadd.f32 %v898, %v899
    %901 = vmatpush.msra.mxu0 %v783
    %902 = vmatpush.msra.mxu0 %v780
    %903 = vmatpush.msra.mxu0 %v777
    %904 = vmatpush.msra.mxu0 %v774
    %905 = vmatpush.msra.mxu0 %v771
    %906 = vmatpush.msra.mxu0 %v768
    %907 = vmatpush.msra.mxu0 %v765
    %908 = vmatpush.msra.mxu0 %v762
    %909 = vmatpush.msra.mxu0 %v759
    %910 = vmatpush.msra.mxu0 %v756
    %911 = vmatpush.msra.mxu0 %v753
    %912 = vmatpush.msra.mxu0 %v750
    %913 = vmatpush.msra.mxu0 %v747
    %914 = vmatpush.msra.mxu0 %v744
    %915 = vmatpush.msra.mxu0 %v741
    %916 = vmatpush.msra.mxu0 %v738
    %917 = vmatmul.f32.gmra.mxu0 %v900
    %v918 = vpop.f32.mrf.mxu0
    %v919 = vadd.f32 %v788, %v918
    %920 = vdwg.mxu0
    %921 = vmatpush.msra.mxu0 %v784
    %922 = vmatpush.msra.mxu0 %v781
    %923 = vmatpush.msra.mxu0 %v778
    %924 = vmatpush.msra.mxu0 %v775
    %925 = vmatpush.msra.mxu0 %v772
    %926 = vmatpush.msra.mxu0 %v769
    %927 = vmatpush.msra.mxu0 %v766
    %928 = vmatpush.msra.mxu0 %v763
    %929 = vmatpush.msra.mxu0 %v760
    %930 = vmatpush.msra.mxu0 %v757
    %931 = vmatpush.msra.mxu0 %v754
    %932 = vmatpush.msra.mxu0 %v751
    %933 = vmatpush.msra.mxu0 %v748
    %934 = vmatpush.msra.mxu0 %v745
    %935 = vmatpush.msra.mxu0 %v742
    %936 = vmatpush.msra.mxu0 %v739
    %937 = vmatmul.f32.gmra.mxu0 %v900
    %v938 = vpop.f32.mrf.mxu0
    %v939 = vadd.f32 %v789, %v938
    %940 = vdwg.mxu0
    %941 = vmatpush.msra.mxu0 %v785
    %942 = vmatpush.msra.mxu0 %v782
    %943 = vmatpush.msra.mxu0 %v779
    %944 = vmatpush.msra.mxu0 %v776
    %945 = vmatpush.msra.mxu0 %v773
    %946 = vmatpush.msra.mxu0 %v770
    %947 = vmatpush.msra.mxu0 %v767
    %948 = vmatpush.msra.mxu0 %v764
    %949 = vmatpush.msra.mxu0 %v761
    %950 = vmatpush.msra.mxu0 %v758
    %951 = vmatpush.msra.mxu0 %v755
    %952 = vmatpush.msra.mxu0 %v752
    %953 = vmatpush.msra.mxu0 %v749
    %954 = vmatpush.msra.mxu0 %v746
    %955 = vmatpush.msra.mxu0 %v743
    %956 = vmatpush.msra.mxu0 %v740
    %957 = vmatmul.f32.gmra.mxu0 %v900
    %v958 = vpop.f32.mrf.mxu0
    %v959 = vadd.f32 %v790, %v958
    %960 = vdwg.mxu0
    %v961 = vadd.f32 %v457, %v919
    %v962 = vadd.f32 %v498, %v939
    %v963 = vxor.u32 %v961, 2147483648
    %v964 = vxor.u32 %v962, 2147483648
    %v965 = vmul.f32 %v963, 1.442695
    %v966 = vpow.pop %v965
    %v967 = vmul.f32 %v964, 1.442695
    %v968 = vpow.pop %v967
    %v969 = vadd.f32 %v966, 1.0
    %v970 = vadd.f32 %v968, 1.0
    %v971 = vrcp.pop %v969
    %v972 = vmul.f32 %v969, %v971
    %v973 = vsub.f32 1.0, %v972
    %v974 = vmul.f32 %v971, %v973
    %v975 = vadd.f32 %v971, %v974
    %vm976 = vweird.f32 %v969
    %vm977 = vweird.f32 %v971
    %vm978 = vmor %vm976, %vm977
    %v979 = vsel %vm978, %v971, %v975
    %v980 = vand.u32 2147483647, %v969
    %vm981 = vcmp.eq.f32.partialorder %v980, 8.507059e+37
    %v982 = vand.u32 %v969, 2147483648
    %v983 = vor.u32 1.1754944e-38, %v982
    %v984 = vsel %vm981, %v983, %v979
    %v985 = vmul.f32 1.0, %v984
    %v986 = vrcp.pop %v970
    %v987 = vmul.f32 %v970, %v986
    %v988 = vsub.f32 1.0, %v987
    %v989 = vmul.f32 %v986, %v988
    %v990 = vadd.f32 %v986, %v989
    %vm991 = vweird.f32 %v970
    %vm992 = vweird.f32 %v986
    %vm993 = vmor %vm991, %vm992
    %v994 = vsel %vm993, %v986, %v990
    %v995 = vand.u32 2147483647, %v970
    %vm996 = vcmp.eq.f32.partialorder %v995, 8.507059e+37
    %v997 = vand.u32 %v970, 2147483648
    %v998 = vor.u32 1.1754944e-38, %v997
    %v999 = vsel %vm996, %v998, %v994
    %v1000 = vmul.f32 1.0, %v999
    %v1001 = vmul.f32 %v985, %v959
    %v1002 = vadd.f32 %v539, %v1001
    %v1003 = vtanh.pop %v1002
    %v1004 = vsub.f32 1.0, %v1000
    %v1005 = vmul.f32 %v1004, %v1003
    %v1006 = vmul.f32 %v1000, %v900
    %v1007 = vadd.f32 %v1005, %v1006
    %1008 = vmatpush.msra.mxu0 %v783
    %1009 = vmatpush.msra.mxu0 %v780
    %1010 = vmatpush.msra.mxu0 %v777
    %1011 = vmatpush.msra.mxu0 %v774
    %1012 = vmatpush.msra.mxu0 %v771
    %1013 = vmatpush.msra.mxu0 %v768
    %1014 = vmatpush.msra.mxu0 %v765
    %1015 = vmatpush.msra.mxu0 %v762
    %1016 = vmatpush.msra.mxu0 %v759
    %1017 = vmatpush.msra.mxu0 %v756
    %1018 = vmatpush.msra.mxu0 %v753
    %1019 = vmatpush.msra.mxu0 %v750
    %1020 = vmatpush.msra.mxu0 %v747
    %1021 = vmatpush.msra.mxu0 %v744
    %1022 = vmatpush.msra.mxu0 %v741
    %1023 = vmatpush.msra.mxu0 %v738
    %1024 = vmatmul.f32.gmra.mxu0 %v1007
    %v1025 = vpop.f32.mrf.mxu0
    %v1026 = vadd.f32 %v788, %v1025
    %1027 = vdwg.mxu0
    %1028 = vmatpush.msra.mxu0 %v784
    %1029 = vmatpush.msra.mxu0 %v781
    %1030 = vmatpush.msra.mxu0 %v778
    %1031 = vmatpush.msra.mxu0 %v775
    %1032 = vmatpush.msra.mxu0 %v772
    %1033 = vmatpush.msra.mxu0 %v769
    %1034 = vmatpush.msra.mxu0 %v766
    %1035 = vmatpush.msra.mxu0 %v763
    %1036 = vmatpush.msra.mxu0 %v760
    %1037 = vmatpush.msra.mxu0 %v757
    %1038 = vmatpush.msra.mxu0 %v754
    %1039 = vmatpush.msra.mxu0 %v751
    %1040 = vmatpush.msra.mxu0 %v748
    %1041 = vmatpush.msra.mxu0 %v745
    %1042 = vmatpush.msra.mxu0 %v742
    %1043 = vmatpush.msra.mxu0 %v739
    %1044 = vmatmul.f32.gmra.mxu0 %v1007
    %v1045 = vpop.f32.mrf.mxu0
    %v1046 = vadd.f32 %v789, %v1045
    %1047 = vdwg.mxu0
    %1048 = vmatpush.msra.mxu0 %v785
    %1049 = vmatpush.msra.mxu0 %v782
    %1050 = vmatpush.msra.mxu0 %v779
    %1051 = vmatpush.msra.mxu0 %v776
    %1052 = vmatpush.msra.mxu0 %v773
    %1053 = vmatpush.msra.mxu0 %v770
    %1054 = vmatpush.msra.mxu0 %v767
    %1055 = vmatpush.msra.mxu0 %v764
    %1056 = vmatpush.msra.mxu0 %v761
    %1057 = vmatpush.msra.mxu0 %v758
    %1058 = vmatpush.msra.mxu0 %v755
    %1059 = vmatpush.msra.mxu0 %v752
    %1060 = vmatpush.msra.mxu0 %v749
    %1061 = vmatpush.msra.mxu0 %v746
    %1062 = vmatpush.msra.mxu0 %v743
    %1063 = vmatpush.msra.mxu0 %v740
    %1064 = vmatmul.f32.gmra.mxu0 %v1007
    %v1065 = vpop.f32.mrf.mxu0
    %v1066 = vadd.f32 %v790, %v1065
    %1067 = vdwg.mxu0
    %v1068 = vadd.f32 %v460, %v1026
    %v1069 = vadd.f32 %v501, %v1046
    %v1070 = vxor.u32 %v1068, 2147483648
    %v1071 = vxor.u32 %v1069, 2147483648
    %v1072 = vmul.f32 %v1070, 1.442695
    %v1073 = vpow.pop %v1072
    %v1074 = vmul.f32 %v1071, 1.442695
    %v1075 = vpow.pop %v1074
    %v1076 = vadd.f32 %v1073, 1.0
    %v1077 = vadd.f32 %v1075, 1.0
    %v1078 = vrcp.pop %v1076
    %v1079 = vmul.f32 %v1076, %v1078
    %v1080 = vsub.f32 1.0, %v1079
    %v1081 = vmul.f32 %v1078, %v1080
    %v1082 = vadd.f32 %v1078, %v1081
    %vm1083 = vweird.f32 %v1076
    %vm1084 = vweird.f32 %v1078
    %vm1085 = vmor %vm1083, %vm1084
    %v1086 = vsel %vm1085, %v1078, %v1082
    %v1087 = vand.u32 2147483647, %v1076
    %vm1088 = vcmp.eq.f32.partialorder %v1087, 8.507059e+37
    %v1089 = vand.u32 %v1076, 2147483648
    %v1090 = vor.u32 1.1754944e-38, %v1089
    %v1091 = vsel %vm1088, %v1090, %v1086
    %v1092 = vmul.f32 1.0, %v1091
    %v1093 = vrcp.pop %v1077
    %v1094 = vmul.f32 %v1077, %v1093
    %v1095 = vsub.f32 1.0, %v1094
    %v1096 = vmul.f32 %v1093, %v1095
    %v1097 = vadd.f32 %v1093, %v1096
    %vm1098 = vweird.f32 %v1077
    %vm1099 = vweird.f32 %v1093
    %vm1100 = vmor %vm1098, %vm1099
    %v1101 = vsel %vm1100, %v1093, %v1097
    %v1102 = vand.u32 2147483647, %v1077
    %vm1103 = vcmp.eq.f32.partialorder %v1102, 8.507059e+37
    %v1104 = vand.u32 %v1077, 2147483648
    %v1105 = vor.u32 1.1754944e-38, %v1104
    %v1106 = vsel %vm1103, %v1105, %v1101
    %v1107 = vmul.f32 1.0, %v1106
    %v1108 = vmul.f32 %v1092, %v1066
    %v1109 = vadd.f32 %v542, %v1108
    %v1110 = vtanh.pop %v1109
    %v1111 = vsub.f32 1.0, %v1107
    %v1112 = vmul.f32 %v1111, %v1110
    %v1113 = vmul.f32 %v1107, %v1007
    %v1114 = vadd.f32 %v1112, %v1113
    %1115 = vmatpush.msra.mxu0 %v783
    %1116 = vmatpush.msra.mxu0 %v780
    %1117 = vmatpush.msra.mxu0 %v777
    %1118 = vmatpush.msra.mxu0 %v774
    %1119 = vmatpush.msra.mxu0 %v771
    %1120 = vmatpush.msra.mxu0 %v768
    %1121 = vmatpush.msra.mxu0 %v765
    %1122 = vmatpush.msra.mxu0 %v762
    %1123 = vmatpush.msra.mxu0 %v759
    %1124 = vmatpush.msra.mxu0 %v756
    %1125 = vmatpush.msra.mxu0 %v753
    %1126 = vmatpush.msra.mxu0 %v750
    %1127 = vmatpush.msra.mxu0 %v747
    %1128 = vmatpush.msra.mxu0 %v744
    %1129 = vmatpush.msra.mxu0 %v741
    %1130 = vmatpush.msra.mxu0 %v738
    %1131 = vmatmul.f32.gmra.mxu0 %v1114
    %v1132 = vpop.f32.mrf.mxu0
    %v1133 = vadd.f32 %v788, %v1132
    %1134 = vdwg.mxu0
    %1135 = vmatpush.msra.mxu0 %v784
    %1136 = vmatpush.msra.mxu0 %v781
    %1137 = vmatpush.msra.mxu0 %v778
    %1138 = vmatpush.msra.mxu0 %v775
    %1139 = vmatpush.msra.mxu0 %v772
    %1140 = vmatpush.msra.mxu0 %v769
    %1141 = vmatpush.msra.mxu0 %v766
    %1142 = vmatpush.msra.mxu0 %v763
    %1143 = vmatpush.msra.mxu0 %v760
    %1144 = vmatpush.msra.mxu0 %v757
    %1145 = vmatpush.msra.mxu0 %v754
    %1146 = vmatpush.msra.mxu0 %v751
    %1147 = vmatpush.msra.mxu0 %v748
    %1148 = vmatpush.msra.mxu0 %v745
    %1149 = vmatpush.msra.mxu0 %v742
    %1150 = vmatpush.msra.mxu0 %v739
    %1151 = vmatmul.f32.gmra.mxu0 %v1114
    %v1152 = vpop.f32.mrf.mxu0
    %v1153 = vadd.f32 %v789, %v1152
    %1154 = vdwg.mxu0
    %1155 = vmatpush.msra.mxu0 %v785
    %1156 = vmatpush.msra.mxu0 %v782
    %1157 = vmatpush.msra.mxu0 %v779
    %1158 = vmatpush.msra.mxu0 %v776
    %1159 = vmatpush.msra.mxu0 %v773
    %1160 = vmatpush.msra.mxu0 %v770
    %1161 = vmatpush.msra.mxu0 %v767
    %1162 = vmatpush.msra.mxu0 %v764
    %1163 = vmatpush.msra.mxu0 %v761
    %1164 = vmatpush.msra.mxu0 %v758
    %1165 = vmatpush.msra.mxu0 %v755
    %1166 = vmatpush.msra.mxu0 %v752
    %1167 = vmatpush.msra.mxu0 %v749
    %1168 = vmatpush.msra.mxu0 %v746
    %1169 = vmatpush.msra.mxu0 %v743
    %1170 = vmatpush.msra.mxu0 %v740
    %1171 = vmatmul.f32.gmra.mxu0 %v1114
    %v1172 = vpop.f32.mrf.mxu0
    %v1173 = vadd.f32 %v790, %v1172
    %1174 = vdwg.mxu0
    %v1175 = vadd.f32 %v463, %v1133
    %v1176 = vadd.f32 %v504, %v1153
    %v1177 = vxor.u32 %v1175, 2147483648
    %v1178 = vxor.u32 %v1176, 2147483648
    %v1179 = vmul.f32 %v1177, 1.442695
    %v1180 = vpow.pop %v1179
    %v1181 = vmul.f32 %v1178, 1.442695
    %v1182 = vpow.pop %v1181
    %v1183 = vadd.f32 %v1180, 1.0
    %v1184 = vadd.f32 %v1182, 1.0
    %v1185 = vrcp.pop %v1183
    %v1186 = vmul.f32 %v1183, %v1185
    %v1187 = vsub.f32 1.0, %v1186
    %v1188 = vmul.f32 %v1185, %v1187
    %v1189 = vadd.f32 %v1185, %v1188
    %vm1190 = vweird.f32 %v1183
    %vm1191 = vweird.f32 %v1185
    %vm1192 = vmor %vm1190, %vm1191
    %v1193 = vsel %vm1192, %v1185, %v1189
    %v1194 = vand.u32 2147483647, %v1183
    %vm1195 = vcmp.eq.f32.partialorder %v1194, 8.507059e+37
    %v1196 = vand.u32 %v1183, 2147483648
    %v1197 = vor.u32 1.1754944e-38, %v1196
    %v1198 = vsel %vm1195, %v1197, %v1193
    %v1199 = vmul.f32 1.0, %v1198
    %v1200 = vrcp.pop %v1184
    %v1201 = vmul.f32 %v1184, %v1200
    %v1202 = vsub.f32 1.0, %v1201
    %v1203 = vmul.f32 %v1200, %v1202
    %v1204 = vadd.f32 %v1200, %v1203
    %vm1205 = vweird.f32 %v1184
    %vm1206 = vweird.f32 %v1200
    %vm1207 = vmor %vm1205, %vm1206
    %v1208 = vsel %vm1207, %v1200, %v1204
    %v1209 = vand.u32 2147483647, %v1184
    %vm1210 = vcmp.eq.f32.partialorder %v1209, 8.507059e+37
    %v1211 = vand.u32 %v1184, 2147483648
    %v1212 = vor.u32 1.1754944e-38, %v1211
    %v1213 = vsel %vm1210, %v1212, %v1208
    %v1214 = vmul.f32 1.0, %v1213
    %v1215 = vmul.f32 %v1199, %v1173
    %v1216 = vadd.f32 %v545, %v1215
    %v1217 = vtanh.pop %v1216
    %v1218 = vsub.f32 1.0, %v1214
    %v1219 = vmul.f32 %v1218, %v1217
    %v1220 = vmul.f32 %v1214, %v1114
    %v1221 = vadd.f32 %v1219, %v1220
    %1222 = vmatpush.msra.mxu0 %v783
    %1223 = vmatpush.msra.mxu0 %v780
    %1224 = vmatpush.msra.mxu0 %v777
    %1225 = vmatpush.msra.mxu0 %v774
    %1226 = vmatpush.msra.mxu0 %v771
    %1227 = vmatpush.msra.mxu0 %v768
    %1228 = vmatpush.msra.mxu0 %v765
    %1229 = vmatpush.msra.mxu0 %v762
    %1230 = vmatpush.msra.mxu0 %v759
    %1231 = vmatpush.msra.mxu0 %v756
    %1232 = vmatpush.msra.mxu0 %v753
    %1233 = vmatpush.msra.mxu0 %v750
    %1234 = vmatpush.msra.mxu0 %v747
    %1235 = vmatpush.msra.mxu0 %v744
    %1236 = vmatpush.msra.mxu0 %v741
    %1237 = vmatpush.msra.mxu0 %v738
    %1238 = vmatmul.f32.gmra.mxu0 %v1221
    %v1239 = vpop.f32.mrf.mxu0
    %v1240 = vadd.f32 %v788, %v1239
    %1241 = vdwg.mxu0
    %1242 = vmatpush.msra.mxu0 %v784
    %1243 = vmatpush.msra.mxu0 %v781
    %1244 = vmatpush.msra.mxu0 %v778
    %1245 = vmatpush.msra.mxu0 %v775
    %1246 = vmatpush.msra.mxu0 %v772
    %1247 = vmatpush.msra.mxu0 %v769
    %1248 = vmatpush.msra.mxu0 %v766
    %1249 = vmatpush.msra.mxu0 %v763
    %1250 = vmatpush.msra.mxu0 %v760
    %1251 = vmatpush.msra.mxu0 %v757
    %1252 = vmatpush.msra.mxu0 %v754
    %1253 = vmatpush.msra.mxu0 %v751
    %1254 = vmatpush.msra.mxu0 %v748
    %1255 = vmatpush.msra.mxu0 %v745
    %1256 = vmatpush.msra.mxu0 %v742
    %1257 = vmatpush.msra.mxu0 %v739
    %1258 = vmatmul.f32.gmra.mxu0 %v1221
    %v1259 = vpop.f32.mrf.mxu0
    %v1260 = vadd.f32 %v789, %v1259
    %1261 = vdwg.mxu0
    %1262 = vmatpush.msra.mxu0 %v785
    %1263 = vmatpush.msra.mxu0 %v782
    %1264 = vmatpush.msra.mxu0 %v779
    %1265 = vmatpush.msra.mxu0 %v776
    %1266 = vmatpush.msra.mxu0 %v773
    %1267 = vmatpush.msra.mxu0 %v770
    %1268 = vmatpush.msra.mxu0 %v767
    %1269 = vmatpush.msra.mxu0 %v764
    %1270 = vmatpush.msra.mxu0 %v761
    %1271 = vmatpush.msra.mxu0 %v758
    %1272 = vmatpush.msra.mxu0 %v755
    %1273 = vmatpush.msra.mxu0 %v752
    %1274 = vmatpush.msra.mxu0 %v749
    %1275 = vmatpush.msra.mxu0 %v746
    %1276 = vmatpush.msra.mxu0 %v743
    %1277 = vmatpush.msra.mxu0 %v740
    %1278 = vmatmul.f32.gmra.mxu0 %v1221
    %v1279 = vpop.f32.mrf.mxu0
    %v1280 = vadd.f32 %v790, %v1279
    %1281 = vdwg.mxu0
    %v1282 = vadd.f32 %v466, %v1240
    %v1283 = vadd.f32 %v507, %v1260
    %v1284 = vxor.u32 %v1282, 2147483648
    %v1285 = vxor.u32 %v1283, 2147483648
    %v1286 = vmul.f32 %v1284, 1.442695
    %v1287 = vpow.pop %v1286
    %v1288 = vmul.f32 %v1285, 1.442695
    %v1289 = vpow.pop %v1288
    %v1290 = vadd.f32 %v1287, 1.0
    %v1291 = vadd.f32 %v1289, 1.0
    %v1292 = vrcp.pop %v1290
    %v1293 = vmul.f32 %v1290, %v1292
    %v1294 = vsub.f32 1.0, %v1293
    %v1295 = vmul.f32 %v1292, %v1294
    %v1296 = vadd.f32 %v1292, %v1295
    %vm1297 = vweird.f32 %v1290
    %vm1298 = vweird.f32 %v1292
    %vm1299 = vmor %vm1297, %vm1298
    %v1300 = vsel %vm1299, %v1292, %v1296
    %v1301 = vand.u32 2147483647, %v1290
    %vm1302 = vcmp.eq.f32.partialorder %v1301, 8.507059e+37
    %v1303 = vand.u32 %v1290, 2147483648
    %v1304 = vor.u32 1.1754944e-38, %v1303
    %v1305 = vsel %vm1302, %v1304, %v1300
    %v1306 = vmul.f32 1.0, %v1305
    %v1307 = vrcp.pop %v1291
    %v1308 = vmul.f32 %v1291, %v1307
    %v1309 = vsub.f32 1.0, %v1308
    %v1310 = vmul.f32 %v1307, %v1309
    %v1311 = vadd.f32 %v1307, %v1310
    %vm1312 = vweird.f32 %v1291
    %vm1313 = vweird.f32 %v1307
    %vm1314 = vmor %vm1312, %vm1313
    %v1315 = vsel %vm1314, %v1307, %v1311
    %v1316 = vand.u32 2147483647, %v1291
    %vm1317 = vcmp.eq.f32.partialorder %v1316, 8.507059e+37
    %v1318 = vand.u32 %v1291, 2147483648
    %v1319 = vor.u32 1.1754944e-38, %v1318
    %v1320 = vsel %vm1317, %v1319, %v1315
    %v1321 = vmul.f32 1.0, %v1320
    %v1322 = vmul.f32 %v1306, %v1280
    %v1323 = vadd.f32 %v548, %v1322
    %v1324 = vtanh.pop %v1323
    %v1325 = vsub.f32 1.0, %v1321
    %v1326 = vmul.f32 %v1325, %v1324
    %v1327 = vmul.f32 %v1321, %v1221
    %v1328 = vadd.f32 %v1326, %v1327
    %1329 = vmatpush.msra.mxu0 %v783
    %1330 = vmatpush.msra.mxu0 %v780
    %1331 = vmatpush.msra.mxu0 %v777
    %1332 = vmatpush.msra.mxu0 %v774
    %1333 = vmatpush.msra.mxu0 %v771
    %1334 = vmatpush.msra.mxu0 %v768
    %1335 = vmatpush.msra.mxu0 %v765
    %1336 = vmatpush.msra.mxu0 %v762
    %1337 = vmatpush.msra.mxu0 %v759
    %1338 = vmatpush.msra.mxu0 %v756
    %1339 = vmatpush.msra.mxu0 %v753
    %1340 = vmatpush.msra.mxu0 %v750
    %1341 = vmatpush.msra.mxu0 %v747
    %1342 = vmatpush.msra.mxu0 %v744
    %1343 = vmatpush.msra.mxu0 %v741
    %1344 = vmatpush.msra.mxu0 %v738
    %1345 = vmatmul.f32.gmra.mxu0 %v1328
    %v1346 = vpop.f32.mrf.mxu0
    %v1347 = vadd.f32 %v788, %v1346
    %1348 = vdwg.mxu0
    %1349 = vmatpush.msra.mxu0 %v784
    %1350 = vmatpush.msra.mxu0 %v781
    %1351 = vmatpush.msra.mxu0 %v778
    %1352 = vmatpush.msra.mxu0 %v775
    %1353 = vmatpush.msra.mxu0 %v772
    %1354 = vmatpush.msra.mxu0 %v769
    %1355 = vmatpush.msra.mxu0 %v766
    %1356 = vmatpush.msra.mxu0 %v763
    %1357 = vmatpush.msra.mxu0 %v760
    %1358 = vmatpush.msra.mxu0 %v757
    %1359 = vmatpush.msra.mxu0 %v754
    %1360 = vmatpush.msra.mxu0 %v751
    %1361 = vmatpush.msra.mxu0 %v748
    %1362 = vmatpush.msra.mxu0 %v745
    %1363 = vmatpush.msra.mxu0 %v742
    %1364 = vmatpush.msra.mxu0 %v739
    %1365 = vmatmul.f32.gmra.mxu0 %v1328
    %v1366 = vpop.f32.mrf.mxu0
    %v1367 = vadd.f32 %v789, %v1366
    %1368 = vdwg.mxu0
    %1369 = vmatpush.msra.mxu0 %v785
    %1370 = vmatpush.msra.mxu0 %v782
    %1371 = vmatpush.msra.mxu0 %v779
    %1372 = vmatpush.msra.mxu0 %v776
    %1373 = vmatpush.msra.mxu0 %v773
    %1374 = vmatpush.msra.mxu0 %v770
    %1375 = vmatpush.msra.mxu0 %v767
    %1376 = vmatpush.msra.mxu0 %v764
    %1377 = vmatpush.msra.mxu0 %v761
    %1378 = vmatpush.msra.mxu0 %v758
    %1379 = vmatpush.msra.mxu0 %v755
    %1380 = vmatpush.msra.mxu0 %v752
    %1381 = vmatpush.msra.mxu0 %v749
    %1382 = vmatpush.msra.mxu0 %v746
    %1383 = vmatpush.msra.mxu0 %v743
    %1384 = vmatpush.msra.mxu0 %v740
    %1385 = vmatmul.f32.gmra.mxu0 %v1328
    %v1386 = vpop.f32.mrf.mxu0
    %v1387 = vadd.f32 %v790, %v1386
    %1388 = vdwg.mxu0
    %v1389 = vadd.f32 %v469, %v1347
    %v1390 = vadd.f32 %v510, %v1367
    %v1391 = vxor.u32 %v1389, 2147483648
    %v1392 = vxor.u32 %v1390, 2147483648
    %v1393 = vmul.f32 %v1391, 1.442695
    %v1394 = vpow.pop %v1393
    %v1395 = vmul.f32 %v1392, 1.442695
    %v1396 = vpow.pop %v1395
    %v1397 = vadd.f32 %v1394, 1.0
    %v1398 = vadd.f32 %v1396, 1.0
    %v1399 = vrcp.pop %v1397
    %v1400 = vmul.f32 %v1397, %v1399
    %v1401 = vsub.f32 1.0, %v1400
    %v1402 = vmul.f32 %v1399, %v1401
    %v1403 = vadd.f32 %v1399, %v1402
    %vm1404 = vweird.f32 %v1397
    %vm1405 = vweird.f32 %v1399
    %vm1406 = vmor %vm1404, %vm1405
    %v1407 = vsel %vm1406, %v1399, %v1403
    %v1408 = vand.u32 2147483647, %v1397
    %vm1409 = vcmp.eq.f32.partialorder %v1408, 8.507059e+37
    %v1410 = vand.u32 %v1397, 2147483648
    %v1411 = vor.u32 1.1754944e-38, %v1410
    %v1412 = vsel %vm1409, %v1411, %v1407
    %v1413 = vmul.f32 1.0, %v1412
    %v1414 = vrcp.pop %v1398
    %v1415 = vmul.f32 %v1398, %v1414
    %v1416 = vsub.f32 1.0, %v1415
    %v1417 = vmul.f32 %v1414, %v1416
    %v1418 = vadd.f32 %v1414, %v1417
    %vm1419 = vweird.f32 %v1398
    %vm1420 = vweird.f32 %v1414
    %vm1421 = vmor %vm1419, %vm1420
    %v1422 = vsel %vm1421, %v1414, %v1418
    %v1423 = vand.u32 2147483647, %v1398
    %vm1424 = vcmp.eq.f32.partialorder %v1423, 8.507059e+37
    %v1425 = vand.u32 %v1398, 2147483648
    %v1426 = vor.u32 1.1754944e-38, %v1425
    %v1427 = vsel %vm1424, %v1426, %v1422
    %v1428 = vmul.f32 1.0, %v1427
    %v1429 = vmul.f32 %v1413, %v1387
    %v1430 = vadd.f32 %v551, %v1429
    %v1431 = vtanh.pop %v1430
    %v1432 = vsub.f32 1.0, %v1428
    %v1433 = vmul.f32 %v1432, %v1431
    %v1434 = vmul.f32 %v1428, %v1328
    %v1435 = vadd.f32 %v1433, %v1434
    %1436 = vmatpush.msra.mxu0 %v783
    %1437 = vmatpush.msra.mxu0 %v780
    %1438 = vmatpush.msra.mxu0 %v777
    %1439 = vmatpush.msra.mxu0 %v774
    %1440 = vmatpush.msra.mxu0 %v771
    %1441 = vmatpush.msra.mxu0 %v768
    %1442 = vmatpush.msra.mxu0 %v765
    %1443 = vmatpush.msra.mxu0 %v762
    %1444 = vmatpush.msra.mxu0 %v759
    %1445 = vmatpush.msra.mxu0 %v756
    %1446 = vmatpush.msra.mxu0 %v753
    %1447 = vmatpush.msra.mxu0 %v750
    %1448 = vmatpush.msra.mxu0 %v747
    %1449 = vmatpush.msra.mxu0 %v744
    %1450 = vmatpush.msra.mxu0 %v741
    %1451 = vmatpush.msra.mxu0 %v738
    %1452 = vmatmul.f32.gmra.mxu0 %v1435
    %v1453 = vpop.f32.mrf.mxu0
    %v1454 = vadd.f32 %v788, %v1453
    %1455 = vdwg.mxu0
    %1456 = vmatpush.msra.mxu0 %v784
    %1457 = vmatpush.msra.mxu0 %v781
    %1458 = vmatpush.msra.mxu0 %v778
    %1459 = vmatpush.msra.mxu0 %v775
    %1460 = vmatpush.msra.mxu0 %v772
    %1461 = vmatpush.msra.mxu0 %v769
    %1462 = vmatpush.msra.mxu0 %v766
    %1463 = vmatpush.msra.mxu0 %v763
    %1464 = vmatpush.msra.mxu0 %v760
    %1465 = vmatpush.msra.mxu0 %v757
    %1466 = vmatpush.msra.mxu0 %v754
    %1467 = vmatpush.msra.mxu0 %v751
    %1468 = vmatpush.msra.mxu0 %v748
    %1469 = vmatpush.msra.mxu0 %v745
    %1470 = vmatpush.msra.mxu0 %v742
    %1471 = vmatpush.msra.mxu0 %v739
    %1472 = vmatmul.f32.gmra.mxu0 %v1435
    %v1473 = vpop.f32.mrf.mxu0
    %v1474 = vadd.f32 %v789, %v1473
    %1475 = vdwg.mxu0
    %1476 = vmatpush.msra.mxu0 %v785
    %1477 = vmatpush.msra.mxu0 %v782
    %1478 = vmatpush.msra.mxu0 %v779
    %1479 = vmatpush.msra.mxu0 %v776
    %1480 = vmatpush.msra.mxu0 %v773
    %1481 = vmatpush.msra.mxu0 %v770
    %1482 = vmatpush.msra.mxu0 %v767
    %1483 = vmatpush.msra.mxu0 %v764
    %1484 = vmatpush.msra.mxu0 %v761
    %1485 = vmatpush.msra.mxu0 %v758
    %1486 = vmatpush.msra.mxu0 %v755
    %1487 = vmatpush.msra.mxu0 %v752
    %1488 = vmatpush.msra.mxu0 %v749
    %1489 = vmatpush.msra.mxu0 %v746
    %1490 = vmatpush.msra.mxu0 %v743
    %1491 = vmatpush.msra.mxu0 %v740
    %1492 = vmatmul.f32.gmra.mxu0 %v1435
    %v1493 = vpop.f32.mrf.mxu0
    %v1494 = vadd.f32 %v790, %v1493
    %1495 = vdwg.mxu0
    %v1496 = vadd.f32 %v472, %v1454
    %v1497 = vadd.f32 %v513, %v1474
    %v1498 = vxor.u32 %v1496, 2147483648
    %v1499 = vxor.u32 %v1497, 2147483648
    %v1500 = vmul.f32 %v1498, 1.442695
    %v1501 = vpow.pop %v1500
    %v1502 = vmul.f32 %v1499, 1.442695
    %v1503 = vpow.pop %v1502
    %v1504 = vadd.f32 %v1501, 1.0
    %v1505 = vadd.f32 %v1503, 1.0
    %v1506 = vrcp.pop %v1504
    %v1507 = vmul.f32 %v1504, %v1506
    %v1508 = vsub.f32 1.0, %v1507
    %v1509 = vmul.f32 %v1506, %v1508
    %v1510 = vadd.f32 %v1506, %v1509
    %vm1511 = vweird.f32 %v1504
    %vm1512 = vweird.f32 %v1506
    %vm1513 = vmor %vm1511, %vm1512
    %v1514 = vsel %vm1513, %v1506, %v1510
    %v1515 = vand.u32 2147483647, %v1504
    %vm1516 = vcmp.eq.f32.partialorder %v1515, 8.507059e+37
    %v1517 = vand.u32 %v1504, 2147483648
    %v1518 = vor.u32 1.1754944e-38, %v1517
    %v1519 = vsel %vm1516, %v1518, %v1514
    %v1520 = vmul.f32 1.0, %v1519
    %v1521 = vrcp.pop %v1505
    %v1522 = vmul.f32 %v1505, %v1521
    %v1523 = vsub.f32 1.0, %v1522
    %v1524 = vmul.f32 %v1521, %v1523
    %v1525 = vadd.f32 %v1521, %v1524
    %vm1526 = vweird.f32 %v1505
    %vm1527 = vweird.f32 %v1521
    %vm1528 = vmor %vm1526, %vm1527
    %v1529 = vsel %vm1528, %v1521, %v1525
    %v1530 = vand.u32 2147483647, %v1505
    %vm1531 = vcmp.eq.f32.partialorder %v1530, 8.507059e+37
    %v1532 = vand.u32 %v1505, 2147483648
    %v1533 = vor.u32 1.1754944e-38, %v1532
    %v1534 = vsel %vm1531, %v1533, %v1529
    %v1535 = vmul.f32 1.0, %v1534
    %v1536 = vmul.f32 %v1520, %v1494
    %v1537 = vadd.f32 %v554, %v1536
    %v1538 = vtanh.pop %v1537
    %v1539 = vsub.f32 1.0, %v1535
    %v1540 = vmul.f32 %v1539, %v1538
    %v1541 = vmul.f32 %v1535, %v1435
    %v1542 = vadd.f32 %v1540, %v1541
    %1543 = vmatpush.msra.mxu0 %v783
    %1544 = vmatpush.msra.mxu0 %v780
    %1545 = vmatpush.msra.mxu0 %v777
    %1546 = vmatpush.msra.mxu0 %v774
    %1547 = vmatpush.msra.mxu0 %v771
    %1548 = vmatpush.msra.mxu0 %v768
    %1549 = vmatpush.msra.mxu0 %v765
    %1550 = vmatpush.msra.mxu0 %v762
    %1551 = vmatpush.msra.mxu0 %v759
    %1552 = vmatpush.msra.mxu0 %v756
    %1553 = vmatpush.msra.mxu0 %v753
    %1554 = vmatpush.msra.mxu0 %v750
    %1555 = vmatpush.msra.mxu0 %v747
    %1556 = vmatpush.msra.mxu0 %v744
    %1557 = vmatpush.msra.mxu0 %v741
    %1558 = vmatpush.msra.mxu0 %v738
    %1559 = vmatmul.f32.gmra.mxu0 %v1542
    %v1560 = vpop.f32.mrf.mxu0
    %v1561 = vadd.f32 %v788, %v1560
    %1562 = vdwg.mxu0
    %1563 = vmatpush.msra.mxu0 %v784
    %1564 = vmatpush.msra.mxu0 %v781
    %1565 = vmatpush.msra.mxu0 %v778
    %1566 = vmatpush.msra.mxu0 %v775
    %1567 = vmatpush.msra.mxu0 %v772
    %1568 = vmatpush.msra.mxu0 %v769
    %1569 = vmatpush.msra.mxu0 %v766
    %1570 = vmatpush.msra.mxu0 %v763
    %1571 = vmatpush.msra.mxu0 %v760
    %1572 = vmatpush.msra.mxu0 %v757
    %1573 = vmatpush.msra.mxu0 %v754
    %1574 = vmatpush.msra.mxu0 %v751
    %1575 = vmatpush.msra.mxu0 %v748
    %1576 = vmatpush.msra.mxu0 %v745
    %1577 = vmatpush.msra.mxu0 %v742
    %1578 = vmatpush.msra.mxu0 %v739
    %1579 = vmatmul.f32.gmra.mxu0 %v1542
    %v1580 = vpop.f32.mrf.mxu0
    %v1581 = vadd.f32 %v789, %v1580
    %1582 = vdwg.mxu0
    %1583 = vmatpush.msra.mxu0 %v785
    %1584 = vmatpush.msra.mxu0 %v782
    %1585 = vmatpush.msra.mxu0 %v779
    %1586 = vmatpush.msra.mxu0 %v776
    %1587 = vmatpush.msra.mxu0 %v773
    %1588 = vmatpush.msra.mxu0 %v770
    %1589 = vmatpush.msra.mxu0 %v767
    %1590 = vmatpush.msra.mxu0 %v764
    %1591 = vmatpush.msra.mxu0 %v761
    %1592 = vmatpush.msra.mxu0 %v758
    %1593 = vmatpush.msra.mxu0 %v755
    %1594 = vmatpush.msra.mxu0 %v752
    %1595 = vmatpush.msra.mxu0 %v749
    %1596 = vmatpush.msra.mxu0 %v746
    %1597 = vmatpush.msra.mxu0 %v743
    %1598 = vmatpush.msra.mxu0 %v740
    %1599 = vmatmul.f32.gmra.mxu0 %v1542
    %v1600 = vpop.f32.mrf.mxu0
    %v1601 = vadd.f32 %v790, %v1600
    %1602 = vdwg.mxu0
    %v1603 = vadd.f32 %v475, %v1561
    %v1604 = vadd.f32 %v516, %v1581
    %v1605 = vxor.u32 %v1603, 2147483648
    %v1606 = vxor.u32 %v1604, 2147483648
    %v1607 = vmul.f32 %v1605, 1.442695
    %v1608 = vpow.pop %v1607
    %v1609 = vmul.f32 %v1606, 1.442695
    %v1610 = vpow.pop %v1609
    %v1611 = vadd.f32 %v1608, 1.0
    %v1612 = vadd.f32 %v1610, 1.0
    %v1613 = vrcp.pop %v1611
    %v1614 = vmul.f32 %v1611, %v1613
    %v1615 = vsub.f32 1.0, %v1614
    %v1616 = vmul.f32 %v1613, %v1615
    %v1617 = vadd.f32 %v1613, %v1616
    %vm1618 = vweird.f32 %v1611
    %vm1619 = vweird.f32 %v1613
    %vm1620 = vmor %vm1618, %vm1619
    %v1621 = vsel %vm1620, %v1613, %v1617
    %v1622 = vand.u32 2147483647, %v1611
    %vm1623 = vcmp.eq.f32.partialorder %v1622, 8.507059e+37
    %v1624 = vand.u32 %v1611, 2147483648
    %v1625 = vor.u32 1.1754944e-38, %v1624
    %v1626 = vsel %vm1623, %v1625, %v1621
    %v1627 = vmul.f32 1.0, %v1626
    %v1628 = vrcp.pop %v1612
    %v1629 = vmul.f32 %v1612, %v1628
    %v1630 = vsub.f32 1.0, %v1629
    %v1631 = vmul.f32 %v1628, %v1630
    %v1632 = vadd.f32 %v1628, %v1631
    %vm1633 = vweird.f32 %v1612
    %vm1634 = vweird.f32 %v1628
    %vm1635 = vmor %vm1633, %vm1634
    %v1636 = vsel %vm1635, %v1628, %v1632
    %v1637 = vand.u32 2147483647, %v1612
    %vm1638 = vcmp.eq.f32.partialorder %v1637, 8.507059e+37
    %v1639 = vand.u32 %v1612, 2147483648
    %v1640 = vor.u32 1.1754944e-38, %v1639
    %v1641 = vsel %vm1638, %v1640, %v1636
    %v1642 = vmul.f32 1.0, %v1641
    %v1643 = vmul.f32 %v1627, %v1601
    %v1644 = vadd.f32 %v557, %v1643
    %v1645 = vtanh.pop %v1644
    %v1646 = vsub.f32 1.0, %v1642
    %v1647 = vmul.f32 %v1646, %v1645
    %v1648 = vmul.f32 %v1642, %v1542
    %v1649 = vadd.f32 %v1647, %v1648
    %v1650 = vld [vmem:[#allocation2 + $0x30] sm:$0xff]
    %v1651 = vld [vmem:[#allocation2 + $0x38] sm:$0xff]
    %v1652 = vld [vmem:[#allocation2 + $0xd8] sm:$0xff]
    %v1653 = vld [vmem:[#allocation2 + $0xe0] sm:$0xff]
    %v1654 = vld [vmem:[#allocation2 + $0x180] sm:$0xff]
    %v1655 = vld [vmem:[#allocation2 + $0x188] sm:$0xff]
    %v1656 = vld [vmem:[#allocation2 + $0x228] sm:$0xff]
    %v1657 = vld [vmem:[#allocation2 + $0x230] sm:$0xff]
    %v1658 = vld [vmem:[#allocation2 + $0x2d0] sm:$0xff]
    %v1659 = vld [vmem:[#allocation2 + $0x2d8] sm:$0xff]
    %v1660 = vld [vmem:[#allocation2 + $0x378] sm:$0xff]
    %v1661 = vld [vmem:[#allocation2 + $0x380] sm:$0xff]
    %v1662 = vld [vmem:[#allocation2 + $0x420] sm:$0xff]
    %v1663 = vld [vmem:[#allocation2 + $0x428] sm:$0xff]
    %v1664 = vld [vmem:[#allocation2 + $0x4c8] sm:$0xff]
    %v1665 = vld [vmem:[#allocation2 + $0x4d0] sm:$0xff]
    %v1666 = vld [vmem:[#allocation2 + $0x570] sm:$0xff]
    %v1667 = vld [vmem:[#allocation2 + $0x578] sm:$0xff]
    %v1668 = vld [vmem:[#allocation2 + $0x618] sm:$0xff]
    %v1669 = vld [vmem:[#allocation2 + $0x620] sm:$0xff]
    %v1670 = vld [vmem:[#allocation2 + $0x6c0] sm:$0xff]
    %v1671 = vld [vmem:[#allocation2 + $0x6c8] sm:$0xff]
    %v1672 = vld [vmem:[#allocation2 + $0x768] sm:$0xff]
    %v1673 = vld [vmem:[#allocation2 + $0x770] sm:$0xff]
    %v1674 = vld [vmem:[#allocation2 + $0x810] sm:$0xff]
    %v1675 = vld [vmem:[#allocation2 + $0x818] sm:$0xff]
    %v1676 = vld [vmem:[#allocation2 + $0x8b8] sm:$0xff]
    %v1677 = vld [vmem:[#allocation2 + $0x8c0] sm:$0xff]
    %v1678 = vld [vmem:[#allocation2 + $0x960] sm:$0xff]
    %v1679 = vld [vmem:[#allocation2 + $0x968] sm:$0xff]
    %v1680 = vld [vmem:[#allocation2 + $0xa08] sm:$0xff]
    %v1681 = vld [vmem:[#allocation2 + $0xa10] sm:$0xff]
    %v1682 = vld [vmem:[#allocation4 + $0x6] sm:$0x3]
    %v1684 = vperm.slane %v1682, 0
    %v1685 = vperm.slane %v1682, 1
    %1688 = vmatpush.msra.mxu0 %v1680
    %1689 = vmatpush.msra.mxu0 %v1678
    %1690 = vmatpush.msra.mxu0 %v1676
    %1691 = vmatpush.msra.mxu0 %v1674
    %1692 = vmatpush.msra.mxu0 %v1672
    %1693 = vmatpush.msra.mxu0 %v1670
    %1694 = vmatpush.msra.mxu0 %v1668
    %1695 = vmatpush.msra.mxu0 %v1666
    %1696 = vmatpush.msra.mxu0 %v1664
    %1697 = vmatpush.msra.mxu0 %v1662
    %1698 = vmatpush.msra.mxu0 %v1660
    %1699 = vmatpush.msra.mxu0 %v1658
    %1700 = vmatpush.msra.mxu0 %v1656
    %1701 = vmatpush.msra.mxu0 %v1654
    %1702 = vmatpush.msra.mxu0 %v1652
    %1703 = vmatpush.msra.mxu0 %v1650
    %1704 = vmatmul.f32.gmra.mxu0 %v1649
    %v1705 = vpop.f32.mrf.mxu0
    %v1706 = vadd.f32 %v1684, %v1705
    %1707 = vdwg.mxu0
    %1708 = vmatpush.msra.mxu0 %v1681
    %1709 = vmatpush.msra.mxu0 %v1679
    %1710 = vmatpush.msra.mxu0 %v1677
    %1711 = vmatpush.msra.mxu0 %v1675
    %1712 = vmatpush.msra.mxu0 %v1673
    %1713 = vmatpush.msra.mxu0 %v1671
    %1714 = vmatpush.msra.mxu0 %v1669
    %1715 = vmatpush.msra.mxu0 %v1667
    %1716 = vmatpush.msra.mxu0 %v1665
    %1717 = vmatpush.msra.mxu0 %v1663
    %1718 = vmatpush.msra.mxu0 %v1661
    %1719 = vmatpush.msra.mxu0 %v1659
    %1720 = vmatpush.msra.mxu0 %v1657
    %1721 = vmatpush.msra.mxu0 %v1655
    %1722 = vmatpush.msra.mxu0 %v1653
    %1723 = vmatpush.msra.mxu0 %v1651
    %1724 = vmatmul.f32.gmra.mxu0 %v1649
    %v1725 = vpop.f32.mrf.mxu0
    %v1726 = vadd.f32 %v1685, %v1725
    %1727 = vdwg.mxu0
    %v1728 = vlaneseq
    %v1729 = vshrl.u32 %v1728, 7
    %vm1730 = vcmp.lt.s32.totalorder %v1729, 2
    %v1731 = vmul.f32 %v1726, 1.442695
    %v1732 = vpow.pop %v1731
    %v1733 = vmul.f32 %v1706, %v1706
    %v1734 = vadd.f32 %v1732, %v1733
    %v1735 = vsub.f32 %v1734, 1.0
    %v1736 = vsub.f32 %v1735, %v1726
    %1737 = vadd.xlane.f32.xlu0 %v1736
    %v1738 = vpop.xlane.xlu0 %1737
    %v1739 = vmul.f32 %v1738, 0.5
    %v1740 = vsel %vm1730, %v1739, 0.0
    %v1741 = vrot.slane %v1740, 4
    %v1742 = vadd.f32 %v1740, %v1741
    %v1743 = vrot.slane %v1742, 2
    %v1744 = vadd.f32 %v1742, %v1743
    %v1745 = vrot.slane %v1744, 1
    %v1746 = vadd.f32 %v1744, %v1745
    %v1747 = vrcp.pop 2.0
    %v1748 = vmul.f32 2.0, %v1747
    %v1749 = vsub.f32 1.0, %v1748
    %v1750 = vmul.f32 %v1747, %v1749
    %v1751 = vadd.f32 %v1747, %v1750
    %vm1752 = vweird.f32 %v1747
    %v1753 = vsel %vm1752, %v1747, %v1751
    %v1754 = vmul.f32 %v1746, %v1753
    %v1755 = vmul.f32 %v1726, 0.5
    %v1756 = vmul.f32 %v1755, 1.442695
    %v1757 = vpow.pop %v1756
    %v1758 = vld [vmem:[%s1] sm:$0x1]
    %v1760 = vperm.slane %v1758, 0
    %v1762 = vmul.f32 %v1757, %v1760
    %v1763 = vadd.f32 %v1706, %v1762
    %v1764 = vmul.f32 %v1763, %v1763
    %v1765 = vsel %vm1730, 1, 0
    %vm1766 = vcmp.eq.s32.totalorder %v1765, 1
    %v1767 = vsel %vm1766, %v1764, 0.0
    %1768 = vadd.xlane.f32.xlu0 %v1767
    %v1769 = vpop.xlane.xlu0 %1768
    %v1770 = vrot.slane %v1769, 4
    %v1771 = vadd.f32 %v1769, %v1770
    %v1772 = vrot.slane %v1771, 2
    %v1773 = vadd.f32 %v1771, %v1772
    %v1774 = vrot.slane %v1773, 1
    %v1775 = vadd.f32 %v1773, %v1774
    %s1776 = vtos %v1775
    %v1777 = vstv %s1776
    %v1778 = vrsqrt.pop %v1777
    %v1779 = vmul.f32 %v1778, %v1777
    %v1780 = vmul.f32 %v1779, %v1778
    %v1781 = vmul.f32 0.5, %v1780
    %v1782 = vsub.f32 1.5, %v1781
    %v1783 = vmul.f32 %v1778, %v1782
    %vm1784 = vweird.f32 %v1777
    %vm1785 = vweird.f32 %v1778
    %vm1786 = vmor %vm1784, %vm1785
    %v1787 = vsel %vm1786, %v1778, %v1783
    %v1788 = vmul.f32 %v1763, %v1787
    %v1789 = vld [vmem:[#allocation2 + $0x58] sm:$0xff]
    %v1790 = vld [vmem:[#allocation2 + $0x60] sm:$0xff]
    %v1791 = vld [vmem:[#allocation2 + $0x68] sm:$0xff]
    %v1792 = vld [vmem:[#allocation2 + $0x100] sm:$0xff]
    %v1793 = vld [vmem:[#allocation2 + $0x108] sm:$0xff]
    %v1794 = vld [vmem:[#allocation2 + $0x110] sm:$0xff]
    %v1795 = vld [vmem:[#allocation2 + $0x1a8] sm:$0xff]
    %v1796 = vld [vmem:[#allocation2 + $0x1b0] sm:$0xff]
    %v1797 = vld [vmem:[#allocation2 + $0x1b8] sm:$0xff]
    %v1798 = vld [vmem:[#allocation2 + $0x250] sm:$0xff]
    %v1799 = vld [vmem:[#allocation2 + $0x258] sm:$0xff]
    %v1800 = vld [vmem:[#allocation2 + $0x260] sm:$0xff]
    %v1801 = vld [vmem:[#allocation2 + $0x2f8] sm:$0xff]
    %v1802 = vld [vmem:[#allocation2 + $0x300] sm:$0xff]
    %v1803 = vld [vmem:[#allocation2 + $0x308] sm:$0xff]
    %v1804 = vld [vmem:[#allocation2 + $0x3a0] sm:$0xff]
    %v1805 = vld [vmem:[#allocation2 + $0x3a8] sm:$0xff]
    %v1806 = vld [vmem:[#allocation2 + $0x3b0] sm:$0xff]
    %v1807 = vld [vmem:[#allocation2 + $0x448] sm:$0xff]
    %v1808 = vld [vmem:[#allocation2 + $0x450] sm:$0xff]
    %v1809 = vld [vmem:[#allocation2 + $0x458] sm:$0xff]
    %v1810 = vld [vmem:[#allocation2 + $0x4f0] sm:$0xff]
    %v1811 = vld [vmem:[#allocation2 + $0x4f8] sm:$0xff]
    %v1812 = vld [vmem:[#allocation2 + $0x500] sm:$0xff]
    %v1813 = vld [vmem:[#allocation2 + $0x598] sm:$0xff]
    %v1814 = vld [vmem:[#allocation2 + $0x5a0] sm:$0xff]
    %v1815 = vld [vmem:[#allocation2 + $0x5a8] sm:$0xff]
    %v1816 = vld [vmem:[#allocation2 + $0x640] sm:$0xff]
    %v1817 = vld [vmem:[#allocation2 + $0x648] sm:$0xff]
    %v1818 = vld [vmem:[#allocation2 + $0x650] sm:$0xff]
    %v1819 = vld [vmem:[#allocation2 + $0x6e8] sm:$0xff]
    %v1820 = vld [vmem:[#allocation2 + $0x6f0] sm:$0xff]
    %v1821 = vld [vmem:[#allocation2 + $0x6f8] sm:$0xff]
    %v1822 = vld [vmem:[#allocation2 + $0x790] sm:$0xff]
    %v1823 = vld [vmem:[#allocation2 + $0x798] sm:$0xff]
    %v1824 = vld [vmem:[#allocation2 + $0x7a0] sm:$0xff]
    %v1825 = vld [vmem:[#allocation2 + $0x838] sm:$0xff]
    %v1826 = vld [vmem:[#allocation2 + $0x840] sm:$0xff]
    %v1827 = vld [vmem:[#allocation2 + $0x848] sm:$0xff]
    %v1828 = vld [vmem:[#allocation2 + $0x8e0] sm:$0xff]
    %v1829 = vld [vmem:[#allocation2 + $0x8e8] sm:$0xff]
    %v1830 = vld [vmem:[#allocation2 + $0x8f0] sm:$0xff]
    %v1831 = vld [vmem:[#allocation2 + $0x988] sm:$0xff]
    %v1832 = vld [vmem:[#allocation2 + $0x990] sm:$0xff]
    %v1833 = vld [vmem:[#allocation2 + $0x998] sm:$0xff]
    %v1834 = vld [vmem:[#allocation2 + $0xa30] sm:$0xff]
    %v1835 = vld [vmem:[#allocation2 + $0xa38] sm:$0xff]
    %v1836 = vld [vmem:[#allocation2 + $0xa40] sm:$0xff]
    %1837 = vmatpush.msra.mxu0 %v1834
    %1838 = vmatpush.msra.mxu0 %v1831
    %1839 = vmatpush.msra.mxu0 %v1828
    %1840 = vmatpush.msra.mxu0 %v1825
    %1841 = vmatpush.msra.mxu0 %v1822
    %1842 = vmatpush.msra.mxu0 %v1819
    %1843 = vmatpush.msra.mxu0 %v1816
    %1844 = vmatpush.msra.mxu0 %v1813
    %1845 = vmatpush.msra.mxu0 %v1810
    %1846 = vmatpush.msra.mxu0 %v1807
    %1847 = vmatpush.msra.mxu0 %v1804
    %1848 = vmatpush.msra.mxu0 %v1801
    %1849 = vmatpush.msra.mxu0 %v1798
    %1850 = vmatpush.msra.mxu0 %v1795
    %1851 = vmatpush.msra.mxu0 %v1792
    %1852 = vmatpush.msra.mxu0 %v1789
    %1853 = vmatmul.f32.gmra.mxu0 %v1788
    %v1854 = vpop.f32.mrf.mxu0
    %v1855 = vadd.f32 0.0, %v1854
    %1856 = vdwg.mxu0
    %1857 = vmatpush.msra.mxu0 %v1835
    %1858 = vmatpush.msra.mxu0 %v1832
    %1859 = vmatpush.msra.mxu0 %v1829
    %1860 = vmatpush.msra.mxu0 %v1826
    %1861 = vmatpush.msra.mxu0 %v1823
    %1862 = vmatpush.msra.mxu0 %v1820
    %1863 = vmatpush.msra.mxu0 %v1817
    %1864 = vmatpush.msra.mxu0 %v1814
    %1865 = vmatpush.msra.mxu0 %v1811
    %1866 = vmatpush.msra.mxu0 %v1808
    %1867 = vmatpush.msra.mxu0 %v1805
    %1868 = vmatpush.msra.mxu0 %v1802
    %1869 = vmatpush.msra.mxu0 %v1799
    %1870 = vmatpush.msra.mxu0 %v1796
    %1871 = vmatpush.msra.mxu0 %v1793
    %1872 = vmatpush.msra.mxu0 %v1790
    %1873 = vmatmul.f32.gmra.mxu0 %v1788
    %v1874 = vpop.f32.mrf.mxu0
    %v1875 = vadd.f32 0.0, %v1874
    %1876 = vdwg.mxu0
    %1877 = vmatpush.msra.mxu0 %v1836
    %1878 = vmatpush.msra.mxu0 %v1833
    %1879 = vmatpush.msra.mxu0 %v1830
    %1880 = vmatpush.msra.mxu0 %v1827
    %1881 = vmatpush.msra.mxu0 %v1824
    %1882 = vmatpush.msra.mxu0 %v1821
    %1883 = vmatpush.msra.mxu0 %v1818
    %1884 = vmatpush.msra.mxu0 %v1815
    %1885 = vmatpush.msra.mxu0 %v1812
    %1886 = vmatpush.msra.mxu0 %v1809
    %1887 = vmatpush.msra.mxu0 %v1806
    %1888 = vmatpush.msra.mxu0 %v1803
    %1889 = vmatpush.msra.mxu0 %v1800
    %1890 = vmatpush.msra.mxu0 %v1797
    %1891 = vmatpush.msra.mxu0 %v1794
    %1892 = vmatpush.msra.mxu0 %v1791
    %1893 = vmatmul.f32.gmra.mxu0 %v1788
    %v1894 = vpop.f32.mrf.mxu0
    %v1895 = vadd.f32 0.0, %v1894
    %1896 = vdwg.mxu0
    %v1897 = vld [vmem:[#allocation2 + $0x70] sm:$0xff]
    %v1898 = vld [vmem:[#allocation2 + $0x78] sm:$0xff]
    %v1899 = vld [vmem:[#allocation2 + $0x80] sm:$0xff]
    %v1900 = vld [vmem:[#allocation2 + $0x118] sm:$0xff]
    %v1901 = vld [vmem:[#allocation2 + $0x120] sm:$0xff]
    %v1902 = vld [vmem:[#allocation2 + $0x128] sm:$0xff]
    %v1903 = vld [vmem:[#allocation2 + $0x1c0] sm:$0xff]
    %v1904 = vld [vmem:[#allocation2 + $0x1c8] sm:$0xff]
    %v1905 = vld [vmem:[#allocation2 + $0x1d0] sm:$0xff]
    %v1906 = vld [vmem:[#allocation2 + $0x268] sm:$0xff]
    %v1907 = vld [vmem:[#allocation2 + $0x270] sm:$0xff]
    %v1908 = vld [vmem:[#allocation2 + $0x278] sm:$0xff]
    %v1909 = vld [vmem:[#allocation2 + $0x310] sm:$0xff]
    %v1910 = vld [vmem:[#allocation2 + $0x318] sm:$0xff]
    %v1911 = vld [vmem:[#allocation2 + $0x320] sm:$0xff]
    %v1912 = vld [vmem:[#allocation2 + $0x3b8] sm:$0xff]
    %v1913 = vld [vmem:[#allocation2 + $0x3c0] sm:$0xff]
    %v1914 = vld [vmem:[#allocation2 + $0x3c8] sm:$0xff]
    %v1915 = vld [vmem:[#allocation2 + $0x460] sm:$0xff]
    %v1916 = vld [vmem:[#allocation2 + $0x468] sm:$0xff]
    %v1917 = vld [vmem:[#allocation2 + $0x470] sm:$0xff]
    %v1918 = vld [vmem:[#allocation2 + $0x508] sm:$0xff]
    %v1919 = vld [vmem:[#allocation2 + $0x510] sm:$0xff]
    %v1920 = vld [vmem:[#allocation2 + $0x518] sm:$0xff]
    %v1921 = vld [vmem:[#allocation2 + $0x5b0] sm:$0xff]
    %v1922 = vld [vmem:[#allocation2 + $0x5b8] sm:$0xff]
    %v1923 = vld [vmem:[#allocation2 + $0x5c0] sm:$0xff]
    %v1924 = vld [vmem:[#allocation2 + $0x658] sm:$0xff]
    %v1925 = vld [vmem:[#allocation2 + $0x660] sm:$0xff]
    %v1926 = vld [vmem:[#allocation2 + $0x668] sm:$0xff]
    %v1927 = vld [vmem:[#allocation2 + $0x700] sm:$0xff]
    %v1928 = vld [vmem:[#allocation2 + $0x708] sm:$0xff]
    %v1929 = vld [vmem:[#allocation2 + $0x710] sm:$0xff]
    %v1930 = vld [vmem:[#allocation2 + $0x7a8] sm:$0xff]
    %v1931 = vld [vmem:[#allocation2 + $0x7b0] sm:$0xff]
    %v1932 = vld [vmem:[#allocation2 + $0x7b8] sm:$0xff]
    %v1933 = vld [vmem:[#allocation2 + $0x850] sm:$0xff]
    %v1934 = vld [vmem:[#allocation2 + $0x858] sm:$0xff]
    %v1935 = vld [vmem:[#allocation2 + $0x860] sm:$0xff]
    %v1936 = vld [vmem:[#allocation2 + $0x8f8] sm:$0xff]
    %v1937 = vld [vmem:[#allocation2 + $0x900] sm:$0xff]
    %v1938 = vld [vmem:[#allocation2 + $0x908] sm:$0xff]
    %v1939 = vld [vmem:[#allocation2 + $0x9a0] sm:$0xff]
    %v1940 = vld [vmem:[#allocation2 + $0x9a8] sm:$0xff]
    %v1941 = vld [vmem:[#allocation2 + $0x9b0] sm:$0xff]
    %v1942 = vld [vmem:[#allocation2 + $0xa48] sm:$0xff]
    %v1943 = vld [vmem:[#allocation2 + $0xa50] sm:$0xff]
    %v1944 = vld [vmem:[#allocation2 + $0xa58] sm:$0xff]
    %v1945 = vld [vmem:[#allocation4 + $0xe] sm:$0x7]
    %v1946 = vadd.f32 %v633, %v1855
    %v1947 = vadd.f32 %v674, %v1875
    %v1948 = vadd.f32 %v715, %v1895
    %v1950 = vperm.slane %v1945, 0
    %v1951 = vperm.slane %v1945, 1
    %v1952 = vperm.slane %v1945, 2
    %1956 = vmatpush.msra.mxu0 %v1942
    %1957 = vmatpush.msra.mxu0 %v1939
    %1958 = vmatpush.msra.mxu0 %v1936
    %1959 = vmatpush.msra.mxu0 %v1933
    %1960 = vmatpush.msra.mxu0 %v1930
    %1961 = vmatpush.msra.mxu0 %v1927
    %1962 = vmatpush.msra.mxu0 %v1924
    %1963 = vmatpush.msra.mxu0 %v1921
    %1964 = vmatpush.msra.mxu0 %v1918
    %1965 = vmatpush.msra.mxu0 %v1915
    %1966 = vmatpush.msra.mxu0 %v1912
    %1967 = vmatpush.msra.mxu0 %v1909
    %1968 = vmatpush.msra.mxu0 %v1906
    %1969 = vmatpush.msra.mxu0 %v1903
    %1970 = vmatpush.msra.mxu0 %v1900
    %1971 = vmatpush.msra.mxu0 %v1897
    %1972 = vmatmul.f32.gmra.mxu0 %v1788
    %v1973 = vpop.f32.mrf.mxu0
    %v1974 = vadd.f32 %v1950, %v1973
    %1975 = vdwg.mxu0
    %1976 = vmatpush.msra.mxu0 %v1943
    %1977 = vmatpush.msra.mxu0 %v1940
    %1978 = vmatpush.msra.mxu0 %v1937
    %1979 = vmatpush.msra.mxu0 %v1934
    %1980 = vmatpush.msra.mxu0 %v1931
    %1981 = vmatpush.msra.mxu0 %v1928
    %1982 = vmatpush.msra.mxu0 %v1925
    %1983 = vmatpush.msra.mxu0 %v1922
    %1984 = vmatpush.msra.mxu0 %v1919
    %1985 = vmatpush.msra.mxu0 %v1916
    %1986 = vmatpush.msra.mxu0 %v1913
    %1987 = vmatpush.msra.mxu0 %v1910
    %1988 = vmatpush.msra.mxu0 %v1907
    %1989 = vmatpush.msra.mxu0 %v1904
    %1990 = vmatpush.msra.mxu0 %v1901
    %1991 = vmatpush.msra.mxu0 %v1898
    %1992 = vmatmul.f32.gmra.mxu0 %v1788
    %v1993 = vpop.f32.mrf.mxu0
    %v1994 = vadd.f32 %v1951, %v1993
    %1995 = vdwg.mxu0
    %1996 = vmatpush.msra.mxu0 %v1944
    %1997 = vmatpush.msra.mxu0 %v1941
    %1998 = vmatpush.msra.mxu0 %v1938
    %1999 = vmatpush.msra.mxu0 %v1935
    %2000 = vmatpush.msra.mxu0 %v1932
    %2001 = vmatpush.msra.mxu0 %v1929
    %2002 = vmatpush.msra.mxu0 %v1926
    %2003 = vmatpush.msra.mxu0 %v1923
    %2004 = vmatpush.msra.mxu0 %v1920
    %2005 = vmatpush.msra.mxu0 %v1917
    %2006 = vmatpush.msra.mxu0 %v1914
    %2007 = vmatpush.msra.mxu0 %v1911
    %2008 = vmatpush.msra.mxu0 %v1908
    %2009 = vmatpush.msra.mxu0 %v1905
    %2010 = vmatpush.msra.mxu0 %v1902
    %2011 = vmatpush.msra.mxu0 %v1899
    %2012 = vmatmul.f32.gmra.mxu0 %v1788
    %v2013 = vpop.f32.mrf.mxu0
    %v2014 = vadd.f32 %v1952, %v2013
    %2015 = vdwg.mxu0
    %v2016 = vadd.f32 %v1946, %v1974
    %v2017 = vadd.f32 %v1947, %v1994
    %v2018 = vxor.u32 %v2016, 2147483648
    %v2019 = vxor.u32 %v2017, 2147483648
    %v2020 = vmul.f32 %v2018, 1.442695
    %v2021 = vpow.pop %v2020
    %v2022 = vmul.f32 %v2019, 1.442695
    %v2023 = vpow.pop %v2022
    %v2024 = vadd.f32 %v2021, 1.0
    %v2025 = vadd.f32 %v2023, 1.0
    %v2026 = vrcp.pop %v2024
    %v2027 = vmul.f32 %v2024, %v2026
    %v2028 = vsub.f32 1.0, %v2027
    %v2029 = vmul.f32 %v2026, %v2028
    %v2030 = vadd.f32 %v2026, %v2029
    %vm2031 = vweird.f32 %v2024
    %vm2032 = vweird.f32 %v2026
    %vm2033 = vmor %vm2031, %vm2032
    %v2034 = vsel %vm2033, %v2026, %v2030
    %v2035 = vand.u32 2147483647, %v2024
    %vm2036 = vcmp.eq.f32.partialorder %v2035, 8.507059e+37
    %v2037 = vand.u32 %v2024, 2147483648
    %v2038 = vor.u32 1.1754944e-38, %v2037
    %v2039 = vsel %vm2036, %v2038, %v2034
    %v2040 = vmul.f32 1.0, %v2039
    %v2041 = vrcp.pop %v2025
    %v2042 = vmul.f32 %v2025, %v2041
    %v2043 = vsub.f32 1.0, %v2042
    %v2044 = vmul.f32 %v2041, %v2043
    %v2045 = vadd.f32 %v2041, %v2044
    %vm2046 = vweird.f32 %v2025
    %vm2047 = vweird.f32 %v2041
    %vm2048 = vmor %vm2046, %vm2047
    %v2049 = vsel %vm2048, %v2041, %v2045
    %v2050 = vand.u32 2147483647, %v2025
    %vm2051 = vcmp.eq.f32.partialorder %v2050, 8.507059e+37
    %v2052 = vand.u32 %v2025, 2147483648
    %v2053 = vor.u32 1.1754944e-38, %v2052
    %v2054 = vsel %vm2051, %v2053, %v2049
    %v2055 = vmul.f32 1.0, %v2054
    %v2056 = vmul.f32 %v2040, %v2014
    %v2057 = vadd.f32 %v1948, %v2056
    %v2058 = vtanh.pop %v2057
    %v2059 = vsub.f32 1.0, %v2055
    %v2060 = vmul.f32 %v2059, %v2058
    %v2061 = vmul.f32 %v2055, %v1788
    %v2062 = vadd.f32 %v2060, %v2061
    %v2063 = vadd.f32 %v636, %v1855
    %v2064 = vadd.f32 %v677, %v1875
    %v2065 = vadd.f32 %v718, %v1895
    %2066 = vmatpush.msra.mxu0 %v1942
    %2067 = vmatpush.msra.mxu0 %v1939
    %2068 = vmatpush.msra.mxu0 %v1936
    %2069 = vmatpush.msra.mxu0 %v1933
    %2070 = vmatpush.msra.mxu0 %v1930
    %2071 = vmatpush.msra.mxu0 %v1927
    %2072 = vmatpush.msra.mxu0 %v1924
    %2073 = vmatpush.msra.mxu0 %v1921
    %2074 = vmatpush.msra.mxu0 %v1918
    %2075 = vmatpush.msra.mxu0 %v1915
    %2076 = vmatpush.msra.mxu0 %v1912
    %2077 = vmatpush.msra.mxu0 %v1909
    %2078 = vmatpush.msra.mxu0 %v1906
    %2079 = vmatpush.msra.mxu0 %v1903
    %2080 = vmatpush.msra.mxu0 %v1900
    %2081 = vmatpush.msra.mxu0 %v1897
    %2082 = vmatmul.f32.gmra.mxu0 %v2062
    %v2083 = vpop.f32.mrf.mxu0
    %v2084 = vadd.f32 %v1950, %v2083
    %2085 = vdwg.mxu0
    %2086 = vmatpush.msra.mxu0 %v1943
    %2087 = vmatpush.msra.mxu0 %v1940
    %2088 = vmatpush.msra.mxu0 %v1937
    %2089 = vmatpush.msra.mxu0 %v1934
    %2090 = vmatpush.msra.mxu0 %v1931
    %2091 = vmatpush.msra.mxu0 %v1928
    %2092 = vmatpush.msra.mxu0 %v1925
    %2093 = vmatpush.msra.mxu0 %v1922
    %2094 = vmatpush.msra.mxu0 %v1919
    %2095 = vmatpush.msra.mxu0 %v1916
    %2096 = vmatpush.msra.mxu0 %v1913
    %2097 = vmatpush.msra.mxu0 %v1910
    %2098 = vmatpush.msra.mxu0 %v1907
    %2099 = vmatpush.msra.mxu0 %v1904
    %2100 = vmatpush.msra.mxu0 %v1901
    %2101 = vmatpush.msra.mxu0 %v1898
    %2102 = vmatmul.f32.gmra.mxu0 %v2062
    %v2103 = vpop.f32.mrf.mxu0
    %v2104 = vadd.f32 %v1951, %v2103
    %2105 = vdwg.mxu0
    %2106 = vmatpush.msra.mxu0 %v1944
    %2107 = vmatpush.msra.mxu0 %v1941
    %2108 = vmatpush.msra.mxu0 %v1938
    %2109 = vmatpush.msra.mxu0 %v1935
    %2110 = vmatpush.msra.mxu0 %v1932
    %2111 = vmatpush.msra.mxu0 %v1929
    %2112 = vmatpush.msra.mxu0 %v1926
    %2113 = vmatpush.msra.mxu0 %v1923
    %2114 = vmatpush.msra.mxu0 %v1920
    %2115 = vmatpush.msra.mxu0 %v1917
    %2116 = vmatpush.msra.mxu0 %v1914
    %2117 = vmatpush.msra.mxu0 %v1911
    %2118 = vmatpush.msra.mxu0 %v1908
    %2119 = vmatpush.msra.mxu0 %v1905
    %2120 = vmatpush.msra.mxu0 %v1902
    %2121 = vmatpush.msra.mxu0 %v1899
    %2122 = vmatmul.f32.gmra.mxu0 %v2062
    %v2123 = vpop.f32.mrf.mxu0
    %v2124 = vadd.f32 %v1952, %v2123
    %2125 = vdwg.mxu0
    %v2126 = vadd.f32 %v2063, %v2084
    %v2127 = vadd.f32 %v2064, %v2104
    %v2128 = vxor.u32 %v2126, 2147483648
    %v2129 = vxor.u32 %v2127, 2147483648
    %v2130 = vmul.f32 %v2128, 1.442695
    %v2131 = vpow.pop %v2130
    %v2132 = vmul.f32 %v2129, 1.442695
    %v2133 = vpow.pop %v2132
    %v2134 = vadd.f32 %v2131, 1.0
    %v2135 = vadd.f32 %v2133, 1.0
    %v2136 = vrcp.pop %v2134
    %v2137 = vmul.f32 %v2134, %v2136
    %v2138 = vsub.f32 1.0, %v2137
    %v2139 = vmul.f32 %v2136, %v2138
    %v2140 = vadd.f32 %v2136, %v2139
    %vm2141 = vweird.f32 %v2134
    %vm2142 = vweird.f32 %v2136
    %vm2143 = vmor %vm2141, %vm2142
    %v2144 = vsel %vm2143, %v2136, %v2140
    %v2145 = vand.u32 2147483647, %v2134
    %vm2146 = vcmp.eq.f32.partialorder %v2145, 8.507059e+37
    %v2147 = vand.u32 %v2134, 2147483648
    %v2148 = vor.u32 1.1754944e-38, %v2147
    %v2149 = vsel %vm2146, %v2148, %v2144
    %v2150 = vmul.f32 1.0, %v2149
    %v2151 = vrcp.pop %v2135
    %v2152 = vmul.f32 %v2135, %v2151
    %v2153 = vsub.f32 1.0, %v2152
    %v2154 = vmul.f32 %v2151, %v2153
    %v2155 = vadd.f32 %v2151, %v2154
    %vm2156 = vweird.f32 %v2135
    %vm2157 = vweird.f32 %v2151
    %vm2158 = vmor %vm2156, %vm2157
    %v2159 = vsel %vm2158, %v2151, %v2155
    %v2160 = vand.u32 2147483647, %v2135
    %vm2161 = vcmp.eq.f32.partialorder %v2160, 8.507059e+37
    %v2162 = vand.u32 %v2135, 2147483648
    %v2163 = vor.u32 1.1754944e-38, %v2162
    %v2164 = vsel %vm2161, %v2163, %v2159
    %v2165 = vmul.f32 1.0, %v2164
    %v2166 = vmul.f32 %v2150, %v2124
    %v2167 = vadd.f32 %v2065, %v2166
    %v2168 = vtanh.pop %v2167
    %v2169 = vsub.f32 1.0, %v2165
    %v2170 = vmul.f32 %v2169, %v2168
    %v2171 = vmul.f32 %v2165, %v2062
    %v2172 = vadd.f32 %v2170, %v2171
    %v2173 = vadd.f32 %v639, %v1855
    %v2174 = vadd.f32 %v680, %v1875
    %v2175 = vadd.f32 %v721, %v1895
    %2176 = vmatpush.msra.mxu0 %v1942
    %2177 = vmatpush.msra.mxu0 %v1939
    %2178 = vmatpush.msra.mxu0 %v1936
    %2179 = vmatpush.msra.mxu0 %v1933
    %2180 = vmatpush.msra.mxu0 %v1930
    %2181 = vmatpush.msra.mxu0 %v1927
    %2182 = vmatpush.msra.mxu0 %v1924
    %2183 = vmatpush.msra.mxu0 %v1921
    %2184 = vmatpush.msra.mxu0 %v1918
    %2185 = vmatpush.msra.mxu0 %v1915
    %2186 = vmatpush.msra.mxu0 %v1912
    %2187 = vmatpush.msra.mxu0 %v1909
    %2188 = vmatpush.msra.mxu0 %v1906
    %2189 = vmatpush.msra.mxu0 %v1903
    %2190 = vmatpush.msra.mxu0 %v1900
    %2191 = vmatpush.msra.mxu0 %v1897
    %2192 = vmatmul.f32.gmra.mxu0 %v2172
    %v2193 = vpop.f32.mrf.mxu0
    %v2194 = vadd.f32 %v1950, %v2193
    %2195 = vdwg.mxu0
    %2196 = vmatpush.msra.mxu0 %v1943
    %2197 = vmatpush.msra.mxu0 %v1940
    %2198 = vmatpush.msra.mxu0 %v1937
    %2199 = vmatpush.msra.mxu0 %v1934
    %2200 = vmatpush.msra.mxu0 %v1931
    %2201 = vmatpush.msra.mxu0 %v1928
    %2202 = vmatpush.msra.mxu0 %v1925
    %2203 = vmatpush.msra.mxu0 %v1922
    %2204 = vmatpush.msra.mxu0 %v1919
    %2205 = vmatpush.msra.mxu0 %v1916
    %2206 = vmatpush.msra.mxu0 %v1913
    %2207 = vmatpush.msra.mxu0 %v1910
    %2208 = vmatpush.msra.mxu0 %v1907
    %2209 = vmatpush.msra.mxu0 %v1904
    %2210 = vmatpush.msra.mxu0 %v1901
    %2211 = vmatpush.msra.mxu0 %v1898
    %2212 = vmatmul.f32.gmra.mxu0 %v2172
    %v2213 = vpop.f32.mrf.mxu0
    %v2214 = vadd.f32 %v1951, %v2213
    %2215 = vdwg.mxu0
    %2216 = vmatpush.msra.mxu0 %v1944
    %2217 = vmatpush.msra.mxu0 %v1941
    %2218 = vmatpush.msra.mxu0 %v1938
    %2219 = vmatpush.msra.mxu0 %v1935
    %2220 = vmatpush.msra.mxu0 %v1932
    %2221 = vmatpush.msra.mxu0 %v1929
    %2222 = vmatpush.msra.mxu0 %v1926
    %2223 = vmatpush.msra.mxu0 %v1923
    %2224 = vmatpush.msra.mxu0 %v1920
    %2225 = vmatpush.msra.mxu0 %v1917
    %2226 = vmatpush.msra.mxu0 %v1914
    %2227 = vmatpush.msra.mxu0 %v1911
    %2228 = vmatpush.msra.mxu0 %v1908
    %2229 = vmatpush.msra.mxu0 %v1905
    %2230 = vmatpush.msra.mxu0 %v1902
    %2231 = vmatpush.msra.mxu0 %v1899
    %2232 = vmatmul.f32.gmra.mxu0 %v2172
    %v2233 = vpop.f32.mrf.mxu0
    %v2234 = vadd.f32 %v1952, %v2233
    %2235 = vdwg.mxu0
    %v2236 = vadd.f32 %v2173, %v2194
    %v2237 = vadd.f32 %v2174, %v2214
    %v2238 = vxor.u32 %v2236, 2147483648
    %v2239 = vxor.u32 %v2237, 2147483648
    %v2240 = vmul.f32 %v2238, 1.442695
    %v2241 = vpow.pop %v2240
    %v2242 = vmul.f32 %v2239, 1.442695
    %v2243 = vpow.pop %v2242
    %v2244 = vadd.f32 %v2241, 1.0
    %v2245 = vadd.f32 %v2243, 1.0
    %v2246 = vrcp.pop %v2244
    %v2247 = vmul.f32 %v2244, %v2246
    %v2248 = vsub.f32 1.0, %v2247
    %v2249 = vmul.f32 %v2246, %v2248
    %v2250 = vadd.f32 %v2246, %v2249
    %vm2251 = vweird.f32 %v2244
    %vm2252 = vweird.f32 %v2246
    %vm2253 = vmor %vm2251, %vm2252
    %v2254 = vsel %vm2253, %v2246, %v2250
    %v2255 = vand.u32 2147483647, %v2244
    %vm2256 = vcmp.eq.f32.partialorder %v2255, 8.507059e+37
    %v2257 = vand.u32 %v2244, 2147483648
    %v2258 = vor.u32 1.1754944e-38, %v2257
    %v2259 = vsel %vm2256, %v2258, %v2254
    %v2260 = vmul.f32 1.0, %v2259
    %v2261 = vrcp.pop %v2245
    %v2262 = vmul.f32 %v2245, %v2261
    %v2263 = vsub.f32 1.0, %v2262
    %v2264 = vmul.f32 %v2261, %v2263
    %v2265 = vadd.f32 %v2261, %v2264
    %vm2266 = vweird.f32 %v2245
    %vm2267 = vweird.f32 %v2261
    %vm2268 = vmor %vm2266, %vm2267
    %v2269 = vsel %vm2268, %v2261, %v2265
    %v2270 = vand.u32 2147483647, %v2245
    %vm2271 = vcmp.eq.f32.partialorder %v2270, 8.507059e+37
    %v2272 = vand.u32 %v2245, 2147483648
    %v2273 = vor.u32 1.1754944e-38, %v2272
    %v2274 = vsel %vm2271, %v2273, %v2269
    %v2275 = vmul.f32 1.0, %v2274
    %v2276 = vmul.f32 %v2260, %v2234
    %v2277 = vadd.f32 %v2175, %v2276
    %v2278 = vtanh.pop %v2277
    %v2279 = vsub.f32 1.0, %v2275
    %v2280 = vmul.f32 %v2279, %v2278
    %v2281 = vmul.f32 %v2275, %v2172
    %v2282 = vadd.f32 %v2280, %v2281
    %v2283 = vadd.f32 %v642, %v1855
    %v2284 = vadd.f32 %v683, %v1875
    %v2285 = vadd.f32 %v724, %v1895
    %2286 = vmatpush.msra.mxu0 %v1942
    %2287 = vmatpush.msra.mxu0 %v1939
    %2288 = vmatpush.msra.mxu0 %v1936
    %2289 = vmatpush.msra.mxu0 %v1933
    %2290 = vmatpush.msra.mxu0 %v1930
    %2291 = vmatpush.msra.mxu0 %v1927
    %2292 = vmatpush.msra.mxu0 %v1924
    %2293 = vmatpush.msra.mxu0 %v1921
    %2294 = vmatpush.msra.mxu0 %v1918
    %2295 = vmatpush.msra.mxu0 %v1915
    %2296 = vmatpush.msra.mxu0 %v1912
    %2297 = vmatpush.msra.mxu0 %v1909
    %2298 = vmatpush.msra.mxu0 %v1906
    %2299 = vmatpush.msra.mxu0 %v1903
    %2300 = vmatpush.msra.mxu0 %v1900
    %2301 = vmatpush.msra.mxu0 %v1897
    %2302 = vmatmul.f32.gmra.mxu0 %v2282
    %v2303 = vpop.f32.mrf.mxu0
    %v2304 = vadd.f32 %v1950, %v2303
    %2305 = vdwg.mxu0
    %2306 = vmatpush.msra.mxu0 %v1943
    %2307 = vmatpush.msra.mxu0 %v1940
    %2308 = vmatpush.msra.mxu0 %v1937
    %2309 = vmatpush.msra.mxu0 %v1934
    %2310 = vmatpush.msra.mxu0 %v1931
    %2311 = vmatpush.msra.mxu0 %v1928
    %2312 = vmatpush.msra.mxu0 %v1925
    %2313 = vmatpush.msra.mxu0 %v1922
    %2314 = vmatpush.msra.mxu0 %v1919
    %2315 = vmatpush.msra.mxu0 %v1916
    %2316 = vmatpush.msra.mxu0 %v1913
    %2317 = vmatpush.msra.mxu0 %v1910
    %2318 = vmatpush.msra.mxu0 %v1907
    %2319 = vmatpush.msra.mxu0 %v1904
    %2320 = vmatpush.msra.mxu0 %v1901
    %2321 = vmatpush.msra.mxu0 %v1898
    %2322 = vmatmul.f32.gmra.mxu0 %v2282
    %v2323 = vpop.f32.mrf.mxu0
    %v2324 = vadd.f32 %v1951, %v2323
    %2325 = vdwg.mxu0
    %2326 = vmatpush.msra.mxu0 %v1944
    %2327 = vmatpush.msra.mxu0 %v1941
    %2328 = vmatpush.msra.mxu0 %v1938
    %2329 = vmatpush.msra.mxu0 %v1935
    %2330 = vmatpush.msra.mxu0 %v1932
    %2331 = vmatpush.msra.mxu0 %v1929
    %2332 = vmatpush.msra.mxu0 %v1926
    %2333 = vmatpush.msra.mxu0 %v1923
    %2334 = vmatpush.msra.mxu0 %v1920
    %2335 = vmatpush.msra.mxu0 %v1917
    %2336 = vmatpush.msra.mxu0 %v1914
    %2337 = vmatpush.msra.mxu0 %v1911
    %2338 = vmatpush.msra.mxu0 %v1908
    %2339 = vmatpush.msra.mxu0 %v1905
    %2340 = vmatpush.msra.mxu0 %v1902
    %2341 = vmatpush.msra.mxu0 %v1899
    %2342 = vmatmul.f32.gmra.mxu0 %v2282
    %v2343 = vpop.f32.mrf.mxu0
    %v2344 = vadd.f32 %v1952, %v2343
    %2345 = vdwg.mxu0
    %v2346 = vadd.f32 %v2283, %v2304
    %v2347 = vadd.f32 %v2284, %v2324
    %v2348 = vxor.u32 %v2346, 2147483648
    %v2349 = vxor.u32 %v2347, 2147483648
    %v2350 = vmul.f32 %v2348, 1.442695
    %v2351 = vpow.pop %v2350
    %v2352 = vmul.f32 %v2349, 1.442695
    %v2353 = vpow.pop %v2352
    %v2354 = vadd.f32 %v2351, 1.0
    %v2355 = vadd.f32 %v2353, 1.0
    %v2356 = vrcp.pop %v2354
    %v2357 = vmul.f32 %v2354, %v2356
    %v2358 = vsub.f32 1.0, %v2357
    %v2359 = vmul.f32 %v2356, %v2358
    %v2360 = vadd.f32 %v2356, %v2359
    %vm2361 = vweird.f32 %v2354
    %vm2362 = vweird.f32 %v2356
    %vm2363 = vmor %vm2361, %vm2362
    %v2364 = vsel %vm2363, %v2356, %v2360
    %v2365 = vand.u32 2147483647, %v2354
    %vm2366 = vcmp.eq.f32.partialorder %v2365, 8.507059e+37
    %v2367 = vand.u32 %v2354, 2147483648
    %v2368 = vor.u32 1.1754944e-38, %v2367
    %v2369 = vsel %vm2366, %v2368, %v2364
    %v2370 = vmul.f32 1.0, %v2369
    %v2371 = vrcp.pop %v2355
    %v2372 = vmul.f32 %v2355, %v2371
    %v2373 = vsub.f32 1.0, %v2372
    %v2374 = vmul.f32 %v2371, %v2373
    %v2375 = vadd.f32 %v2371, %v2374
    %vm2376 = vweird.f32 %v2355
    %vm2377 = vweird.f32 %v2371
    %vm2378 = vmor %vm2376, %vm2377
    %v2379 = vsel %vm2378, %v2371, %v2375
    %v2380 = vand.u32 2147483647, %v2355
    %vm2381 = vcmp.eq.f32.partialorder %v2380, 8.507059e+37
    %v2382 = vand.u32 %v2355, 2147483648
    %v2383 = vor.u32 1.1754944e-38, %v2382
    %v2384 = vsel %vm2381, %v2383, %v2379
    %v2385 = vmul.f32 1.0, %v2384
    %v2386 = vmul.f32 %v2370, %v2344
    %v2387 = vadd.f32 %v2285, %v2386
    %v2388 = vtanh.pop %v2387
    %v2389 = vsub.f32 1.0, %v2385
    %v2390 = vmul.f32 %v2389, %v2388
    %v2391 = vmul.f32 %v2385, %v2282
    %v2392 = vadd.f32 %v2390, %v2391
    %v2393 = vadd.f32 %v645, %v1855
    %v2394 = vadd.f32 %v686, %v1875
    %v2395 = vadd.f32 %v727, %v1895
    %2396 = vmatpush.msra.mxu0 %v1942
    %2397 = vmatpush.msra.mxu0 %v1939
    %2398 = vmatpush.msra.mxu0 %v1936
    %2399 = vmatpush.msra.mxu0 %v1933
    %2400 = vmatpush.msra.mxu0 %v1930
    %2401 = vmatpush.msra.mxu0 %v1927
    %2402 = vmatpush.msra.mxu0 %v1924
    %2403 = vmatpush.msra.mxu0 %v1921
    %2404 = vmatpush.msra.mxu0 %v1918
    %2405 = vmatpush.msra.mxu0 %v1915
    %2406 = vmatpush.msra.mxu0 %v1912
    %2407 = vmatpush.msra.mxu0 %v1909
    %2408 = vmatpush.msra.mxu0 %v1906
    %2409 = vmatpush.msra.mxu0 %v1903
    %2410 = vmatpush.msra.mxu0 %v1900
    %2411 = vmatpush.msra.mxu0 %v1897
    %2412 = vmatmul.f32.gmra.mxu0 %v2392
    %v2413 = vpop.f32.mrf.mxu0
    %v2414 = vadd.f32 %v1950, %v2413
    %2415 = vdwg.mxu0
    %2416 = vmatpush.msra.mxu0 %v1943
    %2417 = vmatpush.msra.mxu0 %v1940
    %2418 = vmatpush.msra.mxu0 %v1937
    %2419 = vmatpush.msra.mxu0 %v1934
    %2420 = vmatpush.msra.mxu0 %v1931
    %2421 = vmatpush.msra.mxu0 %v1928
    %2422 = vmatpush.msra.mxu0 %v1925
    %2423 = vmatpush.msra.mxu0 %v1922
    %2424 = vmatpush.msra.mxu0 %v1919
    %2425 = vmatpush.msra.mxu0 %v1916
    %2426 = vmatpush.msra.mxu0 %v1913
    %2427 = vmatpush.msra.mxu0 %v1910
    %2428 = vmatpush.msra.mxu0 %v1907
    %2429 = vmatpush.msra.mxu0 %v1904
    %2430 = vmatpush.msra.mxu0 %v1901
    %2431 = vmatpush.msra.mxu0 %v1898
    %2432 = vmatmul.f32.gmra.mxu0 %v2392
    %v2433 = vpop.f32.mrf.mxu0
    %v2434 = vadd.f32 %v1951, %v2433
    %2435 = vdwg.mxu0
    %2436 = vmatpush.msra.mxu0 %v1944
    %2437 = vmatpush.msra.mxu0 %v1941
    %2438 = vmatpush.msra.mxu0 %v1938
    %2439 = vmatpush.msra.mxu0 %v1935
    %2440 = vmatpush.msra.mxu0 %v1932
    %2441 = vmatpush.msra.mxu0 %v1929
    %2442 = vmatpush.msra.mxu0 %v1926
    %2443 = vmatpush.msra.mxu0 %v1923
    %2444 = vmatpush.msra.mxu0 %v1920
    %2445 = vmatpush.msra.mxu0 %v1917
    %2446 = vmatpush.msra.mxu0 %v1914
    %2447 = vmatpush.msra.mxu0 %v1911
    %2448 = vmatpush.msra.mxu0 %v1908
    %2449 = vmatpush.msra.mxu0 %v1905
    %2450 = vmatpush.msra.mxu0 %v1902
    %2451 = vmatpush.msra.mxu0 %v1899
    %2452 = vmatmul.f32.gmra.mxu0 %v2392
    %v2453 = vpop.f32.mrf.mxu0
    %v2454 = vadd.f32 %v1952, %v2453
    %2455 = vdwg.mxu0
    %v2456 = vadd.f32 %v2393, %v2414
    %v2457 = vadd.f32 %v2394, %v2434
    %v2458 = vxor.u32 %v2456, 2147483648
    %v2459 = vxor.u32 %v2457, 2147483648
    %v2460 = vmul.f32 %v2458, 1.442695
    %v2461 = vpow.pop %v2460
    %v2462 = vmul.f32 %v2459, 1.442695
    %v2463 = vpow.pop %v2462
    %v2464 = vadd.f32 %v2461, 1.0
    %v2465 = vadd.f32 %v2463, 1.0
    %v2466 = vrcp.pop %v2464
    %v2467 = vmul.f32 %v2464, %v2466
    %v2468 = vsub.f32 1.0, %v2467
    %v2469 = vmul.f32 %v2466, %v2468
    %v2470 = vadd.f32 %v2466, %v2469
    %vm2471 = vweird.f32 %v2464
    %vm2472 = vweird.f32 %v2466
    %vm2473 = vmor %vm2471, %vm2472
    %v2474 = vsel %vm2473, %v2466, %v2470
    %v2475 = vand.u32 2147483647, %v2464
    %vm2476 = vcmp.eq.f32.partialorder %v2475, 8.507059e+37
    %v2477 = vand.u32 %v2464, 2147483648
    %v2478 = vor.u32 1.1754944e-38, %v2477
    %v2479 = vsel %vm2476, %v2478, %v2474
    %v2480 = vmul.f32 1.0, %v2479
    %v2481 = vrcp.pop %v2465
    %v2482 = vmul.f32 %v2465, %v2481
    %v2483 = vsub.f32 1.0, %v2482
    %v2484 = vmul.f32 %v2481, %v2483
    %v2485 = vadd.f32 %v2481, %v2484
    %vm2486 = vweird.f32 %v2465
    %vm2487 = vweird.f32 %v2481
    %vm2488 = vmor %vm2486, %vm2487
    %v2489 = vsel %vm2488, %v2481, %v2485
    %v2490 = vand.u32 2147483647, %v2465
    %vm2491 = vcmp.eq.f32.partialorder %v2490, 8.507059e+37
    %v2492 = vand.u32 %v2465, 2147483648
    %v2493 = vor.u32 1.1754944e-38, %v2492
    %v2494 = vsel %vm2491, %v2493, %v2489
    %v2495 = vmul.f32 1.0, %v2494
    %v2496 = vmul.f32 %v2480, %v2454
    %v2497 = vadd.f32 %v2395, %v2496
    %v2498 = vtanh.pop %v2497
    %v2499 = vsub.f32 1.0, %v2495
    %v2500 = vmul.f32 %v2499, %v2498
    %v2501 = vmul.f32 %v2495, %v2392
    %v2502 = vadd.f32 %v2500, %v2501
    %v2503 = vadd.f32 %v648, %v1855
    %v2504 = vadd.f32 %v689, %v1875
    %v2505 = vadd.f32 %v730, %v1895
    %2506 = vmatpush.msra.mxu0 %v1942
    %2507 = vmatpush.msra.mxu0 %v1939
    %2508 = vmatpush.msra.mxu0 %v1936
    %2509 = vmatpush.msra.mxu0 %v1933
    %2510 = vmatpush.msra.mxu0 %v1930
    %2511 = vmatpush.msra.mxu0 %v1927
    %2512 = vmatpush.msra.mxu0 %v1924
    %2513 = vmatpush.msra.mxu0 %v1921
    %2514 = vmatpush.msra.mxu0 %v1918
    %2515 = vmatpush.msra.mxu0 %v1915
    %2516 = vmatpush.msra.mxu0 %v1912
    %2517 = vmatpush.msra.mxu0 %v1909
    %2518 = vmatpush.msra.mxu0 %v1906
    %2519 = vmatpush.msra.mxu0 %v1903
    %2520 = vmatpush.msra.mxu0 %v1900
    %2521 = vmatpush.msra.mxu0 %v1897
    %2522 = vmatmul.f32.gmra.mxu0 %v2502
    %v2523 = vpop.f32.mrf.mxu0
    %v2524 = vadd.f32 %v1950, %v2523
    %2525 = vdwg.mxu0
    %2526 = vmatpush.msra.mxu0 %v1943
    %2527 = vmatpush.msra.mxu0 %v1940
    %2528 = vmatpush.msra.mxu0 %v1937
    %2529 = vmatpush.msra.mxu0 %v1934
    %2530 = vmatpush.msra.mxu0 %v1931
    %2531 = vmatpush.msra.mxu0 %v1928
    %2532 = vmatpush.msra.mxu0 %v1925
    %2533 = vmatpush.msra.mxu0 %v1922
    %2534 = vmatpush.msra.mxu0 %v1919
    %2535 = vmatpush.msra.mxu0 %v1916
    %2536 = vmatpush.msra.mxu0 %v1913
    %2537 = vmatpush.msra.mxu0 %v1910
    %2538 = vmatpush.msra.mxu0 %v1907
    %2539 = vmatpush.msra.mxu0 %v1904
    %2540 = vmatpush.msra.mxu0 %v1901
    %2541 = vmatpush.msra.mxu0 %v1898
    %2542 = vmatmul.f32.gmra.mxu0 %v2502
    %v2543 = vpop.f32.mrf.mxu0
    %v2544 = vadd.f32 %v1951, %v2543
    %2545 = vdwg.mxu0
    %2546 = vmatpush.msra.mxu0 %v1944
    %2547 = vmatpush.msra.mxu0 %v1941
    %2548 = vmatpush.msra.mxu0 %v1938
    %2549 = vmatpush.msra.mxu0 %v1935
    %2550 = vmatpush.msra.mxu0 %v1932
    %2551 = vmatpush.msra.mxu0 %v1929
    %2552 = vmatpush.msra.mxu0 %v1926
    %2553 = vmatpush.msra.mxu0 %v1923
    %2554 = vmatpush.msra.mxu0 %v1920
    %2555 = vmatpush.msra.mxu0 %v1917
    %2556 = vmatpush.msra.mxu0 %v1914
    %2557 = vmatpush.msra.mxu0 %v1911
    %2558 = vmatpush.msra.mxu0 %v1908
    %2559 = vmatpush.msra.mxu0 %v1905
    %2560 = vmatpush.msra.mxu0 %v1902
    %2561 = vmatpush.msra.mxu0 %v1899
    %2562 = vmatmul.f32.gmra.mxu0 %v2502
    %v2563 = vpop.f32.mrf.mxu0
    %v2564 = vadd.f32 %v1952, %v2563
    %2565 = vdwg.mxu0
    %v2566 = vadd.f32 %v2503, %v2524
    %v2567 = vadd.f32 %v2504, %v2544
    %v2568 = vxor.u32 %v2566, 2147483648
    %v2569 = vxor.u32 %v2567, 2147483648
    %v2570 = vmul.f32 %v2568, 1.442695
    %v2571 = vpow.pop %v2570
    %v2572 = vmul.f32 %v2569, 1.442695
    %v2573 = vpow.pop %v2572
    %v2574 = vadd.f32 %v2571, 1.0
    %v2575 = vadd.f32 %v2573, 1.0
    %v2576 = vrcp.pop %v2574
    %v2577 = vmul.f32 %v2574, %v2576
    %v2578 = vsub.f32 1.0, %v2577
    %v2579 = vmul.f32 %v2576, %v2578
    %v2580 = vadd.f32 %v2576, %v2579
    %vm2581 = vweird.f32 %v2574
    %vm2582 = vweird.f32 %v2576
    %vm2583 = vmor %vm2581, %vm2582
    %v2584 = vsel %vm2583, %v2576, %v2580
    %v2585 = vand.u32 2147483647, %v2574
    %vm2586 = vcmp.eq.f32.partialorder %v2585, 8.507059e+37
    %v2587 = vand.u32 %v2574, 2147483648
    %v2588 = vor.u32 1.1754944e-38, %v2587
    %v2589 = vsel %vm2586, %v2588, %v2584
    %v2590 = vmul.f32 1.0, %v2589
    %v2591 = vrcp.pop %v2575
    %v2592 = vmul.f32 %v2575, %v2591
    %v2593 = vsub.f32 1.0, %v2592
    %v2594 = vmul.f32 %v2591, %v2593
    %v2595 = vadd.f32 %v2591, %v2594
    %vm2596 = vweird.f32 %v2575
    %vm2597 = vweird.f32 %v2591
    %vm2598 = vmor %vm2596, %vm2597
    %v2599 = vsel %vm2598, %v2591, %v2595
    %v2600 = vand.u32 2147483647, %v2575
    %vm2601 = vcmp.eq.f32.partialorder %v2600, 8.507059e+37
    %v2602 = vand.u32 %v2575, 2147483648
    %v2603 = vor.u32 1.1754944e-38, %v2602
    %v2604 = vsel %vm2601, %v2603, %v2599
    %v2605 = vmul.f32 1.0, %v2604
    %v2606 = vmul.f32 %v2590, %v2564
    %v2607 = vadd.f32 %v2505, %v2606
    %v2608 = vtanh.pop %v2607
    %v2609 = vsub.f32 1.0, %v2605
    %v2610 = vmul.f32 %v2609, %v2608
    %v2611 = vmul.f32 %v2605, %v2502
    %v2612 = vadd.f32 %v2610, %v2611
    %v2613 = vadd.f32 %v651, %v1855
    %v2614 = vadd.f32 %v692, %v1875
    %v2615 = vadd.f32 %v733, %v1895
    %2616 = vmatpush.msra.mxu0 %v1942
    %2617 = vmatpush.msra.mxu0 %v1939
    %2618 = vmatpush.msra.mxu0 %v1936
    %2619 = vmatpush.msra.mxu0 %v1933
    %2620 = vmatpush.msra.mxu0 %v1930
    %2621 = vmatpush.msra.mxu0 %v1927
    %2622 = vmatpush.msra.mxu0 %v1924
    %2623 = vmatpush.msra.mxu0 %v1921
    %2624 = vmatpush.msra.mxu0 %v1918
    %2625 = vmatpush.msra.mxu0 %v1915
    %2626 = vmatpush.msra.mxu0 %v1912
    %2627 = vmatpush.msra.mxu0 %v1909
    %2628 = vmatpush.msra.mxu0 %v1906
    %2629 = vmatpush.msra.mxu0 %v1903
    %2630 = vmatpush.msra.mxu0 %v1900
    %2631 = vmatpush.msra.mxu0 %v1897
    %2632 = vmatmul.f32.gmra.mxu0 %v2612
    %v2633 = vpop.f32.mrf.mxu0
    %v2634 = vadd.f32 %v1950, %v2633
    %2635 = vdwg.mxu0
    %2636 = vmatpush.msra.mxu0 %v1943
    %2637 = vmatpush.msra.mxu0 %v1940
    %2638 = vmatpush.msra.mxu0 %v1937
    %2639 = vmatpush.msra.mxu0 %v1934
    %2640 = vmatpush.msra.mxu0 %v1931
    %2641 = vmatpush.msra.mxu0 %v1928
    %2642 = vmatpush.msra.mxu0 %v1925
    %2643 = vmatpush.msra.mxu0 %v1922
    %2644 = vmatpush.msra.mxu0 %v1919
    %2645 = vmatpush.msra.mxu0 %v1916
    %2646 = vmatpush.msra.mxu0 %v1913
    %2647 = vmatpush.msra.mxu0 %v1910
    %2648 = vmatpush.msra.mxu0 %v1907
    %2649 = vmatpush.msra.mxu0 %v1904
    %2650 = vmatpush.msra.mxu0 %v1901
    %2651 = vmatpush.msra.mxu0 %v1898
    %2652 = vmatmul.f32.gmra.mxu0 %v2612
    %v2653 = vpop.f32.mrf.mxu0
    %v2654 = vadd.f32 %v1951, %v2653
    %2655 = vdwg.mxu0
    %2656 = vmatpush.msra.mxu0 %v1944
    %2657 = vmatpush.msra.mxu0 %v1941
    %2658 = vmatpush.msra.mxu0 %v1938
    %2659 = vmatpush.msra.mxu0 %v1935
    %2660 = vmatpush.msra.mxu0 %v1932
    %2661 = vmatpush.msra.mxu0 %v1929
    %2662 = vmatpush.msra.mxu0 %v1926
    %2663 = vmatpush.msra.mxu0 %v1923
    %2664 = vmatpush.msra.mxu0 %v1920
    %2665 = vmatpush.msra.mxu0 %v1917
    %2666 = vmatpush.msra.mxu0 %v1914
    %2667 = vmatpush.msra.mxu0 %v1911
    %2668 = vmatpush.msra.mxu0 %v1908
    %2669 = vmatpush.msra.mxu0 %v1905
    %2670 = vmatpush.msra.mxu0 %v1902
    %2671 = vmatpush.msra.mxu0 %v1899
    %2672 = vmatmul.f32.gmra.mxu0 %v2612
    %v2673 = vpop.f32.mrf.mxu0
    %v2674 = vadd.f32 %v1952, %v2673
    %2675 = vdwg.mxu0
    %v2676 = vadd.f32 %v2613, %v2634
    %v2677 = vadd.f32 %v2614, %v2654
    %v2678 = vxor.u32 %v2676, 2147483648
    %v2679 = vxor.u32 %v2677, 2147483648
    %v2680 = vmul.f32 %v2678, 1.442695
    %v2681 = vpow.pop %v2680
    %v2682 = vmul.f32 %v2679, 1.442695
    %v2683 = vpow.pop %v2682
    %v2684 = vadd.f32 %v2681, 1.0
    %v2685 = vadd.f32 %v2683, 1.0
    %v2686 = vrcp.pop %v2684
    %v2687 = vmul.f32 %v2684, %v2686
    %v2688 = vsub.f32 1.0, %v2687
    %v2689 = vmul.f32 %v2686, %v2688
    %v2690 = vadd.f32 %v2686, %v2689
    %vm2691 = vweird.f32 %v2684
    %vm2692 = vweird.f32 %v2686
    %vm2693 = vmor %vm2691, %vm2692
    %v2694 = vsel %vm2693, %v2686, %v2690
    %v2695 = vand.u32 2147483647, %v2684
    %vm2696 = vcmp.eq.f32.partialorder %v2695, 8.507059e+37
    %v2697 = vand.u32 %v2684, 2147483648
    %v2698 = vor.u32 1.1754944e-38, %v2697
    %v2699 = vsel %vm2696, %v2698, %v2694
    %v2700 = vmul.f32 1.0, %v2699
    %v2701 = vrcp.pop %v2685
    %v2702 = vmul.f32 %v2685, %v2701
    %v2703 = vsub.f32 1.0, %v2702
    %v2704 = vmul.f32 %v2701, %v2703
    %v2705 = vadd.f32 %v2701, %v2704
    %vm2706 = vweird.f32 %v2685
    %vm2707 = vweird.f32 %v2701
    %vm2708 = vmor %vm2706, %vm2707
    %v2709 = vsel %vm2708, %v2701, %v2705
    %v2710 = vand.u32 2147483647, %v2685
    %vm2711 = vcmp.eq.f32.partialorder %v2710, 8.507059e+37
    %v2712 = vand.u32 %v2685, 2147483648
    %v2713 = vor.u32 1.1754944e-38, %v2712
    %v2714 = vsel %vm2711, %v2713, %v2709
    %v2715 = vmul.f32 1.0, %v2714
    %v2716 = vmul.f32 %v2700, %v2674
    %v2717 = vadd.f32 %v2615, %v2716
    %v2718 = vtanh.pop %v2717
    %v2719 = vsub.f32 1.0, %v2715
    %v2720 = vmul.f32 %v2719, %v2718
    %v2721 = vmul.f32 %v2715, %v2612
    %v2722 = vadd.f32 %v2720, %v2721
    %v2723 = vadd.f32 %v654, %v1855
    %v2724 = vadd.f32 %v695, %v1875
    %v2725 = vadd.f32 %v736, %v1895
    %2726 = vmatpush.msra.mxu0 %v1942
    %2727 = vmatpush.msra.mxu0 %v1939
    %2728 = vmatpush.msra.mxu0 %v1936
    %2729 = vmatpush.msra.mxu0 %v1933
    %2730 = vmatpush.msra.mxu0 %v1930
    %2731 = vmatpush.msra.mxu0 %v1927
    %2732 = vmatpush.msra.mxu0 %v1924
    %2733 = vmatpush.msra.mxu0 %v1921
    %2734 = vmatpush.msra.mxu0 %v1918
    %2735 = vmatpush.msra.mxu0 %v1915
    %2736 = vmatpush.msra.mxu0 %v1912
    %2737 = vmatpush.msra.mxu0 %v1909
    %2738 = vmatpush.msra.mxu0 %v1906
    %2739 = vmatpush.msra.mxu0 %v1903
    %2740 = vmatpush.msra.mxu0 %v1900
    %2741 = vmatpush.msra.mxu0 %v1897
    %2742 = vmatmul.f32.gmra.mxu0 %v2722
    %v2743 = vpop.f32.mrf.mxu0
    %v2744 = vadd.f32 %v1950, %v2743
    %2745 = vdwg.mxu0
    %2746 = vmatpush.msra.mxu0 %v1943
    %2747 = vmatpush.msra.mxu0 %v1940
    %2748 = vmatpush.msra.mxu0 %v1937
    %2749 = vmatpush.msra.mxu0 %v1934
    %2750 = vmatpush.msra.mxu0 %v1931
    %2751 = vmatpush.msra.mxu0 %v1928
    %2752 = vmatpush.msra.mxu0 %v1925
    %2753 = vmatpush.msra.mxu0 %v1922
    %2754 = vmatpush.msra.mxu0 %v1919
    %2755 = vmatpush.msra.mxu0 %v1916
    %2756 = vmatpush.msra.mxu0 %v1913
    %2757 = vmatpush.msra.mxu0 %v1910
    %2758 = vmatpush.msra.mxu0 %v1907
    %2759 = vmatpush.msra.mxu0 %v1904
    %2760 = vmatpush.msra.mxu0 %v1901
    %2761 = vmatpush.msra.mxu0 %v1898
    %2762 = vmatmul.f32.gmra.mxu0 %v2722
    %v2763 = vpop.f32.mrf.mxu0
    %v2764 = vadd.f32 %v1951, %v2763
    %2765 = vdwg.mxu0
    %2766 = vmatpush.msra.mxu0 %v1944
    %2767 = vmatpush.msra.mxu0 %v1941
    %2768 = vmatpush.msra.mxu0 %v1938
    %2769 = vmatpush.msra.mxu0 %v1935
    %2770 = vmatpush.msra.mxu0 %v1932
    %2771 = vmatpush.msra.mxu0 %v1929
    %2772 = vmatpush.msra.mxu0 %v1926
    %2773 = vmatpush.msra.mxu0 %v1923
    %2774 = vmatpush.msra.mxu0 %v1920
    %2775 = vmatpush.msra.mxu0 %v1917
    %2776 = vmatpush.msra.mxu0 %v1914
    %2777 = vmatpush.msra.mxu0 %v1911
    %2778 = vmatpush.msra.mxu0 %v1908
    %2779 = vmatpush.msra.mxu0 %v1905
    %2780 = vmatpush.msra.mxu0 %v1902
    %2781 = vmatpush.msra.mxu0 %v1899
    %2782 = vmatmul.f32.gmra.mxu0 %v2722
    %v2783 = vpop.f32.mrf.mxu0
    %v2784 = vadd.f32 %v1952, %v2783
    %2785 = vdwg.mxu0
    %v2786 = vadd.f32 %v2723, %v2744
    %v2787 = vadd.f32 %v2724, %v2764
    %v2788 = vxor.u32 %v2786, 2147483648
    %v2789 = vxor.u32 %v2787, 2147483648
    %v2790 = vmul.f32 %v2788, 1.442695
    %v2791 = vpow.pop %v2790
    %v2792 = vmul.f32 %v2789, 1.442695
    %v2793 = vpow.pop %v2792
    %v2794 = vadd.f32 %v2791, 1.0
    %v2795 = vadd.f32 %v2793, 1.0
    %v2796 = vrcp.pop %v2794
    %v2797 = vmul.f32 %v2794, %v2796
    %v2798 = vsub.f32 1.0, %v2797
    %v2799 = vmul.f32 %v2796, %v2798
    %v2800 = vadd.f32 %v2796, %v2799
    %vm2801 = vweird.f32 %v2794
    %vm2802 = vweird.f32 %v2796
    %vm2803 = vmor %vm2801, %vm2802
    %v2804 = vsel %vm2803, %v2796, %v2800
    %v2805 = vand.u32 2147483647, %v2794
    %vm2806 = vcmp.eq.f32.partialorder %v2805, 8.507059e+37
    %v2807 = vand.u32 %v2794, 2147483648
    %v2808 = vor.u32 1.1754944e-38, %v2807
    %v2809 = vsel %vm2806, %v2808, %v2804
    %v2810 = vmul.f32 1.0, %v2809
    %v2811 = vrcp.pop %v2795
    %v2812 = vmul.f32 %v2795, %v2811
    %v2813 = vsub.f32 1.0, %v2812
    %v2814 = vmul.f32 %v2811, %v2813
    %v2815 = vadd.f32 %v2811, %v2814
    %vm2816 = vweird.f32 %v2795
    %vm2817 = vweird.f32 %v2811
    %vm2818 = vmor %vm2816, %vm2817
    %v2819 = vsel %vm2818, %v2811, %v2815
    %v2820 = vand.u32 2147483647, %v2795
    %vm2821 = vcmp.eq.f32.partialorder %v2820, 8.507059e+37
    %v2822 = vand.u32 %v2795, 2147483648
    %v2823 = vor.u32 1.1754944e-38, %v2822
    %v2824 = vsel %vm2821, %v2823, %v2819
    %v2825 = vmul.f32 1.0, %v2824
    %v2826 = vmul.f32 %v2810, %v2784
    %v2827 = vadd.f32 %v2725, %v2826
    %v2828 = vtanh.pop %v2827
    %v2829 = vsub.f32 1.0, %v2825
    %v2830 = vmul.f32 %v2829, %v2828
    %v2831 = vmul.f32 %v2825, %v2722
    %v2832 = vadd.f32 %v2830, %v2831
    %v2833 = vld [vmem:[#allocation2 + $0x88] sm:$0xff]
    %v2834 = vld [vmem:[#allocation2 + $0x90] sm:$0xff]
    %v2835 = vld [vmem:[#allocation2 + $0x130] sm:$0xff]
    %v2836 = vld [vmem:[#allocation2 + $0x138] sm:$0xff]
    %v2837 = vld [vmem:[#allocation2 + $0x1d8] sm:$0xff]
    %v2838 = vld [vmem:[#allocation2 + $0x1e0] sm:$0xff]
    %v2839 = vld [vmem:[#allocation2 + $0x280] sm:$0xff]
    %v2840 = vld [vmem:[#allocation2 + $0x288] sm:$0xff]
    %v2841 = vld [vmem:[#allocation2 + $0x328] sm:$0xff]
    %v2842 = vld [vmem:[#allocation2 + $0x330] sm:$0xff]
    %v2843 = vld [vmem:[#allocation2 + $0x3d0] sm:$0xff]
    %v2844 = vld [vmem:[#allocation2 + $0x3d8] sm:$0xff]
    %v2845 = vld [vmem:[#allocation2 + $0x478] sm:$0xff]
    %v2846 = vld [vmem:[#allocation2 + $0x480] sm:$0xff]
    %v2847 = vld [vmem:[#allocation2 + $0x520] sm:$0xff]
    %v2848 = vld [vmem:[#allocation2 + $0x528] sm:$0xff]
    %v2849 = vld [vmem:[#allocation2 + $0x5c8] sm:$0xff]
    %v2850 = vld [vmem:[#allocation2 + $0x5d0] sm:$0xff]
    %v2851 = vld [vmem:[#allocation2 + $0x670] sm:$0xff]
    %v2852 = vld [vmem:[#allocation2 + $0x678] sm:$0xff]
    %v2853 = vld [vmem:[#allocation2 + $0x718] sm:$0xff]
    %v2854 = vld [vmem:[#allocation2 + $0x720] sm:$0xff]
    %v2855 = vld [vmem:[#allocation2 + $0x7c0] sm:$0xff]
    %v2856 = vld [vmem:[#allocation2 + $0x7c8] sm:$0xff]
    %v2857 = vld [vmem:[#allocation2 + $0x868] sm:$0xff]
    %v2858 = vld [vmem:[#allocation2 + $0x870] sm:$0xff]
    %v2859 = vld [vmem:[#allocation2 + $0x910] sm:$0xff]
    %v2860 = vld [vmem:[#allocation2 + $0x918] sm:$0xff]
    %v2861 = vld [vmem:[#allocation2 + $0x9b8] sm:$0xff]
    %v2862 = vld [vmem:[#allocation2 + $0x9c0] sm:$0xff]
    %v2863 = vld [vmem:[#allocation2 + $0xa60] sm:$0xff]
    %v2864 = vld [vmem:[#allocation2 + $0xa68] sm:$0xff]
    %v2865 = vld [vmem:[#allocation4 + $0x11] sm:$0x3]
    %v2867 = vperm.slane %v2865, 0
    %v2868 = vperm.slane %v2865, 1
    %2871 = vmatpush.msra.mxu0 %v2863
    %2872 = vmatpush.msra.mxu0 %v2861
    %2873 = vmatpush.msra.mxu0 %v2859
    %2874 = vmatpush.msra.mxu0 %v2857
    %2875 = vmatpush.msra.mxu0 %v2855
    %2876 = vmatpush.msra.mxu0 %v2853
    %2877 = vmatpush.msra.mxu0 %v2851
    %2878 = vmatpush.msra.mxu0 %v2849
    %2879 = vmatpush.msra.mxu0 %v2847
    %2880 = vmatpush.msra.mxu0 %v2845
    %2881 = vmatpush.msra.mxu0 %v2843
    %2882 = vmatpush.msra.mxu0 %v2841
    %2883 = vmatpush.msra.mxu0 %v2839
    %2884 = vmatpush.msra.mxu0 %v2837
    %2885 = vmatpush.msra.mxu0 %v2835
    %2886 = vmatpush.msra.mxu0 %v2833
    %2887 = vmatmul.f32.gmra.mxu0 %v2062
    %v2888 = vpop.f32.mrf.mxu0
    %v2889 = vadd.f32 %v2867, %v2888
    %2890 = vmatmul.f32.gmra.mxu0 %v2172
    %v2891 = vpop.f32.mrf.mxu0
    %v2892 = vadd.f32 %v2867, %v2891
    %2893 = vmatmul.f32.gmra.mxu0 %v2282
    %v2894 = vpop.f32.mrf.mxu0
    %v2895 = vadd.f32 %v2867, %v2894
    %2896 = vmatmul.f32.gmra.mxu0 %v2392
    %v2897 = vpop.f32.mrf.mxu0
    %v2898 = vadd.f32 %v2867, %v2897
    %2899 = vmatmul.f32.gmra.mxu0 %v2502
    %v2900 = vpop.f32.mrf.mxu0
    %v2901 = vadd.f32 %v2867, %v2900
    %2902 = vmatmul.f32.gmra.mxu0 %v2612
    %v2903 = vpop.f32.mrf.mxu0
    %v2904 = vadd.f32 %v2867, %v2903
    %2905 = vmatmul.f32.gmra.mxu0 %v2722
    %v2906 = vpop.f32.mrf.mxu0
    %v2907 = vadd.f32 %v2867, %v2906
    %2908 = vmatmul.f32.gmra.mxu0 %v2832
    %v2909 = vpop.f32.mrf.mxu0
    %v2910 = vadd.f32 %v2867, %v2909
    %2911 = vdwg.mxu0
    %2912 = vmatpush.msra.mxu0 %v2864
    %2913 = vmatpush.msra.mxu0 %v2862
    %2914 = vmatpush.msra.mxu0 %v2860
    %2915 = vmatpush.msra.mxu0 %v2858
    %2916 = vmatpush.msra.mxu0 %v2856
    %2917 = vmatpush.msra.mxu0 %v2854
    %2918 = vmatpush.msra.mxu0 %v2852
    %2919 = vmatpush.msra.mxu0 %v2850
    %2920 = vmatpush.msra.mxu0 %v2848
    %2921 = vmatpush.msra.mxu0 %v2846
    %2922 = vmatpush.msra.mxu0 %v2844
    %2923 = vmatpush.msra.mxu0 %v2842
    %2924 = vmatpush.msra.mxu0 %v2840
    %2925 = vmatpush.msra.mxu0 %v2838
    %2926 = vmatpush.msra.mxu0 %v2836
    %2927 = vmatpush.msra.mxu0 %v2834
    %2928 = vmatmul.f32.gmra.mxu0 %v2062
    %v2929 = vpop.f32.mrf.mxu0
    %v2930 = vadd.f32 %v2868, %v2929
    %2931 = vmatmul.f32.gmra.mxu0 %v2172
    %v2932 = vpop.f32.mrf.mxu0
    %v2933 = vadd.f32 %v2868, %v2932
    %2934 = vmatmul.f32.gmra.mxu0 %v2282
    %v2935 = vpop.f32.mrf.mxu0
    %v2936 = vadd.f32 %v2868, %v2935
    %2937 = vmatmul.f32.gmra.mxu0 %v2392
    %v2938 = vpop.f32.mrf.mxu0
    %v2939 = vadd.f32 %v2868, %v2938
    %2940 = vmatmul.f32.gmra.mxu0 %v2502
    %v2941 = vpop.f32.mrf.mxu0
    %v2942 = vadd.f32 %v2868, %v2941
    %2943 = vmatmul.f32.gmra.mxu0 %v2612
    %v2944 = vpop.f32.mrf.mxu0
    %v2945 = vadd.f32 %v2868, %v2944
    %2946 = vmatmul.f32.gmra.mxu0 %v2722
    %v2947 = vpop.f32.mrf.mxu0
    %v2948 = vadd.f32 %v2868, %v2947
    %2949 = vmatmul.f32.gmra.mxu0 %v2832
    %v2950 = vpop.f32.mrf.mxu0
    %v2951 = vadd.f32 %v2868, %v2950
    %2952 = vdwg.mxu0
    %v2953 = vmax.f32 %v2889, %v2930
    %2954 = vmax.xlane.f32.xlu0 %v2953
    %v2955 = vpop.xlane.xlu0 %2954
    %v2956 = vmax.f32 %v2892, %v2933
    %2957 = vmax.xlane.f32.xlu0 %v2956
    %v2958 = vpop.xlane.xlu0 %2957
    %v2959 = vmax.f32 %v2895, %v2936
    %2960 = vmax.xlane.f32.xlu0 %v2959
    %v2961 = vpop.xlane.xlu0 %2960
    %v2962 = vmax.f32 %v2898, %v2939
    %2963 = vmax.xlane.f32.xlu0 %v2962
    %v2964 = vpop.xlane.xlu0 %2963
    %v2965 = vmax.f32 %v2901, %v2942
    %2966 = vmax.xlane.f32.xlu0 %v2965
    %v2967 = vpop.xlane.xlu0 %2966
    %v2968 = vmax.f32 %v2904, %v2945
    %2969 = vmax.xlane.f32.xlu0 %v2968
    %v2970 = vpop.xlane.xlu0 %2969
    %v2971 = vmax.f32 %v2907, %v2948
    %2972 = vmax.xlane.f32.xlu0 %v2971
    %v2973 = vpop.xlane.xlu0 %2972
    %v2974 = vmax.f32 %v2910, %v2951
    %2975 = vmax.xlane.f32.xlu0 %v2974
    %v2976 = vpop.xlane.xlu0 %2975
    %v2977 = vsub.f32 %v2889, %v2955
    %v2978 = vsub.f32 %v2930, %v2955
    %v2979 = vsub.f32 %v2892, %v2958
    %v2980 = vsub.f32 %v2933, %v2958
    %v2981 = vsub.f32 %v2895, %v2961
    %v2982 = vsub.f32 %v2936, %v2961
    %v2983 = vsub.f32 %v2898, %v2964
    %v2984 = vsub.f32 %v2939, %v2964
    %v2985 = vsub.f32 %v2901, %v2967
    %v2986 = vsub.f32 %v2942, %v2967
    %v2987 = vsub.f32 %v2904, %v2970
    %v2988 = vsub.f32 %v2945, %v2970
    %v2989 = vsub.f32 %v2907, %v2973
    %v2990 = vsub.f32 %v2948, %v2973
    %v2991 = vsub.f32 %v2910, %v2976
    %v2992 = vsub.f32 %v2951, %v2976
    %v2993 = vmul.f32 %v2977, 1.442695
    %v2994 = vpow.pop %v2993
    %v2995 = vmul.f32 %v2978, 1.442695
    %v2996 = vpow.pop %v2995
    %v2997 = vmul.f32 %v2979, 1.442695
    %v2998 = vpow.pop %v2997
    %v2999 = vmul.f32 %v2980, 1.442695
    %v3000 = vpow.pop %v2999
    %v3001 = vmul.f32 %v2981, 1.442695
    %v3002 = vpow.pop %v3001
    %v3003 = vmul.f32 %v2982, 1.442695
    %v3004 = vpow.pop %v3003
    %v3005 = vmul.f32 %v2983, 1.442695
    %v3006 = vpow.pop %v3005
    %v3007 = vmul.f32 %v2984, 1.442695
    %v3008 = vpow.pop %v3007
    %v3009 = vmul.f32 %v2985, 1.442695
    %v3010 = vpow.pop %v3009
    %v3011 = vmul.f32 %v2986, 1.442695
    %v3012 = vpow.pop %v3011
    %v3013 = vmul.f32 %v2987, 1.442695
    %v3014 = vpow.pop %v3013
    %v3015 = vmul.f32 %v2988, 1.442695
    %v3016 = vpow.pop %v3015
    %v3017 = vmul.f32 %v2989, 1.442695
    %v3018 = vpow.pop %v3017
    %v3019 = vmul.f32 %v2990, 1.442695
    %v3020 = vpow.pop %v3019
    %v3021 = vmul.f32 %v2991, 1.442695
    %v3022 = vpow.pop %v3021
    %v3023 = vmul.f32 %v2992, 1.442695
    %v3024 = vpow.pop %v3023
    %v3025 = vadd.f32 %v2994, %v2996
    %3026 = vadd.xlane.f32.xlu0 %v3025
    %v3027 = vpop.xlane.xlu0 %3026
    %v3028 = vadd.f32 %v2998, %v3000
    %3029 = vadd.xlane.f32.xlu0 %v3028
    %v3030 = vpop.xlane.xlu0 %3029
    %v3031 = vadd.f32 %v3002, %v3004
    %3032 = vadd.xlane.f32.xlu0 %v3031
    %v3033 = vpop.xlane.xlu0 %3032
    %v3034 = vadd.f32 %v3006, %v3008
    %3035 = vadd.xlane.f32.xlu0 %v3034
    %v3036 = vpop.xlane.xlu0 %3035
    %v3037 = vadd.f32 %v3010, %v3012
    %3038 = vadd.xlane.f32.xlu0 %v3037
    %v3039 = vpop.xlane.xlu0 %3038
    %v3040 = vadd.f32 %v3014, %v3016
    %3041 = vadd.xlane.f32.xlu0 %v3040
    %v3042 = vpop.xlane.xlu0 %3041
    %v3043 = vadd.f32 %v3018, %v3020
    %3044 = vadd.xlane.f32.xlu0 %v3043
    %v3045 = vpop.xlane.xlu0 %3044
    %v3046 = vadd.f32 %v3022, %v3024
    %3047 = vadd.xlane.f32.xlu0 %v3046
    %v3048 = vpop.xlane.xlu0 %3047
    %v3049 = vlog2.pop %v3027
    %v3050 = vmul.f32 %v3049, 0.6931472
    %v3051 = vlog2.pop %v3030
    %v3052 = vmul.f32 %v3051, 0.6931472
    %v3053 = vlog2.pop %v3033
    %v3054 = vmul.f32 %v3053, 0.6931472
    %v3055 = vlog2.pop %v3036
    %v3056 = vmul.f32 %v3055, 0.6931472
    %v3057 = vlog2.pop %v3039
    %v3058 = vmul.f32 %v3057, 0.6931472
    %v3059 = vlog2.pop %v3042
    %v3060 = vmul.f32 %v3059, 0.6931472
    %v3061 = vlog2.pop %v3045
    %v3062 = vmul.f32 %v3061, 0.6931472
    %v3063 = vlog2.pop %v3048
    %v3064 = vmul.f32 %v3063, 0.6931472
    %v3065 = vadd.f32 %v3050, %v2955
    %v3066 = vadd.f32 %v3052, %v2958
    %v3067 = vadd.f32 %v3054, %v2961
    %v3068 = vadd.f32 %v3056, %v2964
    %v3069 = vadd.f32 %v3058, %v2967
    %v3070 = vadd.f32 %v3060, %v2970
    %v3071 = vadd.f32 %v3062, %v2973
    %v3072 = vadd.f32 %v3064, %v2976
    %3073 = vset.pattern.permute.xlu0 0
    %3074 = vperm.xlu0 %3073, %v63
    %v3075 = vpop.permute.xlu0 %3074
    %3076 = vset.pattern.permute.xlu0 0
    %3077 = vperm.xlu0 %3076, %v64
    %v3078 = vpop.permute.xlu0 %3077
    %3079 = vset.pattern.permute.xlu0 0
    %3080 = vperm.xlu0 %3079, %v65
    %v3081 = vpop.permute.xlu0 %3080
    %3082 = vset.pattern.permute.xlu0 0
    %3083 = vperm.xlu0 %3082, %v66
    %v3084 = vpop.permute.xlu0 %3083
    %3085 = vset.pattern.permute.xlu0 0
    %3086 = vperm.xlu0 %3085, %v67
    %v3087 = vpop.permute.xlu0 %3086
    %3088 = vset.pattern.permute.xlu0 0
    %3089 = vperm.xlu0 %3088, %v68
    %v3090 = vpop.permute.xlu0 %3089
    %3091 = vset.pattern.permute.xlu0 0
    %3092 = vperm.xlu0 %3091, %v69
    %v3093 = vpop.permute.xlu0 %3092
    %3094 = vset.pattern.permute.xlu0 0
    %3095 = vperm.xlu0 %3094, %v70
    %v3096 = vpop.permute.xlu0 %3095
    %vm3097 = vcmp.eq.s32.totalorder %v104, %v3075
    %vm3098 = vcmp.eq.s32.totalorder %v105, %v3075
    %vm3099 = vcmp.eq.s32.totalorder %v104, %v3078
    %vm3100 = vcmp.eq.s32.totalorder %v105, %v3078
    %vm3101 = vcmp.eq.s32.totalorder %v104, %v3081
    %vm3102 = vcmp.eq.s32.totalorder %v105, %v3081
    %vm3103 = vcmp.eq.s32.totalorder %v104, %v3084
    %vm3104 = vcmp.eq.s32.totalorder %v105, %v3084
    %vm3105 = vcmp.eq.s32.totalorder %v104, %v3087
    %vm3106 = vcmp.eq.s32.totalorder %v105, %v3087
    %vm3107 = vcmp.eq.s32.totalorder %v104, %v3090
    %vm3108 = vcmp.eq.s32.totalorder %v105, %v3090
    %vm3109 = vcmp.eq.s32.totalorder %v104, %v3093
    %vm3110 = vcmp.eq.s32.totalorder %v105, %v3093
    %vm3111 = vcmp.eq.s32.totalorder %v104, %v3096
    %vm3112 = vcmp.eq.s32.totalorder %v105, %v3096
    %v3113 = vsel %vm3097, %v2889, 0.0
    %v3114 = vsel %vm3098, %v2930, 0.0
    %v3115 = vsel %vm3099, %v2892, 0.0
    %v3116 = vsel %vm3100, %v2933, 0.0
    %v3117 = vsel %vm3101, %v2895, 0.0
    %v3118 = vsel %vm3102, %v2936, 0.0
    %v3119 = vsel %vm3103, %v2898, 0.0
    %v3120 = vsel %vm3104, %v2939, 0.0
    %v3121 = vsel %vm3105, %v2901, 0.0
    %v3122 = vsel %vm3106, %v2942, 0.0
    %v3123 = vsel %vm3107, %v2904, 0.0
    %v3124 = vsel %vm3108, %v2945, 0.0
    %v3125 = vsel %vm3109, %v2907, 0.0
    %v3126 = vsel %vm3110, %v2948, 0.0
    %v3127 = vsel %vm3111, %v2910, 0.0
    %v3128 = vsel %vm3112, %v2951, 0.0
    %v3129 = vadd.f32 %v3113, %v3114
    %3130 = vadd.xlane.f32.xlu0 %v3129
    %v3131 = vpop.xlane.xlu0 %3130
    %v3132 = vadd.f32 %v3115, %v3116
    %3133 = vadd.xlane.f32.xlu0 %v3132
    %v3134 = vpop.xlane.xlu0 %3133
    %v3135 = vadd.f32 %v3117, %v3118
    %3136 = vadd.xlane.f32.xlu0 %v3135
    %v3137 = vpop.xlane.xlu0 %3136
    %v3138 = vadd.f32 %v3119, %v3120
    %3139 = vadd.xlane.f32.xlu0 %v3138
    %v3140 = vpop.xlane.xlu0 %3139
    %v3141 = vadd.f32 %v3121, %v3122
    %3142 = vadd.xlane.f32.xlu0 %v3141
    %v3143 = vpop.xlane.xlu0 %3142
    %v3144 = vadd.f32 %v3123, %v3124
    %3145 = vadd.xlane.f32.xlu0 %v3144
    %v3146 = vpop.xlane.xlu0 %3145
    %v3147 = vadd.f32 %v3125, %v3126
    %3148 = vadd.xlane.f32.xlu0 %v3147
    %v3149 = vpop.xlane.xlu0 %3148
    %v3150 = vadd.f32 %v3127, %v3128
    %3151 = vadd.xlane.f32.xlu0 %v3150
    %v3152 = vpop.xlane.xlu0 %3151
    %v3153 = vadd.s32 %v1729, 8
    %v3154 = vadd.s32 %v1729, 16
    %v3155 = vadd.s32 %v1729, 24
    %v3156 = vadd.s32 %v1729, 32
    %v3157 = vadd.s32 %v1729, 40
    %v3158 = vadd.s32 %v1729, 48
    %v3159 = vadd.s32 %v1729, 56
    %v3160 = vand.u32 %v1729, 7
    %v3161 = vand.u32 %v3153, 7
    %v3162 = vand.u32 %v3154, 7
    %v3163 = vand.u32 %v3155, 7
    %v3164 = vand.u32 %v3156, 7
    %v3165 = vand.u32 %v3157, 7
    %v3166 = vand.u32 %v3158, 7
    %v3167 = vand.u32 %v3159, 7
    %vm3168 = vcmp.lt.s32.totalorder %v3160, 2
    %vm3169 = vcmp.lt.s32.totalorder %v3161, 2
    %vm3170 = vcmp.lt.s32.totalorder %v3162, 2
    %vm3171 = vcmp.lt.s32.totalorder %v3163, 2
    %vm3172 = vcmp.lt.s32.totalorder %v3164, 2
    %vm3173 = vcmp.lt.s32.totalorder %v3165, 2
    %vm3174 = vcmp.lt.s32.totalorder %v3166, 2
    %vm3175 = vcmp.lt.s32.totalorder %v3167, 2
    %v3176 = vsub.f32 %v3065, %v3131
    %v3177 = vsub.f32 %v3066, %v3134
    %v3178 = vsub.f32 %v3067, %v3137
    %v3179 = vsub.f32 %v3068, %v3140
    %v3180 = vsub.f32 %v3069, %v3143
    %v3181 = vsub.f32 %v3070, %v3146
    %v3182 = vsub.f32 %v3071, %v3149
    %v3183 = vsub.f32 %v3072, %v3152
    %v3184 = vsel %vm3168, %v3176, 0.0
    %v3185 = vsel %vm3169, %v3177, 0.0
    %v3186 = vsel %vm3170, %v3178, 0.0
    %v3187 = vsel %vm3171, %v3179, 0.0
    %v3188 = vsel %vm3172, %v3180, 0.0
    %v3189 = vsel %vm3173, %v3181, 0.0
    %v3190 = vsel %vm3174, %v3182, 0.0
    %v3191 = vsel %vm3175, %v3183, 0.0
    %v3192 = vadd.f32 %v3184, %v3185
    %v3193 = vadd.f32 %v3192, %v3186
    %v3194 = vadd.f32 %v3193, %v3187
    %v3195 = vadd.f32 %v3194, %v3188
    %v3196 = vadd.f32 %v3195, %v3189
    %v3197 = vadd.f32 %v3196, %v3190
    %v3198 = vadd.f32 %v3197, %v3191
    %v3199 = vrot.slane %v3198, 4
    %v3200 = vadd.f32 %v3198, %v3199
    %v3201 = vrot.slane %v3200, 2
    %v3202 = vadd.f32 %v3200, %v3201
    %v3203 = vrot.slane %v3202, 1
    %v3204 = vadd.f32 %v3202, %v3203
    %v3205 = vrcp.pop 16.0
    %v3206 = vmul.f32 16.0, %v3205
    %v3207 = vsub.f32 1.0, %v3206
    %v3208 = vmul.f32 %v3205, %v3207
    %v3209 = vadd.f32 %v3205, %v3208
    %vm3210 = vweird.f32 %v3205
    %v3211 = vsel %vm3210, %v3205, %v3209
    %v3212 = vmul.f32 %v3204, %v3211
    %vm3213 = vcmp.eq.s32.totalorder %v104, 0
    %v3214 = vsel %vm3213, %v3212, 0.0
    %vm3215 = vcmp.eq.s32.totalorder %v104, 1
    %v3216 = vsel %vm3215, %v1754, 0.0
    %v3217 = vadd.f32 %v3214, %v3216
    %3218 = vst [vmem:[%s4] sm:$0x1] %v3217
    // Predicated region
    $region26: #{rnn_vae_forward.1} parent=1 // pred_check
      _
    $region27: #{rnn_vae_forward.1} parent=1 // pred_check_branch
      %3220 = sbr.rel (0) target = $region29
    $region28: #{rnn_vae_forward.1} parent=1 // pred_region
      _
    $region29: #{rnn_vae_forward.1} parent=1 // pred_fallthru
      _
    // Predicated region
    $region30: #{rnn_vae_forward.1} parent=1 // pred_check
      _
    $region31: #{rnn_vae_forward.1} parent=1 // pred_check_branch
      %3222 = sbr.rel (0) target = $region33
    $region32: #{rnn_vae_forward.1} parent=1 // pred_region
      _
    $region33: #{rnn_vae_forward.1} parent=1 // pred_fallthru
      _
    %3223 = vsyncpa [#allocation3], 1
    %3224 = vsyncpa [#allocation5], 1

</llo_original>
